<compile_context>
chip_gen: v7x
topology: tpu7x:2x2x1
jax: 0.10.0
libtpu: 0.0.40
codegen_flags: <defaults>
</compile_context>

<pallas_src>
import functools

import jax
import jax.numpy as jnp
from jax.experimental import pallas as pl
from jax.experimental.pallas import tpu as pltpu


def _layernorm(y, gamma, beta, eps=1e-5):
    mu = jnp.mean(y, axis=-1, keepdims=True)
    var = jnp.mean((y - mu) ** 2, axis=-1, keepdims=True)
    return (y - mu) * jax.lax.rsqrt(var + eps) * gamma + beta


def transformer_block_kernel(
    x_ref,                     # (Bblk, t, e)  f32 activations for this grid step
    wq_ref, wk_ref, wv_ref,    # (heads, e, e) bf16
    wu_ref,                    # (heads, e, e) bf16  (unifyheads, per-head row block)
    bu_ref,                    # (1, e)  f32
    g1_ref, b1_ref,            # (1, e)  f32 layernorm 1
    w1_ref, bf1_ref,           # (e, 4e) bf16, (1, 4e) f32
    w2_ref, bf2_ref,           # (4e, e) bf16, (1, e)  f32
    g2_ref, b2_ref,            # (1, e)  f32 layernorm 2
    o_ref,                     # (Bblk, t, e)
    *, mask):
    bblk, t, e = x_ref.shape
    heads = wq_ref.shape[0]

    x3 = x_ref[...].astype(jnp.float32)          # residual / LN math in f32
    x2 = x3.reshape(bblk * t, e)
    x_bf = x2.astype(jnp.bfloat16)               # MXU inputs in bf16, f32 accumulation

    scale = jnp.float32(1.0 / (e ** 0.5))        # == (1/e**0.25) applied to both q and k

    if mask:
        rows = jax.lax.broadcasted_iota(jnp.int32, (t, t), 0)
        cols = jax.lax.broadcasted_iota(jnp.int32, (t, t), 1)
        bias = jnp.where(cols > rows, jnp.float32(-1e30), jnp.float32(0.0))
        mask_bias = jnp.broadcast_to(bias[None], (bblk, t, t))   # hoisted broadcast

    # Per-head attention; unifyheads folded in as a sum of per-head matmuls, avoiding a
    # (Bblk*t, h*e) concat in VMEM.
    attended = jnp.zeros((bblk * t, e), jnp.float32)
    for h in range(heads):                       # static unroll, heads is small
        q = jnp.dot(x_bf, wq_ref[h], preferred_element_type=jnp.float32)
        k = jnp.dot(x_bf, wk_ref[h], preferred_element_type=jnp.float32)
        v = jnp.dot(x_bf, wv_ref[h], preferred_element_type=jnp.float32)

        q3 = q.reshape(bblk, t, e).astype(jnp.bfloat16)
        k3 = k.reshape(bblk, t, e).astype(jnp.bfloat16)
        v3 = v.reshape(bblk, t, e).astype(jnp.bfloat16)

        # contract last dims directly on the MXU (no explicit k.T)
        dot = jnp.einsum("bqd,bkd->bqk", q3, k3,
                         preferred_element_type=jnp.float32) * scale
        if mask:
            dot = dot + mask_bias
        dot = dot - jnp.max(dot, axis=-1, keepdims=True)
        p = jnp.exp(dot)
        p = p * pl.reciprocal(jnp.sum(p, axis=-1, keepdims=True), approx=True)

        o_h = jnp.einsum("bqk,bkd->bqd", p.astype(jnp.bfloat16), v3,
                         preferred_element_type=jnp.float32)
        attended = attended + jnp.dot(
            o_h.reshape(bblk * t, e).astype(jnp.bfloat16), wu_ref[h],
            preferred_element_type=jnp.float32)
    attended = attended + bu_ref[...]

    # residual + LayerNorm 1   (dropout p=0.0 is the identity)
    y = _layernorm(attended + x2, g1_ref[...], b1_ref[...])

    # feed-forward: Linear -> ReLU -> Linear (bf16 matmul inputs, f32 accumulation)
    h1 = jnp.maximum(
        jnp.dot(y.astype(jnp.bfloat16), w1_ref[...],
                preferred_element_type=jnp.float32) + bf1_ref[...], 0.0)
    ff = jnp.dot(h1.astype(jnp.bfloat16), w2_ref[...],
                 preferred_element_type=jnp.float32) + bf2_ref[...]

    # residual + LayerNorm 2
    out = _layernorm(ff + y, g2_ref[...], b2_ref[...])
    o_ref[...] = out.reshape(bblk, t, e).astype(o_ref.dtype)


def _pick_bblk(b, t, target_rows=256):
    """Largest divisor of b such that bblk * t <= target_rows (fills MXU M dim)."""
    bblk = 1
    for cand in range(1, b + 1):
        if b % cand == 0 and cand * t <= target_rows:
            bblk = cand
    return bblk


def transformer_block(x, params, *, heads, mask=False):
    b, t, e = x.shape
    (wqT, wkT, wvT, wuT, bu, g1, b1, w1T, bf1, w2T, bf2, g2, b2) = params

    # per-head (e, e) slabs, bf16 for the MXU
    wq3 = wqT.reshape(e, heads, e).transpose(1, 0, 2).astype(jnp.bfloat16)
    wk3 = wkT.reshape(e, heads, e).transpose(1, 0, 2).astype(jnp.bfloat16)
    wv3 = wvT.reshape(e, heads, e).transpose(1, 0, 2).astype(jnp.bfloat16)
    wu3 = wuT.reshape(heads, e, e).astype(jnp.bfloat16)
    w1b = w1T.astype(jnp.bfloat16)
    w2b = w2T.astype(jnp.bfloat16)

    bblk = _pick_bblk(b, t)
    grid = (b // bblk,)

    kern = functools.partial(transformer_block_kernel, mask=mask)

    def full(a):
        nd = a.ndim
        return pl.BlockSpec(a.shape, lambda *i: (0,) * nd)

    weights = [wq3, wk3, wv3, wu3, bu, g1, b1, w1b, bf1, w2b, bf2, g2, b2]
    in_specs = [pl.BlockSpec((bblk, t, e), lambda i: (i, 0, 0))] + \
               [full(w) for w in weights]

    # explicit VMEM budget: double-buffered weights + activation blocks + headroom
    def nbytes(a):
        return a.size * a.dtype.itemsize
    w_bytes = sum(nbytes(w) for w in weights)
    act_bytes = bblk * t * e * 4
    vmem_limit = 2 * w_bytes + 8 * act_bytes + (8 << 20)
    vmem_limit = int(min(max(vmem_limit, 32 << 20), 64 << 20))

    return pl.pallas_call(
        kern,
        out_shape=jax.ShapeDtypeStruct((b, t, e), x.dtype),
        grid_spec=pltpu.PrefetchScalarGridSpec(
            num_scalar_prefetch=0,
            grid=grid,
            in_specs=in_specs,
            out_specs=pl.BlockSpec((bblk, t, e), lambda i: (i, 0, 0)),
        ),
        compiler_params=pltpu.CompilerParams(
            dimension_semantics=("parallel",),   # megacore sharding on v7x
            vmem_limit_bytes=vmem_limit,
        ),
    )(x, *weights)


def reference_transformer_block(x, params, *, heads, mask=False):
    """Pure-JAX f32 reference mirroring the PyTorch forward (for correctness check)."""
    (wqT, wkT, wvT, wuT, bu, g1, b1, w1T, bf1, w2T, bf2, g2, b2) = params
    b, t, e = x.shape
    scale = e ** 0.25

    def proj(w):
        y = x @ w                                       # (b, t, h*e)
        y = y.reshape(b, t, heads, e).transpose(0, 2, 1, 3).reshape(b * heads, t, e)
        return y

    q = proj(wqT) / scale
    k = proj(wkT) / scale
    v = proj(wvT)
    dot = jnp.einsum("bte,bse->bts", q, k)
    if mask:
        rows = jnp.arange(t)[:, None]
        cols = jnp.arange(t)[None, :]
        dot = jnp.where(cols > rows, -jnp.inf, dot)
    p = jax.nn.softmax(dot, axis=-1)
    out = jnp.einsum("bts,bse->bte", p, v)
    out = out.reshape(b, heads, t, e).transpose(0, 2, 1, 3).reshape(b, t, heads * e)
    attended = out @ wuT + bu

    def ln(y, g, bet):
        mu = y.mean(-1, keepdims=True)
        var = ((y - mu) ** 2).mean(-1, keepdims=True)
        return (y - mu) / jnp.sqrt(var + 1e-5) * g + bet

    y = ln(attended + x, g1, b1)
    h1 = jnp.maximum(y @ w1T + bf1, 0.0)
    ff = h1 @ w2T + bf2
    return ln(ff + y, g2, b2)


def init_params(key, emb, heads, ff_hidden_mult=4):
    """Deterministic synthetic parameters (shapes match the PyTorch module)."""
    ks = jax.random.split(key, 8)
    s = 0.05
    wqT = jax.random.normal(ks[0], (emb, heads * emb), jnp.float32) * s
    wkT = jax.random.normal(ks[1], (emb, heads * emb), jnp.float32) * s
    wvT = jax.random.normal(ks[2], (emb, heads * emb), jnp.float32) * s
    wuT = jax.random.normal(ks[3], (heads * emb, emb), jnp.float32) * s
    bu = jax.random.normal(ks[4], (1, emb), jnp.float32) * s
    g1 = jnp.ones((1, emb), jnp.float32)
    b1 = jnp.zeros((1, emb), jnp.float32)
    w1T = jax.random.normal(ks[5], (emb, ff_hidden_mult * emb), jnp.float32) * s
    bf1 = jax.random.normal(ks[6], (1, ff_hidden_mult * emb), jnp.float32) * s
    w2T = jax.random.normal(ks[7], (ff_hidden_mult * emb, emb), jnp.float32) * s
    bf2 = jnp.zeros((1, emb), jnp.float32)
    g2 = jnp.ones((1, emb), jnp.float32)
    b2 = jnp.zeros((1, emb), jnp.float32)
    return (wqT, wkT, wvT, wuT, bu, g1, b1, w1T, bf1, w2T, bf2, g2, b2)


if __name__ == "__main__":
    B, T, EMB, HEADS = 2, 8, 32, 8
    MASK = True

    key = jax.random.PRNGKey(0)
    kx, kp = jax.random.split(key)
    x = jax.random.normal(kx, (B, T, EMB), jnp.float32)
    params = init_params(kp, EMB, HEADS)

    out = transformer_block(x, params, heads=HEADS, mask=MASK)
    out = jax.block_until_ready(out)

    ref = reference_transformer_block(x, params, heads=HEADS, mask=MASK)
    assert out.shape == (B, T, EMB)
    # Tolerance loosened vs a pure-f32 reference because the kernel feeds the MXU bf16
    # inputs (f32 accumulation) and uses approx reciprocal in the softmax.
    assert jnp.allclose(out, ref, rtol=3e-2, atol=3e-2), "mismatch vs JAX reference"

    print("KERNEL_OK")
</pallas_src>

<mosaic_0001>
module attributes {stable_mosaic.version = 11 : i64} {
  func.func @transformer_block_kernel(%arg0: i32, %arg1: memref<2x8x32xf32, #tpu.memory_space<vmem>>, %arg2: memref<8x32x32xbf16, #tpu.memory_space<vmem>>, %arg3: memref<8x32x32xbf16, #tpu.memory_space<vmem>>, %arg4: memref<8x32x32xbf16, #tpu.memory_space<vmem>>, %arg5: memref<8x32x32xbf16, #tpu.memory_space<vmem>>, %arg6: memref<1x32xf32, #tpu.memory_space<vmem>>, %arg7: memref<1x32xf32, #tpu.memory_space<vmem>>, %arg8: memref<1x32xf32, #tpu.memory_space<vmem>>, %arg9: memref<32x128xbf16, #tpu.memory_space<vmem>>, %arg10: memref<1x128xf32, #tpu.memory_space<vmem>>, %arg11: memref<128x32xbf16, #tpu.memory_space<vmem>>, %arg12: memref<1x32xf32, #tpu.memory_space<vmem>>, %arg13: memref<1x32xf32, #tpu.memory_space<vmem>>, %arg14: memref<1x32xf32, #tpu.memory_space<vmem>>, %arg15: memref<2x8x32xf32, #tpu.memory_space<vmem>>) attributes {dimension_semantics = [#tpu.dimension_semantics<parallel>], iteration_bounds = array<i64: 1>, scalar_prefetch = 0 : i64, scratch_operands = 0 : i64, tpu.core_type = #tpu.core_type<tc>, window_params = [{transform_indices = @transform_0, window_bounds = array<i64: 2, 8, 32>}, {pipeline_mode = #tpu.pipeline_mode<synchronous>, transform_indices = @transform_1, window_bounds = array<i64: 8, 32, 32>}, {pipeline_mode = #tpu.pipeline_mode<synchronous>, transform_indices = @transform_2, window_bounds = array<i64: 8, 32, 32>}, {pipeline_mode = #tpu.pipeline_mode<synchronous>, transform_indices = @transform_3, window_bounds = array<i64: 8, 32, 32>}, {pipeline_mode = #tpu.pipeline_mode<synchronous>, transform_indices = @transform_4, window_bounds = array<i64: 8, 32, 32>}, {pipeline_mode = #tpu.pipeline_mode<synchronous>, transform_indices = @transform_5, window_bounds = array<i64: 1, 32>}, {pipeline_mode = #tpu.pipeline_mode<synchronous>, transform_indices = @transform_6, window_bounds = array<i64: 1, 32>}, {pipeline_mode = #tpu.pipeline_mode<synchronous>, transform_indices = @transform_7, window_bounds = array<i64: 1, 32>}, {pipeline_mode = #tpu.pipeline_mode<synchronous>, transform_indices = @transform_8, window_bounds = array<i64: 32, 128>}, {pipeline_mode = #tpu.pipeline_mode<synchronous>, transform_indices = @transform_9, window_bounds = array<i64: 1, 128>}, {pipeline_mode = #tpu.pipeline_mode<synchronous>, transform_indices = @transform_10, window_bounds = array<i64: 128, 32>}, {pipeline_mode = #tpu.pipeline_mode<synchronous>, transform_indices = @transform_11, window_bounds = array<i64: 1, 32>}, {pipeline_mode = #tpu.pipeline_mode<synchronous>, transform_indices = @transform_12, window_bounds = array<i64: 1, 32>}, {pipeline_mode = #tpu.pipeline_mode<synchronous>, transform_indices = @transform_13, window_bounds = array<i64: 1, 32>}, {transform_indices = @transform_14, window_bounds = array<i64: 2, 8, 32>}]} {
    %c0 = arith.constant 0 : index
    %c0_0 = arith.constant 0 : index
    %c0_1 = arith.constant 0 : index
    %0 = vector.load %arg1[%c0, %c0_0, %c0_1] : memref<2x8x32xf32, #tpu.memory_space<vmem>>, vector<2x8x32xf32>
    %1 = vector.shape_cast %0 : vector<2x8x32xf32> to vector<16x32xf32>
    %2 = arith.truncf %1 : vector<16x32xf32> to vector<16x32xbf16>
    %3 = tpu.iota {dimensions = array<i32: 0>} : vector<8x8xi32>
    %4 = tpu.iota {dimensions = array<i32: 1>} : vector<8x8xi32>
    %5 = arith.cmpi sgt, %4, %3 : vector<8x8xi32>
    %cst = arith.constant -1.000000e+30 : f32
    %cst_2 = arith.constant 0.000000e+00 : f32
    %6 = vector.broadcast %cst : f32 to vector<8x8xf32>
    %7 = vector.broadcast %cst_2 : f32 to vector<8x8xf32>
    %8 = arith.select %5, %6, %7 : vector<8x8xi1>, vector<8x8xf32>
    %9 = vector.shape_cast %8 : vector<8x8xf32> to vector<1x8x8xf32>
    %10 = vector.shape_cast %9 : vector<1x8x8xf32> to vector<1x8x8xf32>
    %11 = vector.broadcast %10 : vector<1x8x8xf32> to vector<2x8x8xf32>
    %cst_3 = arith.constant 0.000000e+00 : f32
    %12 = vector.broadcast %cst_3 : f32 to vector<16x32xf32>
    %c0_4 = arith.constant 0 : index
    %c0_5 = arith.constant 0 : index
    %c0_6 = arith.constant 0 : index
    %13 = vector.load %arg2[%c0_4, %c0_5, %c0_6] : memref<8x32x32xbf16, #tpu.memory_space<vmem>>, vector<1x32x32xbf16>
    %14 = vector.shape_cast %13 : vector<1x32x32xbf16> to vector<32x32xbf16>
    %cst_7 = arith.constant dense<0.000000e+00> : vector<16x32xf32>
    %15 = tpu.matmul %2, %14, %cst_7 {dimension_numbers = #tpu.dot_dimension_numbers<[1], [0], [0], [1], [0, 0, 1, 1], [], []>} : vector<16x32xbf16>, vector<32x32xbf16>, vector<16x32xf32> -> vector<16x32xf32>
    %c0_8 = arith.constant 0 : index
    %c0_9 = arith.constant 0 : index
    %c0_10 = arith.constant 0 : index
    %16 = vector.load %arg3[%c0_8, %c0_9, %c0_10] : memref<8x32x32xbf16, #tpu.memory_space<vmem>>, vector<1x32x32xbf16>
    %17 = vector.shape_cast %16 : vector<1x32x32xbf16> to vector<32x32xbf16>
    %cst_11 = arith.constant dense<0.000000e+00> : vector<16x32xf32>
    %18 = tpu.matmul %2, %17, %cst_11 {dimension_numbers = #tpu.dot_dimension_numbers<[1], [0], [0], [1], [0, 0, 1, 1], [], []>} : vector<16x32xbf16>, vector<32x32xbf16>, vector<16x32xf32> -> vector<16x32xf32>
    %c0_12 = arith.constant 0 : index
    %c0_13 = arith.constant 0 : index
    %c0_14 = arith.constant 0 : index
    %19 = vector.load %arg4[%c0_12, %c0_13, %c0_14] : memref<8x32x32xbf16, #tpu.memory_space<vmem>>, vector<1x32x32xbf16>
    %20 = vector.shape_cast %19 : vector<1x32x32xbf16> to vector<32x32xbf16>
    %cst_15 = arith.constant dense<0.000000e+00> : vector<16x32xf32>
    %21 = tpu.matmul %2, %20, %cst_15 {dimension_numbers = #tpu.dot_dimension_numbers<[1], [0], [0], [1], [0, 0, 1, 1], [], []>} : vector<16x32xbf16>, vector<32x32xbf16>, vector<16x32xf32> -> vector<16x32xf32>
    %22 = vector.shape_cast %15 : vector<16x32xf32> to vector<2x8x32xf32>
    %23 = arith.truncf %22 : vector<2x8x32xf32> to vector<2x8x32xbf16>
    %24 = vector.shape_cast %18 : vector<16x32xf32> to vector<2x8x32xf32>
    %25 = arith.truncf %24 : vector<2x8x32xf32> to vector<2x8x32xbf16>
    %26 = vector.shape_cast %21 : vector<16x32xf32> to vector<2x8x32xf32>
    %27 = arith.truncf %26 : vector<2x8x32xf32> to vector<2x8x32xbf16>
    "tpu.trace_start"() <{level = 10 : i32, message = "bqd,bkd->bqk"}> : () -> ()
    %cst_16 = arith.constant dense<0.000000e+00> : vector<2x8x8xf32>
    %28 = tpu.matmul %23, %25, %cst_16 {dimension_numbers = #tpu.dot_dimension_numbers<[2], [2], [1], [1], [0, 0, 0, 1, 1, 1], [0], [0]>} : vector<2x8x32xbf16>, vector<2x8x32xbf16>, vector<2x8x8xf32> -> vector<2x8x8xf32>
    "tpu.trace_stop"() : () -> ()
    %cst_17 = arith.constant 0.176776692 : f32
    %29 = vector.broadcast %cst_17 : f32 to vector<2x8x8xf32>
    %30 = arith.mulf %28, %29 : vector<2x8x8xf32>
    %31 = arith.addf %30, %11 : vector<2x8x8xf32>
    %cst_18 = arith.constant dense<0xFF800000> : vector<2x8xf32>
    %32 = vector.multi_reduction <maximumf>, %31, %cst_18 [2] : vector<2x8x8xf32> to vector<2x8xf32>
    %33 = vector.shape_cast %32 : vector<2x8xf32> to vector<2x8x1xf32>
    %34 = vector.broadcast %33 : vector<2x8x1xf32> to vector<2x8x8xf32>
    %35 = arith.subf %31, %34 : vector<2x8x8xf32>
    %36 = math.exp %35 : vector<2x8x8xf32>
    %cst_19 = arith.constant dense<0.000000e+00> : vector<2x8xf32>
    %37 = vector.multi_reduction <add>, %36, %cst_19 [2] : vector<2x8x8xf32> to vector<2x8xf32>
    %38 = vector.shape_cast %37 : vector<2x8xf32> to vector<2x8x1xf32>
    %39 = tpu.reciprocal %38 {approx = true} : vector<2x8x1xf32> -> vector<2x8x1xf32>
    %40 = vector.broadcast %39 : vector<2x8x1xf32> to vector<2x8x8xf32>
    %41 = arith.mulf %36, %40 : vector<2x8x8xf32>
    %42 = arith.truncf %41 : vector<2x8x8xf32> to vector<2x8x8xbf16>
    "tpu.trace_start"() <{level = 10 : i32, message = "bqk,bkd->bqd"}> : () -> ()
    %cst_20 = arith.constant dense<0.000000e+00> : vector<2x8x32xf32>
    %43 = tpu.matmul %42, %27, %cst_20 {dimension_numbers = #tpu.dot_dimension_numbers<[2], [1], [1], [2], [0, 0, 0, 1, 1, 2], [0], [0]>} : vector<2x8x8xbf16>, vector<2x8x32xbf16>, vector<2x8x32xf32> -> vector<2x8x32xf32>
    "tpu.trace_stop"() : () -> ()
    %44 = vector.shape_cast %43 : vector<2x8x32xf32> to vector<16x32xf32>
    %45 = arith.truncf %44 : vector<16x32xf32> to vector<16x32xbf16>
    %c0_21 = arith.constant 0 : index
    %c0_22 = arith.constant 0 : index
    %c0_23 = arith.constant 0 : index
    %46 = vector.load %arg5[%c0_21, %c0_22, %c0_23] : memref<8x32x32xbf16, #tpu.memory_space<vmem>>, vector<1x32x32xbf16>
    %47 = vector.shape_cast %46 : vector<1x32x32xbf16> to vector<32x32xbf16>
    %cst_24 = arith.constant dense<0.000000e+00> : vector<16x32xf32>
    %48 = tpu.matmul %45, %47, %cst_24 {dimension_numbers = #tpu.dot_dimension_numbers<[1], [0], [0], [1], [0, 0, 1, 1], [], []>} : vector<16x32xbf16>, vector<32x32xbf16>, vector<16x32xf32> -> vector<16x32xf32>
    %49 = arith.addf %12, %48 : vector<16x32xf32>
    %c1 = arith.constant 1 : index
    %c0_25 = arith.constant 0 : index
    %c0_26 = arith.constant 0 : index
    %50 = vector.load %arg2[%c1, %c0_25, %c0_26] : memref<8x32x32xbf16, #tpu.memory_space<vmem>>, vector<1x32x32xbf16>
    %51 = vector.shape_cast %50 : vector<1x32x32xbf16> to vector<32x32xbf16>
    %cst_27 = arith.constant dense<0.000000e+00> : vector<16x32xf32>
    %52 = tpu.matmul %2, %51, %cst_27 {dimension_numbers = #tpu.dot_dimension_numbers<[1], [0], [0], [1], [0, 0, 1, 1], [], []>} : vector<16x32xbf16>, vector<32x32xbf16>, vector<16x32xf32> -> vector<16x32xf32>
    %c1_28 = arith.constant 1 : index
    %c0_29 = arith.constant 0 : index
    %c0_30 = arith.constant 0 : index
    %53 = vector.load %arg3[%c1_28, %c0_29, %c0_30] : memref<8x32x32xbf16, #tpu.memory_space<vmem>>, vector<1x32x32xbf16>
    %54 = vector.shape_cast %53 : vector<1x32x32xbf16> to vector<32x32xbf16>
    %cst_31 = arith.constant dense<0.000000e+00> : vector<16x32xf32>
    %55 = tpu.matmul %2, %54, %cst_31 {dimension_numbers = #tpu.dot_dimension_numbers<[1], [0], [0], [1], [0, 0, 1, 1], [], []>} : vector<16x32xbf16>, vector<32x32xbf16>, vector<16x32xf32> -> vector<16x32xf32>
    %c1_32 = arith.constant 1 : index
    %c0_33 = arith.constant 0 : index
    %c0_34 = arith.constant 0 : index
    %56 = vector.load %arg4[%c1_32, %c0_33, %c0_34] : memref<8x32x32xbf16, #tpu.memory_space<vmem>>, vector<1x32x32xbf16>
    %57 = vector.shape_cast %56 : vector<1x32x32xbf16> to vector<32x32xbf16>
    %cst_35 = arith.constant dense<0.000000e+00> : vector<16x32xf32>
    %58 = tpu.matmul %2, %57, %cst_35 {dimension_numbers = #tpu.dot_dimension_numbers<[1], [0], [0], [1], [0, 0, 1, 1], [], []>} : vector<16x32xbf16>, vector<32x32xbf16>, vector<16x32xf32> -> vector<16x32xf32>
    %59 = vector.shape_cast %52 : vector<16x32xf32> to vector<2x8x32xf32>
    %60 = arith.truncf %59 : vector<2x8x32xf32> to vector<2x8x32xbf16>
    %61 = vector.shape_cast %55 : vector<16x32xf32> to vector<2x8x32xf32>
    %62 = arith.truncf %61 : vector<2x8x32xf32> to vector<2x8x32xbf16>
    %63 = vector.shape_cast %58 : vector<16x32xf32> to vector<2x8x32xf32>
    %64 = arith.truncf %63 : vector<2x8x32xf32> to vector<2x8x32xbf16>
    "tpu.trace_start"() <{level = 10 : i32, message = "bqd,bkd->bqk"}> : () -> ()
    %cst_36 = arith.constant dense<0.000000e+00> : vector<2x8x8xf32>
    %65 = tpu.matmul %60, %62, %cst_36 {dimension_numbers = #tpu.dot_dimension_numbers<[2], [2], [1], [1], [0, 0, 0, 1, 1, 1], [0], [0]>} : vector<2x8x32xbf16>, vector<2x8x32xbf16>, vector<2x8x8xf32> -> vector<2x8x8xf32>
    "tpu.trace_stop"() : () -> ()
    %cst_37 = arith.constant 0.176776692 : f32
    %66 = vector.broadcast %cst_37 : f32 to vector<2x8x8xf32>
    %67 = arith.mulf %65, %66 : vector<2x8x8xf32>
    %68 = arith.addf %67, %11 : vector<2x8x8xf32>
    %cst_38 = arith.constant dense<0xFF800000> : vector<2x8xf32>
    %69 = vector.multi_reduction <maximumf>, %68, %cst_38 [2] : vector<2x8x8xf32> to vector<2x8xf32>
    %70 = vector.shape_cast %69 : vector<2x8xf32> to vector<2x8x1xf32>
    %71 = vector.broadcast %70 : vector<2x8x1xf32> to vector<2x8x8xf32>
    %72 = arith.subf %68, %71 : vector<2x8x8xf32>
    %73 = math.exp %72 : vector<2x8x8xf32>
    %cst_39 = arith.constant dense<0.000000e+00> : vector<2x8xf32>
    %74 = vector.multi_reduction <add>, %73, %cst_39 [2] : vector<2x8x8xf32> to vector<2x8xf32>
    %75 = vector.shape_cast %74 : vector<2x8xf32> to vector<2x8x1xf32>
    %76 = tpu.reciprocal %75 {approx = true} : vector<2x8x1xf32> -> vector<2x8x1xf32>
    %77 = vector.broadcast %76 : vector<2x8x1xf32> to vector<2x8x8xf32>
    %78 = arith.mulf %73, %77 : vector<2x8x8xf32>
    %79 = arith.truncf %78 : vector<2x8x8xf32> to vector<2x8x8xbf16>
    "tpu.trace_start"() <{level = 10 : i32, message = "bqk,bkd->bqd"}> : () -> ()
    %cst_40 = arith.constant dense<0.000000e+00> : vector<2x8x32xf32>
    %80 = tpu.matmul %79, %64, %cst_40 {dimension_numbers = #tpu.dot_dimension_numbers<[2], [1], [1], [2], [0, 0, 0, 1, 1, 2], [0], [0]>} : vector<2x8x8xbf16>, vector<2x8x32xbf16>, vector<2x8x32xf32> -> vector<2x8x32xf32>
    "tpu.trace_stop"() : () -> ()
    %81 = vector.shape_cast %80 : vector<2x8x32xf32> to vector<16x32xf32>
    %82 = arith.truncf %81 : vector<16x32xf32> to vector<16x32xbf16>
    %c1_41 = arith.constant 1 : index
    %c0_42 = arith.constant 0 : index
    %c0_43 = arith.constant 0 : index
    %83 = vector.load %arg5[%c1_41, %c0_42, %c0_43] : memref<8x32x32xbf16, #tpu.memory_space<vmem>>, vector<1x32x32xbf16>
    %84 = vector.shape_cast %83 : vector<1x32x32xbf16> to vector<32x32xbf16>
    %cst_44 = arith.constant dense<0.000000e+00> : vector<16x32xf32>
    %85 = tpu.matmul %82, %84, %cst_44 {dimension_numbers = #tpu.dot_dimension_numbers<[1], [0], [0], [1], [0, 0, 1, 1], [], []>} : vector<16x32xbf16>, vector<32x32xbf16>, vector<16x32xf32> -> vector<16x32xf32>
    %86 = arith.addf %49, %85 : vector<16x32xf32>
    %c2 = arith.constant 2 : index
    %c0_45 = arith.constant 0 : index
    %c0_46 = arith.constant 0 : index
    %87 = vector.load %arg2[%c2, %c0_45, %c0_46] : memref<8x32x32xbf16, #tpu.memory_space<vmem>>, vector<1x32x32xbf16>
    %88 = vector.shape_cast %87 : vector<1x32x32xbf16> to vector<32x32xbf16>
    %cst_47 = arith.constant dense<0.000000e+00> : vector<16x32xf32>
    %89 = tpu.matmul %2, %88, %cst_47 {dimension_numbers = #tpu.dot_dimension_numbers<[1], [0], [0], [1], [0, 0, 1, 1], [], []>} : vector<16x32xbf16>, vector<32x32xbf16>, vector<16x32xf32> -> vector<16x32xf32>
    %c2_48 = arith.constant 2 : index
    %c0_49 = arith.constant 0 : index
    %c0_50 = arith.constant 0 : index
    %90 = vector.load %arg3[%c2_48, %c0_49, %c0_50] : memref<8x32x32xbf16, #tpu.memory_space<vmem>>, vector<1x32x32xbf16>
    %91 = vector.shape_cast %90 : vector<1x32x32xbf16> to vector<32x32xbf16>
    %cst_51 = arith.constant dense<0.000000e+00> : vector<16x32xf32>
    %92 = tpu.matmul %2, %91, %cst_51 {dimension_numbers = #tpu.dot_dimension_numbers<[1], [0], [0], [1], [0, 0, 1, 1], [], []>} : vector<16x32xbf16>, vector<32x32xbf16>, vector<16x32xf32> -> vector<16x32xf32>
    %c2_52 = arith.constant 2 : index
    %c0_53 = arith.constant 0 : index
    %c0_54 = arith.constant 0 : index
    %93 = vector.load %arg4[%c2_52, %c0_53, %c0_54] : memref<8x32x32xbf16, #tpu.memory_space<vmem>>, vector<1x32x32xbf16>
    %94 = vector.shape_cast %93 : vector<1x32x32xbf16> to vector<32x32xbf16>
    %cst_55 = arith.constant dense<0.000000e+00> : vector<16x32xf32>
    %95 = tpu.matmul %2, %94, %cst_55 {dimension_numbers = #tpu.dot_dimension_numbers<[1], [0], [0], [1], [0, 0, 1, 1], [], []>} : vector<16x32xbf16>, vector<32x32xbf16>, vector<16x32xf32> -> vector<16x32xf32>
    %96 = vector.shape_cast %89 : vector<16x32xf32> to vector<2x8x32xf32>
    %97 = arith.truncf %96 : vector<2x8x32xf32> to vector<2x8x32xbf16>
    %98 = vector.shape_cast %92 : vector<16x32xf32> to vector<2x8x32xf32>
    %99 = arith.truncf %98 : vector<2x8x32xf32> to vector<2x8x32xbf16>
    %100 = vector.shape_cast %95 : vector<16x32xf32> to vector<2x8x32xf32>
    %101 = arith.truncf %100 : vector<2x8x32xf32> to vector<2x8x32xbf16>
    "tpu.trace_start"() <{level = 10 : i32, message = "bqd,bkd->bqk"}> : () -> ()
    %cst_56 = arith.constant dense<0.000000e+00> : vector<2x8x8xf32>
    %102 = tpu.matmul %97, %99, %cst_56 {dimension_numbers = #tpu.dot_dimension_numbers<[2], [2], [1], [1], [0, 0, 0, 1, 1, 1], [0], [0]>} : vector<2x8x32xbf16>, vector<2x8x32xbf16>, vector<2x8x8xf32> -> vector<2x8x8xf32>
    "tpu.trace_stop"() : () -> ()
    %cst_57 = arith.constant 0.176776692 : f32
    %103 = vector.broadcast %cst_57 : f32 to vector<2x8x8xf32>
    %104 = arith.mulf %102, %103 : vector<2x8x8xf32>
    %105 = arith.addf %104, %11 : vector<2x8x8xf32>
    %cst_58 = arith.constant dense<0xFF800000> : vector<2x8xf32>
    %106 = vector.multi_reduction <maximumf>, %105, %cst_58 [2] : vector<2x8x8xf32> to vector<2x8xf32>
    %107 = vector.shape_cast %106 : vector<2x8xf32> to vector<2x8x1xf32>
    %108 = vector.broadcast %107 : vector<2x8x1xf32> to vector<2x8x8xf32>
    %109 = arith.subf %105, %108 : vector<2x8x8xf32>
    %110 = math.exp %109 : vector<2x8x8xf32>
    %cst_59 = arith.constant dense<0.000000e+00> : vector<2x8xf32>
    %111 = vector.multi_reduction <add>, %110, %cst_59 [2] : vector<2x8x8xf32> to vector<2x8xf32>
    %112 = vector.shape_cast %111 : vector<2x8xf32> to vector<2x8x1xf32>
    %113 = tpu.reciprocal %112 {approx = true} : vector<2x8x1xf32> -> vector<2x8x1xf32>
    %114 = vector.broadcast %113 : vector<2x8x1xf32> to vector<2x8x8xf32>
    %115 = arith.mulf %110, %114 : vector<2x8x8xf32>
    %116 = arith.truncf %115 : vector<2x8x8xf32> to vector<2x8x8xbf16>
    "tpu.trace_start"() <{level = 10 : i32, message = "bqk,bkd->bqd"}> : () -> ()
    %cst_60 = arith.constant dense<0.000000e+00> : vector<2x8x32xf32>
    %117 = tpu.matmul %116, %101, %cst_60 {dimension_numbers = #tpu.dot_dimension_numbers<[2], [1], [1], [2], [0, 0, 0, 1, 1, 2], [0], [0]>} : vector<2x8x8xbf16>, vector<2x8x32xbf16>, vector<2x8x32xf32> -> vector<2x8x32xf32>
    "tpu.trace_stop"() : () -> ()
    %118 = vector.shape_cast %117 : vector<2x8x32xf32> to vector<16x32xf32>
    %119 = arith.truncf %118 : vector<16x32xf32> to vector<16x32xbf16>
    %c2_61 = arith.constant 2 : index
    %c0_62 = arith.constant 0 : index
    %c0_63 = arith.constant 0 : index
    %120 = vector.load %arg5[%c2_61, %c0_62, %c0_63] : memref<8x32x32xbf16, #tpu.memory_space<vmem>>, vector<1x32x32xbf16>
    %121 = vector.shape_cast %120 : vector<1x32x32xbf16> to vector<32x32xbf16>
    %cst_64 = arith.constant dense<0.000000e+00> : vector<16x32xf32>
    %122 = tpu.matmul %119, %121, %cst_64 {dimension_numbers = #tpu.dot_dimension_numbers<[1], [0], [0], [1], [0, 0, 1, 1], [], []>} : vector<16x32xbf16>, vector<32x32xbf16>, vector<16x32xf32> -> vector<16x32xf32>
    %123 = arith.addf %86, %122 : vector<16x32xf32>
    %c3 = arith.constant 3 : index
    %c0_65 = arith.constant 0 : index
    %c0_66 = arith.constant 0 : index
    %124 = vector.load %arg2[%c3, %c0_65, %c0_66] : memref<8x32x32xbf16, #tpu.memory_space<vmem>>, vector<1x32x32xbf16>
    %125 = vector.shape_cast %124 : vector<1x32x32xbf16> to vector<32x32xbf16>
    %cst_67 = arith.constant dense<0.000000e+00> : vector<16x32xf32>
    %126 = tpu.matmul %2, %125, %cst_67 {dimension_numbers = #tpu.dot_dimension_numbers<[1], [0], [0], [1], [0, 0, 1, 1], [], []>} : vector<16x32xbf16>, vector<32x32xbf16>, vector<16x32xf32> -> vector<16x32xf32>
    %c3_68 = arith.constant 3 : index
    %c0_69 = arith.constant 0 : index
    %c0_70 = arith.constant 0 : index
    %127 = vector.load %arg3[%c3_68, %c0_69, %c0_70] : memref<8x32x32xbf16, #tpu.memory_space<vmem>>, vector<1x32x32xbf16>
    %128 = vector.shape_cast %127 : vector<1x32x32xbf16> to vector<32x32xbf16>
    %cst_71 = arith.constant dense<0.000000e+00> : vector<16x32xf32>
    %129 = tpu.matmul %2, %128, %cst_71 {dimension_numbers = #tpu.dot_dimension_numbers<[1], [0], [0], [1], [0, 0, 1, 1], [], []>} : vector<16x32xbf16>, vector<32x32xbf16>, vector<16x32xf32> -> vector<16x32xf32>
    %c3_72 = arith.constant 3 : index
    %c0_73 = arith.constant 0 : index
    %c0_74 = arith.constant 0 : index
    %130 = vector.load %arg4[%c3_72, %c0_73, %c0_74] : memref<8x32x32xbf16, #tpu.memory_space<vmem>>, vector<1x32x32xbf16>
    %131 = vector.shape_cast %130 : vector<1x32x32xbf16> to vector<32x32xbf16>
    %cst_75 = arith.constant dense<0.000000e+00> : vector<16x32xf32>
    %132 = tpu.matmul %2, %131, %cst_75 {dimension_numbers = #tpu.dot_dimension_numbers<[1], [0], [0], [1], [0, 0, 1, 1], [], []>} : vector<16x32xbf16>, vector<32x32xbf16>, vector<16x32xf32> -> vector<16x32xf32>
    %133 = vector.shape_cast %126 : vector<16x32xf32> to vector<2x8x32xf32>
    %134 = arith.truncf %133 : vector<2x8x32xf32> to vector<2x8x32xbf16>
    %135 = vector.shape_cast %129 : vector<16x32xf32> to vector<2x8x32xf32>
    %136 = arith.truncf %135 : vector<2x8x32xf32> to vector<2x8x32xbf16>
    %137 = vector.shape_cast %132 : vector<16x32xf32> to vector<2x8x32xf32>
    %138 = arith.truncf %137 : vector<2x8x32xf32> to vector<2x8x32xbf16>
    "tpu.trace_start"() <{level = 10 : i32, message = "bqd,bkd->bqk"}> : () -> ()
    %cst_76 = arith.constant dense<0.000000e+00> : vector<2x8x8xf32>
    %139 = tpu.matmul %134, %136, %cst_76 {dimension_numbers = #tpu.dot_dimension_numbers<[2], [2], [1], [1], [0, 0, 0, 1, 1, 1], [0], [0]>} : vector<2x8x32xbf16>, vector<2x8x32xbf16>, vector<2x8x8xf32> -> vector<2x8x8xf32>
    "tpu.trace_stop"() : () -> ()
    %cst_77 = arith.constant 0.176776692 : f32
    %140 = vector.broadcast %cst_77 : f32 to vector<2x8x8xf32>
    %141 = arith.mulf %139, %140 : vector<2x8x8xf32>
    %142 = arith.addf %141, %11 : vector<2x8x8xf32>
    %cst_78 = arith.constant dense<0xFF800000> : vector<2x8xf32>
    %143 = vector.multi_reduction <maximumf>, %142, %cst_78 [2] : vector<2x8x8xf32> to vector<2x8xf32>
    %144 = vector.shape_cast %143 : vector<2x8xf32> to vector<2x8x1xf32>
    %145 = vector.broadcast %144 : vector<2x8x1xf32> to vector<2x8x8xf32>
    %146 = arith.subf %142, %145 : vector<2x8x8xf32>
    %147 = math.exp %146 : vector<2x8x8xf32>
    %cst_79 = arith.constant dense<0.000000e+00> : vector<2x8xf32>
    %148 = vector.multi_reduction <add>, %147, %cst_79 [2] : vector<2x8x8xf32> to vector<2x8xf32>
    %149 = vector.shape_cast %148 : vector<2x8xf32> to vector<2x8x1xf32>
    %150 = tpu.reciprocal %149 {approx = true} : vector<2x8x1xf32> -> vector<2x8x1xf32>
    %151 = vector.broadcast %150 : vector<2x8x1xf32> to vector<2x8x8xf32>
    %152 = arith.mulf %147, %151 : vector<2x8x8xf32>
    %153 = arith.truncf %152 : vector<2x8x8xf32> to vector<2x8x8xbf16>
    "tpu.trace_start"() <{level = 10 : i32, message = "bqk,bkd->bqd"}> : () -> ()
    %cst_80 = arith.constant dense<0.000000e+00> : vector<2x8x32xf32>
    %154 = tpu.matmul %153, %138, %cst_80 {dimension_numbers = #tpu.dot_dimension_numbers<[2], [1], [1], [2], [0, 0, 0, 1, 1, 2], [0], [0]>} : vector<2x8x8xbf16>, vector<2x8x32xbf16>, vector<2x8x32xf32> -> vector<2x8x32xf32>
    "tpu.trace_stop"() : () -> ()
    %155 = vector.shape_cast %154 : vector<2x8x32xf32> to vector<16x32xf32>
    %156 = arith.truncf %155 : vector<16x32xf32> to vector<16x32xbf16>
    %c3_81 = arith.constant 3 : index
    %c0_82 = arith.constant 0 : index
    %c0_83 = arith.constant 0 : index
    %157 = vector.load %arg5[%c3_81, %c0_82, %c0_83] : memref<8x32x32xbf16, #tpu.memory_space<vmem>>, vector<1x32x32xbf16>
    %158 = vector.shape_cast %157 : vector<1x32x32xbf16> to vector<32x32xbf16>
    %cst_84 = arith.constant dense<0.000000e+00> : vector<16x32xf32>
    %159 = tpu.matmul %156, %158, %cst_84 {dimension_numbers = #tpu.dot_dimension_numbers<[1], [0], [0], [1], [0, 0, 1, 1], [], []>} : vector<16x32xbf16>, vector<32x32xbf16>, vector<16x32xf32> -> vector<16x32xf32>
    %160 = arith.addf %123, %159 : vector<16x32xf32>
    %c4 = arith.constant 4 : index
    %c0_85 = arith.constant 0 : index
    %c0_86 = arith.constant 0 : index
    %161 = vector.load %arg2[%c4, %c0_85, %c0_86] : memref<8x32x32xbf16, #tpu.memory_space<vmem>>, vector<1x32x32xbf16>
    %162 = vector.shape_cast %161 : vector<1x32x32xbf16> to vector<32x32xbf16>
    %cst_87 = arith.constant dense<0.000000e+00> : vector<16x32xf32>
    %163 = tpu.matmul %2, %162, %cst_87 {dimension_numbers = #tpu.dot_dimension_numbers<[1], [0], [0], [1], [0, 0, 1, 1], [], []>} : vector<16x32xbf16>, vector<32x32xbf16>, vector<16x32xf32> -> vector<16x32xf32>
    %c4_88 = arith.constant 4 : index
    %c0_89 = arith.constant 0 : index
    %c0_90 = arith.constant 0 : index
    %164 = vector.load %arg3[%c4_88, %c0_89, %c0_90] : memref<8x32x32xbf16, #tpu.memory_space<vmem>>, vector<1x32x32xbf16>
    %165 = vector.shape_cast %164 : vector<1x32x32xbf16> to vector<32x32xbf16>
    %cst_91 = arith.constant dense<0.000000e+00> : vector<16x32xf32>
    %166 = tpu.matmul %2, %165, %cst_91 {dimension_numbers = #tpu.dot_dimension_numbers<[1], [0], [0], [1], [0, 0, 1, 1], [], []>} : vector<16x32xbf16>, vector<32x32xbf16>, vector<16x32xf32> -> vector<16x32xf32>
    %c4_92 = arith.constant 4 : index
    %c0_93 = arith.constant 0 : index
    %c0_94 = arith.constant 0 : index
    %167 = vector.load %arg4[%c4_92, %c0_93, %c0_94] : memref<8x32x32xbf16, #tpu.memory_space<vmem>>, vector<1x32x32xbf16>
    %168 = vector.shape_cast %167 : vector<1x32x32xbf16> to vector<32x32xbf16>
    %cst_95 = arith.constant dense<0.000000e+00> : vector<16x32xf32>
    %169 = tpu.matmul %2, %168, %cst_95 {dimension_numbers = #tpu.dot_dimension_numbers<[1], [0], [0], [1], [0, 0, 1, 1], [], []>} : vector<16x32xbf16>, vector<32x32xbf16>, vector<16x32xf32> -> vector<16x32xf32>
    %170 = vector.shape_cast %163 : vector<16x32xf32> to vector<2x8x32xf32>
    %171 = arith.truncf %170 : vector<2x8x32xf32> to vector<2x8x32xbf16>
    %172 = vector.shape_cast %166 : vector<16x32xf32> to vector<2x8x32xf32>
    %173 = arith.truncf %172 : vector<2x8x32xf32> to vector<2x8x32xbf16>
    %174 = vector.shape_cast %169 : vector<16x32xf32> to vector<2x8x32xf32>
    %175 = arith.truncf %174 : vector<2x8x32xf32> to vector<2x8x32xbf16>
    "tpu.trace_start"() <{level = 10 : i32, message = "bqd,bkd->bqk"}> : () -> ()
    %cst_96 = arith.constant dense<0.000000e+00> : vector<2x8x8xf32>
    %176 = tpu.matmul %171, %173, %cst_96 {dimension_numbers = #tpu.dot_dimension_numbers<[2], [2], [1], [1], [0, 0, 0, 1, 1, 1], [0], [0]>} : vector<2x8x32xbf16>, vector<2x8x32xbf16>, vector<2x8x8xf32> -> vector<2x8x8xf32>
    "tpu.trace_stop"() : () -> ()
    %cst_97 = arith.constant 0.176776692 : f32
    %177 = vector.broadcast %cst_97 : f32 to vector<2x8x8xf32>
    %178 = arith.mulf %176, %177 : vector<2x8x8xf32>
    %179 = arith.addf %178, %11 : vector<2x8x8xf32>
    %cst_98 = arith.constant dense<0xFF800000> : vector<2x8xf32>
    %180 = vector.multi_reduction <maximumf>, %179, %cst_98 [2] : vector<2x8x8xf32> to vector<2x8xf32>
    %181 = vector.shape_cast %180 : vector<2x8xf32> to vector<2x8x1xf32>
    %182 = vector.broadcast %181 : vector<2x8x1xf32> to vector<2x8x8xf32>
    %183 = arith.subf %179, %182 : vector<2x8x8xf32>
    %184 = math.exp %183 : vector<2x8x8xf32>
    %cst_99 = arith.constant dense<0.000000e+00> : vector<2x8xf32>
    %185 = vector.multi_reduction <add>, %184, %cst_99 [2] : vector<2x8x8xf32> to vector<2x8xf32>
    %186 = vector.shape_cast %185 : vector<2x8xf32> to vector<2x8x1xf32>
    %187 = tpu.reciprocal %186 {approx = true} : vector<2x8x1xf32> -> vector<2x8x1xf32>
    %188 = vector.broadcast %187 : vector<2x8x1xf32> to vector<2x8x8xf32>
    %189 = arith.mulf %184, %188 : vector<2x8x8xf32>
    %190 = arith.truncf %189 : vector<2x8x8xf32> to vector<2x8x8xbf16>
    "tpu.trace_start"() <{level = 10 : i32, message = "bqk,bkd->bqd"}> : () -> ()
    %cst_100 = arith.constant dense<0.000000e+00> : vector<2x8x32xf32>
    %191 = tpu.matmul %190, %175, %cst_100 {dimension_numbers = #tpu.dot_dimension_numbers<[2], [1], [1], [2], [0, 0, 0, 1, 1, 2], [0], [0]>} : vector<2x8x8xbf16>, vector<2x8x32xbf16>, vector<2x8x32xf32> -> vector<2x8x32xf32>
    "tpu.trace_stop"() : () -> ()
    %192 = vector.shape_cast %191 : vector<2x8x32xf32> to vector<16x32xf32>
    %193 = arith.truncf %192 : vector<16x32xf32> to vector<16x32xbf16>
    %c4_101 = arith.constant 4 : index
    %c0_102 = arith.constant 0 : index
    %c0_103 = arith.constant 0 : index
    %194 = vector.load %arg5[%c4_101, %c0_102, %c0_103] : memref<8x32x32xbf16, #tpu.memory_space<vmem>>, vector<1x32x32xbf16>
    %195 = vector.shape_cast %194 : vector<1x32x32xbf16> to vector<32x32xbf16>
    %cst_104 = arith.constant dense<0.000000e+00> : vector<16x32xf32>
    %196 = tpu.matmul %193, %195, %cst_104 {dimension_numbers = #tpu.dot_dimension_numbers<[1], [0], [0], [1], [0, 0, 1, 1], [], []>} : vector<16x32xbf16>, vector<32x32xbf16>, vector<16x32xf32> -> vector<16x32xf32>
    %197 = arith.addf %160, %196 : vector<16x32xf32>
    %c5 = arith.constant 5 : index
    %c0_105 = arith.constant 0 : index
    %c0_106 = arith.constant 0 : index
    %198 = vector.load %arg2[%c5, %c0_105, %c0_106] : memref<8x32x32xbf16, #tpu.memory_space<vmem>>, vector<1x32x32xbf16>
    %199 = vector.shape_cast %198 : vector<1x32x32xbf16> to vector<32x32xbf16>
    %cst_107 = arith.constant dense<0.000000e+00> : vector<16x32xf32>
    %200 = tpu.matmul %2, %199, %cst_107 {dimension_numbers = #tpu.dot_dimension_numbers<[1], [0], [0], [1], [0, 0, 1, 1], [], []>} : vector<16x32xbf16>, vector<32x32xbf16>, vector<16x32xf32> -> vector<16x32xf32>
    %c5_108 = arith.constant 5 : index
    %c0_109 = arith.constant 0 : index
    %c0_110 = arith.constant 0 : index
    %201 = vector.load %arg3[%c5_108, %c0_109, %c0_110] : memref<8x32x32xbf16, #tpu.memory_space<vmem>>, vector<1x32x32xbf16>
    %202 = vector.shape_cast %201 : vector<1x32x32xbf16> to vector<32x32xbf16>
    %cst_111 = arith.constant dense<0.000000e+00> : vector<16x32xf32>
    %203 = tpu.matmul %2, %202, %cst_111 {dimension_numbers = #tpu.dot_dimension_numbers<[1], [0], [0], [1], [0, 0, 1, 1], [], []>} : vector<16x32xbf16>, vector<32x32xbf16>, vector<16x32xf32> -> vector<16x32xf32>
    %c5_112 = arith.constant 5 : index
    %c0_113 = arith.constant 0 : index
    %c0_114 = arith.constant 0 : index
    %204 = vector.load %arg4[%c5_112, %c0_113, %c0_114] : memref<8x32x32xbf16, #tpu.memory_space<vmem>>, vector<1x32x32xbf16>
    %205 = vector.shape_cast %204 : vector<1x32x32xbf16> to vector<32x32xbf16>
    %cst_115 = arith.constant dense<0.000000e+00> : vector<16x32xf32>
    %206 = tpu.matmul %2, %205, %cst_115 {dimension_numbers = #tpu.dot_dimension_numbers<[1], [0], [0], [1], [0, 0, 1, 1], [], []>} : vector<16x32xbf16>, vector<32x32xbf16>, vector<16x32xf32> -> vector<16x32xf32>
    %207 = vector.shape_cast %200 : vector<16x32xf32> to vector<2x8x32xf32>
    %208 = arith.truncf %207 : vector<2x8x32xf32> to vector<2x8x32xbf16>
    %209 = vector.shape_cast %203 : vector<16x32xf32> to vector<2x8x32xf32>
    %210 = arith.truncf %209 : vector<2x8x32xf32> to vector<2x8x32xbf16>
    %211 = vector.shape_cast %206 : vector<16x32xf32> to vector<2x8x32xf32>
    %212 = arith.truncf %211 : vector<2x8x32xf32> to vector<2x8x32xbf16>
    "tpu.trace_start"() <{level = 10 : i32, message = "bqd,bkd->bqk"}> : () -> ()
    %cst_116 = arith.constant dense<0.000000e+00> : vector<2x8x8xf32>
    %213 = tpu.matmul %208, %210, %cst_116 {dimension_numbers = #tpu.dot_dimension_numbers<[2], [2], [1], [1], [0, 0, 0, 1, 1, 1], [0], [0]>} : vector<2x8x32xbf16>, vector<2x8x32xbf16>, vector<2x8x8xf32> -> vector<2x8x8xf32>
    "tpu.trace_stop"() : () -> ()
    %cst_117 = arith.constant 0.176776692 : f32
    %214 = vector.broadcast %cst_117 : f32 to vector<2x8x8xf32>
    %215 = arith.mulf %213, %214 : vector<2x8x8xf32>
    %216 = arith.addf %215, %11 : vector<2x8x8xf32>
    %cst_118 = arith.constant dense<0xFF800000> : vector<2x8xf32>
    %217 = vector.multi_reduction <maximumf>, %216, %cst_118 [2] : vector<2x8x8xf32> to vector<2x8xf32>
    %218 = vector.shape_cast %217 : vector<2x8xf32> to vector<2x8x1xf32>
    %219 = vector.broadcast %218 : vector<2x8x1xf32> to vector<2x8x8xf32>
    %220 = arith.subf %216, %219 : vector<2x8x8xf32>
    %221 = math.exp %220 : vector<2x8x8xf32>
    %cst_119 = arith.constant dense<0.000000e+00> : vector<2x8xf32>
    %222 = vector.multi_reduction <add>, %221, %cst_119 [2] : vector<2x8x8xf32> to vector<2x8xf32>
    %223 = vector.shape_cast %222 : vector<2x8xf32> to vector<2x8x1xf32>
    %224 = tpu.reciprocal %223 {approx = true} : vector<2x8x1xf32> -> vector<2x8x1xf32>
    %225 = vector.broadcast %224 : vector<2x8x1xf32> to vector<2x8x8xf32>
    %226 = arith.mulf %221, %225 : vector<2x8x8xf32>
    %227 = arith.truncf %226 : vector<2x8x8xf32> to vector<2x8x8xbf16>
    "tpu.trace_start"() <{level = 10 : i32, message = "bqk,bkd->bqd"}> : () -> ()
    %cst_120 = arith.constant dense<0.000000e+00> : vector<2x8x32xf32>
    %228 = tpu.matmul %227, %212, %cst_120 {dimension_numbers = #tpu.dot_dimension_numbers<[2], [1], [1], [2], [0, 0, 0, 1, 1, 2], [0], [0]>} : vector<2x8x8xbf16>, vector<2x8x32xbf16>, vector<2x8x32xf32> -> vector<2x8x32xf32>
    "tpu.trace_stop"() : () -> ()
    %229 = vector.shape_cast %228 : vector<2x8x32xf32> to vector<16x32xf32>
    %230 = arith.truncf %229 : vector<16x32xf32> to vector<16x32xbf16>
    %c5_121 = arith.constant 5 : index
    %c0_122 = arith.constant 0 : index
    %c0_123 = arith.constant 0 : index
    %231 = vector.load %arg5[%c5_121, %c0_122, %c0_123] : memref<8x32x32xbf16, #tpu.memory_space<vmem>>, vector<1x32x32xbf16>
    %232 = vector.shape_cast %231 : vector<1x32x32xbf16> to vector<32x32xbf16>
    %cst_124 = arith.constant dense<0.000000e+00> : vector<16x32xf32>
    %233 = tpu.matmul %230, %232, %cst_124 {dimension_numbers = #tpu.dot_dimension_numbers<[1], [0], [0], [1], [0, 0, 1, 1], [], []>} : vector<16x32xbf16>, vector<32x32xbf16>, vector<16x32xf32> -> vector<16x32xf32>
    %234 = arith.addf %197, %233 : vector<16x32xf32>
    %c6 = arith.constant 6 : index
    %c0_125 = arith.constant 0 : index
    %c0_126 = arith.constant 0 : index
    %235 = vector.load %arg2[%c6, %c0_125, %c0_126] : memref<8x32x32xbf16, #tpu.memory_space<vmem>>, vector<1x32x32xbf16>
    %236 = vector.shape_cast %235 : vector<1x32x32xbf16> to vector<32x32xbf16>
    %cst_127 = arith.constant dense<0.000000e+00> : vector<16x32xf32>
    %237 = tpu.matmul %2, %236, %cst_127 {dimension_numbers = #tpu.dot_dimension_numbers<[1], [0], [0], [1], [0, 0, 1, 1], [], []>} : vector<16x32xbf16>, vector<32x32xbf16>, vector<16x32xf32> -> vector<16x32xf32>
    %c6_128 = arith.constant 6 : index
    %c0_129 = arith.constant 0 : index
    %c0_130 = arith.constant 0 : index
    %238 = vector.load %arg3[%c6_128, %c0_129, %c0_130] : memref<8x32x32xbf16, #tpu.memory_space<vmem>>, vector<1x32x32xbf16>
    %239 = vector.shape_cast %238 : vector<1x32x32xbf16> to vector<32x32xbf16>
    %cst_131 = arith.constant dense<0.000000e+00> : vector<16x32xf32>
    %240 = tpu.matmul %2, %239, %cst_131 {dimension_numbers = #tpu.dot_dimension_numbers<[1], [0], [0], [1], [0, 0, 1, 1], [], []>} : vector<16x32xbf16>, vector<32x32xbf16>, vector<16x32xf32> -> vector<16x32xf32>
    %c6_132 = arith.constant 6 : index
    %c0_133 = arith.constant 0 : index
    %c0_134 = arith.constant 0 : index
    %241 = vector.load %arg4[%c6_132, %c0_133, %c0_134] : memref<8x32x32xbf16, #tpu.memory_space<vmem>>, vector<1x32x32xbf16>
    %242 = vector.shape_cast %241 : vector<1x32x32xbf16> to vector<32x32xbf16>
    %cst_135 = arith.constant dense<0.000000e+00> : vector<16x32xf32>
    %243 = tpu.matmul %2, %242, %cst_135 {dimension_numbers = #tpu.dot_dimension_numbers<[1], [0], [0], [1], [0, 0, 1, 1], [], []>} : vector<16x32xbf16>, vector<32x32xbf16>, vector<16x32xf32> -> vector<16x32xf32>
    %244 = vector.shape_cast %237 : vector<16x32xf32> to vector<2x8x32xf32>
    %245 = arith.truncf %244 : vector<2x8x32xf32> to vector<2x8x32xbf16>
    %246 = vector.shape_cast %240 : vector<16x32xf32> to vector<2x8x32xf32>
    %247 = arith.truncf %246 : vector<2x8x32xf32> to vector<2x8x32xbf16>
    %248 = vector.shape_cast %243 : vector<16x32xf32> to vector<2x8x32xf32>
    %249 = arith.truncf %248 : vector<2x8x32xf32> to vector<2x8x32xbf16>
    "tpu.trace_start"() <{level = 10 : i32, message = "bqd,bkd->bqk"}> : () -> ()
    %cst_136 = arith.constant dense<0.000000e+00> : vector<2x8x8xf32>
    %250 = tpu.matmul %245, %247, %cst_136 {dimension_numbers = #tpu.dot_dimension_numbers<[2], [2], [1], [1], [0, 0, 0, 1, 1, 1], [0], [0]>} : vector<2x8x32xbf16>, vector<2x8x32xbf16>, vector<2x8x8xf32> -> vector<2x8x8xf32>
    "tpu.trace_stop"() : () -> ()
    %cst_137 = arith.constant 0.176776692 : f32
    %251 = vector.broadcast %cst_137 : f32 to vector<2x8x8xf32>
    %252 = arith.mulf %250, %251 : vector<2x8x8xf32>
    %253 = arith.addf %252, %11 : vector<2x8x8xf32>
    %cst_138 = arith.constant dense<0xFF800000> : vector<2x8xf32>
    %254 = vector.multi_reduction <maximumf>, %253, %cst_138 [2] : vector<2x8x8xf32> to vector<2x8xf32>
    %255 = vector.shape_cast %254 : vector<2x8xf32> to vector<2x8x1xf32>
    %256 = vector.broadcast %255 : vector<2x8x1xf32> to vector<2x8x8xf32>
    %257 = arith.subf %253, %256 : vector<2x8x8xf32>
    %258 = math.exp %257 : vector<2x8x8xf32>
    %cst_139 = arith.constant dense<0.000000e+00> : vector<2x8xf32>
    %259 = vector.multi_reduction <add>, %258, %cst_139 [2] : vector<2x8x8xf32> to vector<2x8xf32>
    %260 = vector.shape_cast %259 : vector<2x8xf32> to vector<2x8x1xf32>
    %261 = tpu.reciprocal %260 {approx = true} : vector<2x8x1xf32> -> vector<2x8x1xf32>
    %262 = vector.broadcast %261 : vector<2x8x1xf32> to vector<2x8x8xf32>
    %263 = arith.mulf %258, %262 : vector<2x8x8xf32>
    %264 = arith.truncf %263 : vector<2x8x8xf32> to vector<2x8x8xbf16>
    "tpu.trace_start"() <{level = 10 : i32, message = "bqk,bkd->bqd"}> : () -> ()
    %cst_140 = arith.constant dense<0.000000e+00> : vector<2x8x32xf32>
    %265 = tpu.matmul %264, %249, %cst_140 {dimension_numbers = #tpu.dot_dimension_numbers<[2], [1], [1], [2], [0, 0, 0, 1, 1, 2], [0], [0]>} : vector<2x8x8xbf16>, vector<2x8x32xbf16>, vector<2x8x32xf32> -> vector<2x8x32xf32>
    "tpu.trace_stop"() : () -> ()
    %266 = vector.shape_cast %265 : vector<2x8x32xf32> to vector<16x32xf32>
    %267 = arith.truncf %266 : vector<16x32xf32> to vector<16x32xbf16>
    %c6_141 = arith.constant 6 : index
    %c0_142 = arith.constant 0 : index
    %c0_143 = arith.constant 0 : index
    %268 = vector.load %arg5[%c6_141, %c0_142, %c0_143] : memref<8x32x32xbf16, #tpu.memory_space<vmem>>, vector<1x32x32xbf16>
    %269 = vector.shape_cast %268 : vector<1x32x32xbf16> to vector<32x32xbf16>
    %cst_144 = arith.constant dense<0.000000e+00> : vector<16x32xf32>
    %270 = tpu.matmul %267, %269, %cst_144 {dimension_numbers = #tpu.dot_dimension_numbers<[1], [0], [0], [1], [0, 0, 1, 1], [], []>} : vector<16x32xbf16>, vector<32x32xbf16>, vector<16x32xf32> -> vector<16x32xf32>
    %271 = arith.addf %234, %270 : vector<16x32xf32>
    %c7 = arith.constant 7 : index
    %c0_145 = arith.constant 0 : index
    %c0_146 = arith.constant 0 : index
    %272 = vector.load %arg2[%c7, %c0_145, %c0_146] : memref<8x32x32xbf16, #tpu.memory_space<vmem>>, vector<1x32x32xbf16>
    %273 = vector.shape_cast %272 : vector<1x32x32xbf16> to vector<32x32xbf16>
    %cst_147 = arith.constant dense<0.000000e+00> : vector<16x32xf32>
    %274 = tpu.matmul %2, %273, %cst_147 {dimension_numbers = #tpu.dot_dimension_numbers<[1], [0], [0], [1], [0, 0, 1, 1], [], []>} : vector<16x32xbf16>, vector<32x32xbf16>, vector<16x32xf32> -> vector<16x32xf32>
    %c7_148 = arith.constant 7 : index
    %c0_149 = arith.constant 0 : index
    %c0_150 = arith.constant 0 : index
    %275 = vector.load %arg3[%c7_148, %c0_149, %c0_150] : memref<8x32x32xbf16, #tpu.memory_space<vmem>>, vector<1x32x32xbf16>
    %276 = vector.shape_cast %275 : vector<1x32x32xbf16> to vector<32x32xbf16>
    %cst_151 = arith.constant dense<0.000000e+00> : vector<16x32xf32>
    %277 = tpu.matmul %2, %276, %cst_151 {dimension_numbers = #tpu.dot_dimension_numbers<[1], [0], [0], [1], [0, 0, 1, 1], [], []>} : vector<16x32xbf16>, vector<32x32xbf16>, vector<16x32xf32> -> vector<16x32xf32>
    %c7_152 = arith.constant 7 : index
    %c0_153 = arith.constant 0 : index
    %c0_154 = arith.constant 0 : index
    %278 = vector.load %arg4[%c7_152, %c0_153, %c0_154] : memref<8x32x32xbf16, #tpu.memory_space<vmem>>, vector<1x32x32xbf16>
    %279 = vector.shape_cast %278 : vector<1x32x32xbf16> to vector<32x32xbf16>
    %cst_155 = arith.constant dense<0.000000e+00> : vector<16x32xf32>
    %280 = tpu.matmul %2, %279, %cst_155 {dimension_numbers = #tpu.dot_dimension_numbers<[1], [0], [0], [1], [0, 0, 1, 1], [], []>} : vector<16x32xbf16>, vector<32x32xbf16>, vector<16x32xf32> -> vector<16x32xf32>
    %281 = vector.shape_cast %274 : vector<16x32xf32> to vector<2x8x32xf32>
    %282 = arith.truncf %281 : vector<2x8x32xf32> to vector<2x8x32xbf16>
    %283 = vector.shape_cast %277 : vector<16x32xf32> to vector<2x8x32xf32>
    %284 = arith.truncf %283 : vector<2x8x32xf32> to vector<2x8x32xbf16>
    %285 = vector.shape_cast %280 : vector<16x32xf32> to vector<2x8x32xf32>
    %286 = arith.truncf %285 : vector<2x8x32xf32> to vector<2x8x32xbf16>
    "tpu.trace_start"() <{level = 10 : i32, message = "bqd,bkd->bqk"}> : () -> ()
    %cst_156 = arith.constant dense<0.000000e+00> : vector<2x8x8xf32>
    %287 = tpu.matmul %282, %284, %cst_156 {dimension_numbers = #tpu.dot_dimension_numbers<[2], [2], [1], [1], [0, 0, 0, 1, 1, 1], [0], [0]>} : vector<2x8x32xbf16>, vector<2x8x32xbf16>, vector<2x8x8xf32> -> vector<2x8x8xf32>
    "tpu.trace_stop"() : () -> ()
    %cst_157 = arith.constant 0.176776692 : f32
    %288 = vector.broadcast %cst_157 : f32 to vector<2x8x8xf32>
    %289 = arith.mulf %287, %288 : vector<2x8x8xf32>
    %290 = arith.addf %289, %11 : vector<2x8x8xf32>
    %cst_158 = arith.constant dense<0xFF800000> : vector<2x8xf32>
    %291 = vector.multi_reduction <maximumf>, %290, %cst_158 [2] : vector<2x8x8xf32> to vector<2x8xf32>
    %292 = vector.shape_cast %291 : vector<2x8xf32> to vector<2x8x1xf32>
    %293 = vector.broadcast %292 : vector<2x8x1xf32> to vector<2x8x8xf32>
    %294 = arith.subf %290, %293 : vector<2x8x8xf32>
    %295 = math.exp %294 : vector<2x8x8xf32>
    %cst_159 = arith.constant dense<0.000000e+00> : vector<2x8xf32>
    %296 = vector.multi_reduction <add>, %295, %cst_159 [2] : vector<2x8x8xf32> to vector<2x8xf32>
    %297 = vector.shape_cast %296 : vector<2x8xf32> to vector<2x8x1xf32>
    %298 = tpu.reciprocal %297 {approx = true} : vector<2x8x1xf32> -> vector<2x8x1xf32>
    %299 = vector.broadcast %298 : vector<2x8x1xf32> to vector<2x8x8xf32>
    %300 = arith.mulf %295, %299 : vector<2x8x8xf32>
    %301 = arith.truncf %300 : vector<2x8x8xf32> to vector<2x8x8xbf16>
    "tpu.trace_start"() <{level = 10 : i32, message = "bqk,bkd->bqd"}> : () -> ()
    %cst_160 = arith.constant dense<0.000000e+00> : vector<2x8x32xf32>
    %302 = tpu.matmul %301, %286, %cst_160 {dimension_numbers = #tpu.dot_dimension_numbers<[2], [1], [1], [2], [0, 0, 0, 1, 1, 2], [0], [0]>} : vector<2x8x8xbf16>, vector<2x8x32xbf16>, vector<2x8x32xf32> -> vector<2x8x32xf32>
    "tpu.trace_stop"() : () -> ()
    %303 = vector.shape_cast %302 : vector<2x8x32xf32> to vector<16x32xf32>
    %304 = arith.truncf %303 : vector<16x32xf32> to vector<16x32xbf16>
    %c7_161 = arith.constant 7 : index
    %c0_162 = arith.constant 0 : index
    %c0_163 = arith.constant 0 : index
    %305 = vector.load %arg5[%c7_161, %c0_162, %c0_163] : memref<8x32x32xbf16, #tpu.memory_space<vmem>>, vector<1x32x32xbf16>
    %306 = vector.shape_cast %305 : vector<1x32x32xbf16> to vector<32x32xbf16>
    %cst_164 = arith.constant dense<0.000000e+00> : vector<16x32xf32>
    %307 = tpu.matmul %304, %306, %cst_164 {dimension_numbers = #tpu.dot_dimension_numbers<[1], [0], [0], [1], [0, 0, 1, 1], [], []>} : vector<16x32xbf16>, vector<32x32xbf16>, vector<16x32xf32> -> vector<16x32xf32>
    %308 = arith.addf %271, %307 : vector<16x32xf32>
    %c0_165 = arith.constant 0 : index
    %c0_166 = arith.constant 0 : index
    %309 = vector.load %arg6[%c0_165, %c0_166] : memref<1x32xf32, #tpu.memory_space<vmem>>, vector<1x32xf32>
    %310 = vector.broadcast %309 : vector<1x32xf32> to vector<16x32xf32>
    %311 = arith.addf %308, %310 : vector<16x32xf32>
    %312 = arith.addf %311, %1 : vector<16x32xf32>
    %c0_167 = arith.constant 0 : index
    %c0_168 = arith.constant 0 : index
    %313 = vector.load %arg7[%c0_167, %c0_168] : memref<1x32xf32, #tpu.memory_space<vmem>>, vector<1x32xf32>
    %c0_169 = arith.constant 0 : index
    %c0_170 = arith.constant 0 : index
    %314 = vector.load %arg8[%c0_169, %c0_170] : memref<1x32xf32, #tpu.memory_space<vmem>>, vector<1x32xf32>
    %cst_171 = arith.constant dense<0.000000e+00> : vector<16xf32>
    %315 = vector.multi_reduction <add>, %312, %cst_171 [1] : vector<16x32xf32> to vector<16xf32>
    %316 = vector.shape_cast %315 : vector<16xf32> to vector<16x1xf32>
    %cst_172 = arith.constant 3.200000e+01 : f32
    %317 = vector.broadcast %cst_172 : f32 to vector<16x1xf32>
    %318 = arith.divf %316, %317 : vector<16x1xf32>
    %319 = vector.broadcast %318 : vector<16x1xf32> to vector<16x32xf32>
    %320 = arith.subf %312, %319 : vector<16x32xf32>
    %321 = arith.mulf %320, %320 : vector<16x32xf32>
    %cst_173 = arith.constant dense<0.000000e+00> : vector<16xf32>
    %322 = vector.multi_reduction <add>, %321, %cst_173 [1] : vector<16x32xf32> to vector<16xf32>
    %323 = vector.shape_cast %322 : vector<16xf32> to vector<16x1xf32>
    %cst_174 = arith.constant 3.200000e+01 : f32
    %324 = vector.broadcast %cst_174 : f32 to vector<16x1xf32>
    %325 = arith.divf %323, %324 : vector<16x1xf32>
    %326 = vector.broadcast %318 : vector<16x1xf32> to vector<16x32xf32>
    %327 = arith.subf %312, %326 : vector<16x32xf32>
    %cst_175 = arith.constant 9.99999974E-6 : f32
    %328 = vector.broadcast %cst_175 : f32 to vector<16x1xf32>
    %329 = arith.addf %325, %328 : vector<16x1xf32>
    %330 = math.rsqrt %329 : vector<16x1xf32>
    %331 = vector.broadcast %330 : vector<16x1xf32> to vector<16x32xf32>
    %332 = arith.mulf %327, %331 : vector<16x32xf32>
    %333 = vector.broadcast %313 : vector<1x32xf32> to vector<16x32xf32>
    %334 = arith.mulf %332, %333 : vector<16x32xf32>
    %335 = vector.broadcast %314 : vector<1x32xf32> to vector<16x32xf32>
    %336 = arith.addf %334, %335 : vector<16x32xf32>
    %337 = arith.truncf %336 : vector<16x32xf32> to vector<16x32xbf16>
    %c0_176 = arith.constant 0 : index
    %c0_177 = arith.constant 0 : index
    %338 = vector.load %arg9[%c0_176, %c0_177] : memref<32x128xbf16, #tpu.memory_space<vmem>>, vector<32x128xbf16>
    %cst_178 = arith.constant dense<0.000000e+00> : vector<16x128xf32>
    %339 = tpu.matmul %337, %338, %cst_178 {dimension_numbers = #tpu.dot_dimension_numbers<[1], [0], [0], [1], [0, 0, 1, 1], [], []>} : vector<16x32xbf16>, vector<32x128xbf16>, vector<16x128xf32> -> vector<16x128xf32>
    %c0_179 = arith.constant 0 : index
    %c0_180 = arith.constant 0 : index
    %340 = vector.load %arg10[%c0_179, %c0_180] : memref<1x128xf32, #tpu.memory_space<vmem>>, vector<1x128xf32>
    %341 = vector.broadcast %340 : vector<1x128xf32> to vector<16x128xf32>
    %342 = arith.addf %339, %341 : vector<16x128xf32>
    %cst_181 = arith.constant 0.000000e+00 : f32
    %343 = vector.broadcast %cst_181 : f32 to vector<16x128xf32>
    %344 = arith.maximumf %342, %343 : vector<16x128xf32>
    %345 = arith.truncf %344 : vector<16x128xf32> to vector<16x128xbf16>
    %c0_182 = arith.constant 0 : index
    %c0_183 = arith.constant 0 : index
    %346 = vector.load %arg11[%c0_182, %c0_183] : memref<128x32xbf16, #tpu.memory_space<vmem>>, vector<128x32xbf16>
    %cst_184 = arith.constant dense<0.000000e+00> : vector<16x32xf32>
    %347 = tpu.matmul %345, %346, %cst_184 {dimension_numbers = #tpu.dot_dimension_numbers<[1], [0], [0], [1], [0, 0, 1, 1], [], []>} : vector<16x128xbf16>, vector<128x32xbf16>, vector<16x32xf32> -> vector<16x32xf32>
    %c0_185 = arith.constant 0 : index
    %c0_186 = arith.constant 0 : index
    %348 = vector.load %arg12[%c0_185, %c0_186] : memref<1x32xf32, #tpu.memory_space<vmem>>, vector<1x32xf32>
    %349 = vector.broadcast %348 : vector<1x32xf32> to vector<16x32xf32>
    %350 = arith.addf %347, %349 : vector<16x32xf32>
    %351 = arith.addf %350, %336 : vector<16x32xf32>
    %c0_187 = arith.constant 0 : index
    %c0_188 = arith.constant 0 : index
    %352 = vector.load %arg13[%c0_187, %c0_188] : memref<1x32xf32, #tpu.memory_space<vmem>>, vector<1x32xf32>
    %c0_189 = arith.constant 0 : index
    %c0_190 = arith.constant 0 : index
    %353 = vector.load %arg14[%c0_189, %c0_190] : memref<1x32xf32, #tpu.memory_space<vmem>>, vector<1x32xf32>
    %cst_191 = arith.constant dense<0.000000e+00> : vector<16xf32>
    %354 = vector.multi_reduction <add>, %351, %cst_191 [1] : vector<16x32xf32> to vector<16xf32>
    %355 = vector.shape_cast %354 : vector<16xf32> to vector<16x1xf32>
    %cst_192 = arith.constant 3.200000e+01 : f32
    %356 = vector.broadcast %cst_192 : f32 to vector<16x1xf32>
    %357 = arith.divf %355, %356 : vector<16x1xf32>
    %358 = vector.broadcast %357 : vector<16x1xf32> to vector<16x32xf32>
    %359 = arith.subf %351, %358 : vector<16x32xf32>
    %360 = arith.mulf %359, %359 : vector<16x32xf32>
    %cst_193 = arith.constant dense<0.000000e+00> : vector<16xf32>
    %361 = vector.multi_reduction <add>, %360, %cst_193 [1] : vector<16x32xf32> to vector<16xf32>
    %362 = vector.shape_cast %361 : vector<16xf32> to vector<16x1xf32>
    %cst_194 = arith.constant 3.200000e+01 : f32
    %363 = vector.broadcast %cst_194 : f32 to vector<16x1xf32>
    %364 = arith.divf %362, %363 : vector<16x1xf32>
    %365 = vector.broadcast %357 : vector<16x1xf32> to vector<16x32xf32>
    %366 = arith.subf %351, %365 : vector<16x32xf32>
    %cst_195 = arith.constant 9.99999974E-6 : f32
    %367 = vector.broadcast %cst_195 : f32 to vector<16x1xf32>
    %368 = arith.addf %364, %367 : vector<16x1xf32>
    %369 = math.rsqrt %368 : vector<16x1xf32>
    %370 = vector.broadcast %369 : vector<16x1xf32> to vector<16x32xf32>
    %371 = arith.mulf %366, %370 : vector<16x32xf32>
    %372 = vector.broadcast %352 : vector<1x32xf32> to vector<16x32xf32>
    %373 = arith.mulf %371, %372 : vector<16x32xf32>
    %374 = vector.broadcast %353 : vector<1x32xf32> to vector<16x32xf32>
    %375 = arith.addf %373, %374 : vector<16x32xf32>
    %376 = vector.shape_cast %375 : vector<16x32xf32> to vector<2x8x32xf32>
    %c0_196 = arith.constant 0 : index
    %c0_197 = arith.constant 0 : index
    %c0_198 = arith.constant 0 : index
    %377 = vector.load %arg15[%c0_196, %c0_197, %c0_198] : memref<2x8x32xf32, #tpu.memory_space<vmem>>, vector<2x8x32xf32>
    tpu.vector_store %arg15[%c0_196, %c0_197, %c0_198], %376 {strides = array<i32>} : memref<2x8x32xf32, #tpu.memory_space<vmem>>, vector<2x8x32xf32>,
    return
  }
  func.func @transform_0(%arg0: i32) -> (i32, i32, i32) {
    %c0_i32 = arith.constant 0 : i32
    %c0_i32_0 = arith.constant 0 : i32
    %c0_i32_1 = arith.constant 0 : i32
    return %arg0, %c0_i32, %c0_i32_0 : i32, i32, i32
  }
  func.func @transform_1(%arg0: i32) -> (i32, i32, i32) {
    %c0_i32 = arith.constant 0 : i32
    %c0_i32_0 = arith.constant 0 : i32
    %c0_i32_1 = arith.constant 0 : i32
    %c0_i32_2 = arith.constant 0 : i32
    return %c0_i32, %c0_i32_0, %c0_i32_1 : i32, i32, i32
  }
  func.func @transform_2(%arg0: i32) -> (i32, i32, i32) {
    %c0_i32 = arith.constant 0 : i32
    %c0_i32_0 = arith.constant 0 : i32
    %c0_i32_1 = arith.constant 0 : i32
    %c0_i32_2 = arith.constant 0 : i32
    return %c0_i32, %c0_i32_0, %c0_i32_1 : i32, i32, i32
  }
  func.func @transform_3(%arg0: i32) -> (i32, i32, i32) {
    %c0_i32 = arith.constant 0 : i32
    %c0_i32_0 = arith.constant 0 : i32
    %c0_i32_1 = arith.constant 0 : i32
    %c0_i32_2 = arith.constant 0 : i32
    return %c0_i32, %c0_i32_0, %c0_i32_1 : i32, i32, i32
  }
  func.func @transform_4(%arg0: i32) -> (i32, i32, i32) {
    %c0_i32 = arith.constant 0 : i32
    %c0_i32_0 = arith.constant 0 : i32
    %c0_i32_1 = arith.constant 0 : i32
    %c0_i32_2 = arith.constant 0 : i32
    return %c0_i32, %c0_i32_0, %c0_i32_1 : i32, i32, i32
  }
  func.func @transform_5(%arg0: i32) -> (i32, i32) {
    %c0_i32 = arith.constant 0 : i32
    %c0_i32_0 = arith.constant 0 : i32
    %c0_i32_1 = arith.constant 0 : i32
    return %c0_i32, %c0_i32_0 : i32, i32
  }
  func.func @transform_6(%arg0: i32) -> (i32, i32) {
    %c0_i32 = arith.constant 0 : i32
    %c0_i32_0 = arith.constant 0 : i32
    %c0_i32_1 = arith.constant 0 : i32
    return %c0_i32, %c0_i32_0 : i32, i32
  }
  func.func @transform_7(%arg0: i32) -> (i32, i32) {
    %c0_i32 = arith.constant 0 : i32
    %c0_i32_0 = arith.constant 0 : i32
    %c0_i32_1 = arith.constant 0 : i32
    return %c0_i32, %c0_i32_0 : i32, i32
  }
  func.func @transform_8(%arg0: i32) -> (i32, i32) {
    %c0_i32 = arith.constant 0 : i32
    %c0_i32_0 = arith.constant 0 : i32
    %c0_i32_1 = arith.constant 0 : i32
    return %c0_i32, %c0_i32_0 : i32, i32
  }
  func.func @transform_9(%arg0: i32) -> (i32, i32) {
    %c0_i32 = arith.constant 0 : i32
    %c0_i32_0 = arith.constant 0 : i32
    %c0_i32_1 = arith.constant 0 : i32
    return %c0_i32, %c0_i32_0 : i32, i32
  }
  func.func @transform_10(%arg0: i32) -> (i32, i32) {
    %c0_i32 = arith.constant 0 : i32
    %c0_i32_0 = arith.constant 0 : i32
    %c0_i32_1 = arith.constant 0 : i32
    return %c0_i32, %c0_i32_0 : i32, i32
  }
  func.func @transform_11(%arg0: i32) -> (i32, i32) {
    %c0_i32 = arith.constant 0 : i32
    %c0_i32_0 = arith.constant 0 : i32
    %c0_i32_1 = arith.constant 0 : i32
    return %c0_i32, %c0_i32_0 : i32, i32
  }
  func.func @transform_12(%arg0: i32) -> (i32, i32) {
    %c0_i32 = arith.constant 0 : i32
    %c0_i32_0 = arith.constant 0 : i32
    %c0_i32_1 = arith.constant 0 : i32
    return %c0_i32, %c0_i32_0 : i32, i32
  }
  func.func @transform_13(%arg0: i32) -> (i32, i32) {
    %c0_i32 = arith.constant 0 : i32
    %c0_i32_0 = arith.constant 0 : i32
    %c0_i32_1 = arith.constant 0 : i32
    return %c0_i32, %c0_i32_0 : i32, i32
  }
  func.func @transform_14(%arg0: i32) -> (i32, i32, i32) {
    %c0_i32 = arith.constant 0 : i32
    %c0_i32_0 = arith.constant 0 : i32
    %c0_i32_1 = arith.constant 0 : i32
    return %arg0, %c0_i32, %c0_i32_0 : i32, i32, i32
  }
}

</mosaic_0001>

<llo_original>
// kernel: tpu_custom_call.1
$region0: #{tpu_custom_call.1}
  #allocation0 [shape = 'u32[]', space=smem, size = 0x4, offset = 0x4, fixed_abs, tag = 'smem constant byte address 0x4 - core index']
  #allocation1 [shape = 'u32[144,128]{1,0:T(1,128)}', space=vmem, size = 0x12000, scoped, tag = 'internal scratch']
  %s0 = inlined_call_operand.vmem [shape: f32[2,8,32], index: 0, kind: input, shape index: {}]
  %s1 = inlined_call_operand.hbm [shape: bf16[8,32,32], index: 1, kind: input, shape index: {}]
  %s2 = inlined_call_operand.hbm [shape: bf16[8,32,32], index: 2, kind: input, shape index: {}]
  %s3 = inlined_call_operand.hbm [shape: bf16[8,32,32], index: 3, kind: input, shape index: {}]
  %s4 = inlined_call_operand.hbm [shape: bf16[8,32,32], index: 4, kind: input, shape index: {}]
  %s5 = inlined_call_operand.vmem [shape: f32[1,32], index: 5, kind: input, shape index: {}]
  %s6 = inlined_call_operand.vmem [shape: f32[1,32], index: 6, kind: input, shape index: {}]
  %s7 = inlined_call_operand.vmem [shape: f32[1,32], index: 7, kind: input, shape index: {}]
  %s8 = inlined_call_operand.vmem [shape: bf16[32,128], index: 8, kind: input, shape index: {}]
  %s9 = inlined_call_operand.vmem [shape: f32[1,128], index: 9, kind: input, shape index: {}]
  %s10 = inlined_call_operand.vmem [shape: bf16[128,32], index: 10, kind: input, shape index: {}]
  %s11 = inlined_call_operand.vmem [shape: f32[1,32], index: 11, kind: input, shape index: {}]
  %s12 = inlined_call_operand.vmem [shape: f32[1,32], index: 12, kind: input, shape index: {}]
  %s13 = inlined_call_operand.vmem [shape: f32[1,32], index: 13, kind: input, shape index: {}]
  %s14 = inlined_call_operand.hbm [shape: f32[2,8,32], index: 14, kind: output, shape index: {}]
  %s15 = sld [smem:[#allocation0]]
  $region82: #{tpu_custom_call.1} parent=0
    _
  %s17 = ssub.s32 1, %s15
  %s18 = scalar_select 0, %s17, %s15
  $region1: #{tpu_custom_call.1} parent=0
    #allocation2 [shape = 'u8[65536]{0}', space=vmem, size = 0x10000, scoped, tag = 'input window, operand 1, single buffered']
    #allocation3 [shape = 's32[1]{0}', space=sflag, size = 0x4, scoped, tag = 'scoped memory for tpu_custom_call.1']
    #allocation4 [shape = 's32[1]{0}', space=sflag, size = 0x4, scoped, tag = 'scoped memory for tpu_custom_call.1']
    #allocation5 [shape = 'u8[65536]{0}', space=vmem, size = 0x10000, scoped, tag = 'input window, operand 2, single buffered']
    #allocation6 [shape = 's32[1]{0}', space=sflag, size = 0x4, scoped, tag = 'scoped memory for tpu_custom_call.1']
    #allocation7 [shape = 'u8[65536]{0}', space=vmem, size = 0x10000, scoped, tag = 'input window, operand 3, single buffered']
    #allocation8 [shape = 'u8[65536]{0}', space=vmem, size = 0x10000, scoped, tag = 'input window, operand 4, single buffered']
    #allocation9 [shape = 's32[1]{0}', space=sflag, size = 0x4, scoped, tag = 'scoped memory for tpu_custom_call.1']
    #allocation10 [shape = 'u8[8192]{0}', space=vmem, size = 0x2000, scoped, tag = 'output window, operand 0, single buffered']
    %19 = vsyncpa [#allocation3], 0
    %20 = vsyncpa [#allocation6], 0
    %21 = vsyncpa [#allocation9], 0
    %22 = vsyncpa [#allocation4], 0
    // Predicated region
    $region2: #{tpu_custom_call.1} parent=1 // pred_check
      _
    $region3: #{tpu_custom_call.1} parent=1 // pred_check_branch
      %24 = sbr.rel (0) target = $region5
    $region4: #{tpu_custom_call.1} parent=1 // pred_region
      _
    $region5: #{tpu_custom_call.1} parent=1 // pred_fallthru
      _
    // Predicated region
    $region6: #{tpu_custom_call.1} parent=1 // pred_check
      _
    $region7: #{tpu_custom_call.1} parent=1 // pred_check_branch
      %26 = sbr.rel (0) target = $region9
    $region8: #{tpu_custom_call.1} parent=1 // pred_region
      %s28 = ssub.s32 2048, 2048
      %29 = vsyncadd [#allocation3], %s28
      %s30 = sshll.u32 [#allocation2], 4
      %s31 = int_to_ptr.vmem [resolvable:$true] %s30
      %36 = dma.hbm_to_vmem [thread:$0]  %s1, 2048, %s31, [#allocation3], 64, 64, 4
    $region9: #{tpu_custom_call.1} parent=1 // pred_fallthru
      _
    // Predicated region
    $region10: #{tpu_custom_call.1} parent=1 // pred_check
      _
    $region11: #{tpu_custom_call.1} parent=1 // pred_check_branch
      %38 = sbr.rel (0) target = $region13
    $region12: #{tpu_custom_call.1} parent=1 // pred_region
      %s40 = ssub.s32 2048, 2048
      %41 = vsyncadd [#allocation6], %s40
      %s42 = sshll.u32 [#allocation5], 4
      %s43 = int_to_ptr.vmem [resolvable:$true] %s42
      %48 = dma.hbm_to_vmem [thread:$0]  %s2, 2048, %s43, [#allocation6], 64, 64, 4
    $region13: #{tpu_custom_call.1} parent=1 // pred_fallthru
      _
    // Predicated region
    $region14: #{tpu_custom_call.1} parent=1 // pred_check
      _
    $region15: #{tpu_custom_call.1} parent=1 // pred_check_branch
      %50 = sbr.rel (0) target = $region17
    $region16: #{tpu_custom_call.1} parent=1 // pred_region
      %s52 = ssub.s32 2048, 2048
      %53 = vsyncadd [#allocation6], %s52
      %s54 = sshll.u32 [#allocation7], 4
      %s55 = int_to_ptr.vmem [resolvable:$true] %s54
      %60 = dma.hbm_to_vmem [thread:$0]  %s3, 2048, %s55, [#allocation6], 64, 64, 4
    $region17: #{tpu_custom_call.1} parent=1 // pred_fallthru
      _
    // Predicated region
    $region18: #{tpu_custom_call.1} parent=1 // pred_check
      _
    $region19: #{tpu_custom_call.1} parent=1 // pred_check_branch
      %62 = sbr.rel (0) target = $region21
    $region20: #{tpu_custom_call.1} parent=1 // pred_region
      %s64 = ssub.s32 2048, 2048
      %65 = vsyncadd [#allocation9], %s64
      %s66 = sshll.u32 [#allocation8], 4
      %s67 = int_to_ptr.vmem [resolvable:$true] %s66
      %72 = dma.hbm_to_vmem [thread:$0]  %s4, 2048, %s67, [#allocation9], 64, 64, 4
    $region21: #{tpu_custom_call.1} parent=1 // pred_fallthru
      _
    // Predicated region
    $region22: #{tpu_custom_call.1} parent=1 // pred_check
      _
    $region23: #{tpu_custom_call.1} parent=1 // pred_check_branch
      %74 = sbr.rel (0) target = $region25
    $region24: #{tpu_custom_call.1} parent=1 // pred_region
      _
    $region25: #{tpu_custom_call.1} parent=1 // pred_fallthru
      _
    // Predicated region
    $region26: #{tpu_custom_call.1} parent=1 // pred_check
      _
    $region27: #{tpu_custom_call.1} parent=1 // pred_check_branch
      %76 = sbr.rel (0) target = $region29
    $region28: #{tpu_custom_call.1} parent=1 // pred_region
      _
    $region29: #{tpu_custom_call.1} parent=1 // pred_fallthru
      _
    // Predicated region
    $region30: #{tpu_custom_call.1} parent=1 // pred_check
      _
    $region31: #{tpu_custom_call.1} parent=1 // pred_check_branch
      %78 = sbr.rel (0) target = $region33
    $region32: #{tpu_custom_call.1} parent=1 // pred_region
      _
    $region33: #{tpu_custom_call.1} parent=1 // pred_fallthru
      _
    // Predicated region
    $region34: #{tpu_custom_call.1} parent=1 // pred_check
      _
    $region35: #{tpu_custom_call.1} parent=1 // pred_check_branch
      %80 = sbr.rel (0) target = $region37
    $region36: #{tpu_custom_call.1} parent=1 // pred_region
      _
    $region37: #{tpu_custom_call.1} parent=1 // pred_fallthru
      _
    // Predicated region
    $region38: #{tpu_custom_call.1} parent=1 // pred_check
      _
    $region39: #{tpu_custom_call.1} parent=1 // pred_check_branch
      %82 = sbr.rel (0) target = $region41
    $region40: #{tpu_custom_call.1} parent=1 // pred_region
      _
    $region41: #{tpu_custom_call.1} parent=1 // pred_fallthru
      _
    // Predicated region
    $region42: #{tpu_custom_call.1} parent=1 // pred_check
      _
    $region43: #{tpu_custom_call.1} parent=1 // pred_check_branch
      %84 = sbr.rel (0) target = $region45
    $region44: #{tpu_custom_call.1} parent=1 // pred_region
      _
    $region45: #{tpu_custom_call.1} parent=1 // pred_fallthru
      _
    // Predicated region
    $region46: #{tpu_custom_call.1} parent=1 // pred_check
      _
    $region47: #{tpu_custom_call.1} parent=1 // pred_check_branch
      %86 = sbr.rel (0) target = $region49
    $region48: #{tpu_custom_call.1} parent=1 // pred_region
      _
    $region49: #{tpu_custom_call.1} parent=1 // pred_fallthru
      _
    // Predicated region
    $region50: #{tpu_custom_call.1} parent=1 // pred_check
      _
    $region51: #{tpu_custom_call.1} parent=1 // pred_check_branch
      %88 = sbr.rel (0) target = $region53
    $region52: #{tpu_custom_call.1} parent=1 // pred_region
      _
    $region53: #{tpu_custom_call.1} parent=1 // pred_fallthru
      _
    // Predicated region
    $region54: #{tpu_custom_call.1} parent=1 // pred_check
      _
    $region55: #{tpu_custom_call.1} parent=1 // pred_check_branch
      %90 = sbr.rel (0) target = $region57
    $region56: #{tpu_custom_call.1} parent=1 // pred_region
      _
    $region57: #{tpu_custom_call.1} parent=1 // pred_fallthru
      _
    // Predicated region
    $region58: #{tpu_custom_call.1} parent=1 // pred_check
      _
    $region59: #{tpu_custom_call.1} parent=1 // pred_check_branch
      %92 = sbr.rel (0) target = $region61
    $region60: #{tpu_custom_call.1} parent=1 // pred_region
      %93 = dma.done [#allocation3], 2048
    $region61: #{tpu_custom_call.1} parent=1 // pred_fallthru
      _
    // Predicated region
    $region62: #{tpu_custom_call.1} parent=1 // pred_check
      _
    $region63: #{tpu_custom_call.1} parent=1 // pred_check_branch
      %95 = sbr.rel (0) target = $region65
    $region64: #{tpu_custom_call.1} parent=1 // pred_region
      %96 = dma.done [#allocation6], 2048
    $region65: #{tpu_custom_call.1} parent=1 // pred_fallthru
      _
    // Predicated region
    $region66: #{tpu_custom_call.1} parent=1 // pred_check
      _
    $region67: #{tpu_custom_call.1} parent=1 // pred_check_branch
      %98 = sbr.rel (0) target = $region69
    $region68: #{tpu_custom_call.1} parent=1 // pred_region
      %99 = dma.done [#allocation6], 2048
    $region69: #{tpu_custom_call.1} parent=1 // pred_fallthru
      _
    // Predicated region
    $region70: #{tpu_custom_call.1} parent=1 // pred_check
      _
    $region71: #{tpu_custom_call.1} parent=1 // pred_check_branch
      %101 = sbr.rel (0) target = $region73
    $region72: #{tpu_custom_call.1} parent=1 // pred_region
      %102 = dma.done [#allocation9], 2048
    $region73: #{tpu_custom_call.1} parent=1 // pred_fallthru
      _
    %v104 = vld [vmem:[%s0] sm:$0xff]
    %v105 = vld [vmem:[%s0 + $0x8] sm:$0xff]
    %v106 = vpack.c.bf16 %v105, %v104
    %v107 = vlaneseq
    %v108 = vshrl.u32 %v107, 7
    %v109 = vlaneseq
    %v110 = vand.u32 %v109, 127
    %vm111 = vcmp.gt.s32.totalorder %v110, %v108
    %v112 = vsel %vm111, -1e+30, 0.0
    %v113 = vld [vmem:[#allocation2] sm:$0xf]
    %v114 = vld [vmem:[#allocation2 + $0x4] sm:$0xf]
    %v115 = vld [vmem:[#allocation2 + $0x8] sm:$0xf]
    %v116 = vld [vmem:[#allocation2 + $0xc] sm:$0xf]
    %v121 = vunpack.c.l.b16 %v113
    %v122 = vunpack.c.l.b16 %v114
    %v123 = vunpack.c.l.b16 %v115
    %v124 = vunpack.c.l.b16 %v116
    %v125 = vpack.c.b16 %v122, %v121
    %v126 = vpack.c.b16 %v124, %v123
    %vm129 = vcmask 261120
    %v131 = vsel %vm129, %v106, 0
    %133 = vmatprep.subr.bf16.mxu0 0
    %134 = vmatpush1.bf16.msra.mxu0 %v125
    %135 = vmatprep.subr.bf16.mxu0 0
    %136 = vmatpush1.bf16.msra.mxu0 %v126
    %137 = vmatprep.subr.bf16.mxu0 0
    %138 = vmatpush1.bf16.msra.mxu0 0
    %139 = vmatprep.subr.bf16.mxu0 0
    %140 = vmatpush1.bf16.msra.mxu0 0
    %141 = vmatprep.subr.bf16.mxu0 0
    %142 = vmatpush1.bf16.msra.mxu0 0
    %143 = vmatprep.subr.bf16.mxu0 0
    %144 = vmatpush1.bf16.msra.mxu0 0
    %145 = vmatprep.subr.bf16.mxu0 0
    %146 = vmatpush1.bf16.msra.mxu0 0
    %147 = vmatprep.subr.bf16.mxu0 0
    %148 = vmatpush1.bf16.msra.mxu0 0
    %149 = vmatprep.subr.bf16.mxu0 0
    %150 = vmatpush1.bf16.msra.mxu0 0
    %151 = vmatprep.subr.bf16.mxu0 0
    %152 = vmatpush1.bf16.msra.mxu0 0
    %153 = vmatprep.subr.bf16.mxu0 0
    %154 = vmatpush1.bf16.msra.mxu0 0
    %155 = vmatprep.subr.bf16.mxu0 0
    %156 = vmatpush1.bf16.msra.mxu0 0
    %157 = vmatprep.subr.bf16.mxu0 0
    %158 = vmatpush1.bf16.msra.mxu0 0
    %159 = vmatprep.subr.bf16.mxu0 0
    %160 = vmatpush1.bf16.msra.mxu0 0
    %161 = vmatprep.subr.bf16.mxu0 0
    %162 = vmatpush1.bf16.msra.mxu0 0
    %163 = vmatprep.subr.bf16.mxu0 0
    %164 = vmatpush1.bf16.msra.mxu0 0
    %165 = vmatprep.mubr.bf16.mxu0 0
    %166 = vmatmul.mubr.bf16.gmra.mrb[0].mxu0 %v131
    %v167 = vpop.f32.mrb[0].mxu0
    %v168 = vadd.f32 0.0, %v167
    %v169 = vpop.f32.mrb[0].mxu0
    %v170 = vpop.f32.mrb[0].mxu0
    %v171 = vadd.f32 0.0, %v170
    %v172 = vpop.f32.mrb[0].mxu0
    %173 = vdwg.mxu0
    %v174 = vld [vmem:[#allocation5] sm:$0xf]
    %v175 = vld [vmem:[#allocation5 + $0x4] sm:$0xf]
    %v176 = vld [vmem:[#allocation5 + $0x8] sm:$0xf]
    %v177 = vld [vmem:[#allocation5 + $0xc] sm:$0xf]
    %v182 = vunpack.c.l.b16 %v174
    %v183 = vunpack.c.l.b16 %v175
    %v184 = vunpack.c.l.b16 %v176
    %v185 = vunpack.c.l.b16 %v177
    %v186 = vpack.c.b16 %v183, %v182
    %v187 = vpack.c.b16 %v185, %v184
    %190 = vmatprep.subr.bf16.mxu0 0
    %191 = vmatpush1.bf16.msra.mxu0 %v186
    %192 = vmatprep.subr.bf16.mxu0 0
    %193 = vmatpush1.bf16.msra.mxu0 %v187
    %194 = vmatprep.subr.bf16.mxu0 0
    %195 = vmatpush1.bf16.msra.mxu0 0
    %196 = vmatprep.subr.bf16.mxu0 0
    %197 = vmatpush1.bf16.msra.mxu0 0
    %198 = vmatprep.subr.bf16.mxu0 0
    %199 = vmatpush1.bf16.msra.mxu0 0
    %200 = vmatprep.subr.bf16.mxu0 0
    %201 = vmatpush1.bf16.msra.mxu0 0
    %202 = vmatprep.subr.bf16.mxu0 0
    %203 = vmatpush1.bf16.msra.mxu0 0
    %204 = vmatprep.subr.bf16.mxu0 0
    %205 = vmatpush1.bf16.msra.mxu0 0
    %206 = vmatprep.subr.bf16.mxu0 0
    %207 = vmatpush1.bf16.msra.mxu0 0
    %208 = vmatprep.subr.bf16.mxu0 0
    %209 = vmatpush1.bf16.msra.mxu0 0
    %210 = vmatprep.subr.bf16.mxu0 0
    %211 = vmatpush1.bf16.msra.mxu0 0
    %212 = vmatprep.subr.bf16.mxu0 0
    %213 = vmatpush1.bf16.msra.mxu0 0
    %214 = vmatprep.subr.bf16.mxu0 0
    %215 = vmatpush1.bf16.msra.mxu0 0
    %216 = vmatprep.subr.bf16.mxu0 0
    %217 = vmatpush1.bf16.msra.mxu0 0
    %218 = vmatprep.subr.bf16.mxu0 0
    %219 = vmatpush1.bf16.msra.mxu0 0
    %220 = vmatprep.subr.bf16.mxu0 0
    %221 = vmatpush1.bf16.msra.mxu0 0
    %222 = vmatprep.mubr.bf16.mxu0 0
    %223 = vmatmul.mubr.bf16.gmra.mrb[0].mxu0 %v131
    %v224 = vpop.f32.mrb[0].mxu0
    %v225 = vadd.f32 0.0, %v224
    %v226 = vpop.f32.mrb[0].mxu0
    %v227 = vpop.f32.mrb[0].mxu0
    %v228 = vadd.f32 0.0, %v227
    %v229 = vpop.f32.mrb[0].mxu0
    %230 = vdwg.mxu0
    %v231 = vld [vmem:[#allocation7] sm:$0xf]
    %v232 = vld [vmem:[#allocation7 + $0x4] sm:$0xf]
    %v233 = vld [vmem:[#allocation7 + $0x8] sm:$0xf]
    %v234 = vld [vmem:[#allocation7 + $0xc] sm:$0xf]
    %v239 = vunpack.c.l.b16 %v231
    %v240 = vunpack.c.l.b16 %v232
    %v241 = vunpack.c.l.b16 %v233
    %v242 = vunpack.c.l.b16 %v234
    %v243 = vpack.c.b16 %v240, %v239
    %v244 = vpack.c.b16 %v242, %v241
    %247 = vmatprep.subr.bf16.mxu0 0
    %248 = vmatpush1.bf16.msra.mxu0 %v243
    %249 = vmatprep.subr.bf16.mxu0 0
    %250 = vmatpush1.bf16.msra.mxu0 %v244
    %251 = vmatprep.subr.bf16.mxu0 0
    %252 = vmatpush1.bf16.msra.mxu0 0
    %253 = vmatprep.subr.bf16.mxu0 0
    %254 = vmatpush1.bf16.msra.mxu0 0
    %255 = vmatprep.subr.bf16.mxu0 0
    %256 = vmatpush1.bf16.msra.mxu0 0
    %257 = vmatprep.subr.bf16.mxu0 0
    %258 = vmatpush1.bf16.msra.mxu0 0
    %259 = vmatprep.subr.bf16.mxu0 0
    %260 = vmatpush1.bf16.msra.mxu0 0
    %261 = vmatprep.subr.bf16.mxu0 0
    %262 = vmatpush1.bf16.msra.mxu0 0
    %263 = vmatprep.subr.bf16.mxu0 0
    %264 = vmatpush1.bf16.msra.mxu0 0
    %265 = vmatprep.subr.bf16.mxu0 0
    %266 = vmatpush1.bf16.msra.mxu0 0
    %267 = vmatprep.subr.bf16.mxu0 0
    %268 = vmatpush1.bf16.msra.mxu0 0
    %269 = vmatprep.subr.bf16.mxu0 0
    %270 = vmatpush1.bf16.msra.mxu0 0
    %271 = vmatprep.subr.bf16.mxu0 0
    %272 = vmatpush1.bf16.msra.mxu0 0
    %273 = vmatprep.subr.bf16.mxu0 0
    %274 = vmatpush1.bf16.msra.mxu0 0
    %275 = vmatprep.subr.bf16.mxu0 0
    %276 = vmatpush1.bf16.msra.mxu0 0
    %277 = vmatprep.subr.bf16.mxu0 0
    %278 = vmatpush1.bf16.msra.mxu0 0
    %279 = vmatprep.mubr.bf16.mxu0 0
    %280 = vmatmul.mubr.bf16.gmra.mrb[0].mxu0 %v131
    %v281 = vpop.f32.mrb[0].mxu0
    %v282 = vadd.f32 0.0, %v281
    %v283 = vpop.f32.mrb[0].mxu0
    %v284 = vpop.f32.mrb[0].mxu0
    %v285 = vadd.f32 0.0, %v284
    %v286 = vpop.f32.mrb[0].mxu0
    %287 = vdwg.mxu0
    %v288 = vpack.c.bf16 %v168, %v168
    %v289 = vpack.c.bf16 %v171, %v171
    %v290 = vpack.c.bf16 %v225, %v225
    %v291 = vpack.c.bf16 %v228, %v228
    %v292 = vpack.c.bf16 %v282, %v282
    %v293 = vpack.c.bf16 %v285, %v285
    %v295 = vsel %vm129, %v288, 0
    %v298 = vsel %vm129, %v290, 0
    %300 = vmatprep.subr.bf16.mxu0 0
    %301 = vmatpush1.bf16.xpose.msra.mxu0 %v298
    %302 = vmatprep.subr.bf16.mxu0 0
    %303 = vmatpush1.bf16.xpose.msra.mxu0 0
    %304 = vmatprep.subr.bf16.mxu0 0
    %305 = vmatpush1.bf16.xpose.msra.mxu0 0
    %306 = vmatprep.subr.bf16.mxu0 0
    %307 = vmatpush1.bf16.xpose.msra.mxu0 0
    %308 = vmatprep.subr.bf16.mxu0 0
    %309 = vmatpush1.bf16.xpose.msra.mxu0 0
    %310 = vmatprep.subr.bf16.mxu0 0
    %311 = vmatpush1.bf16.xpose.msra.mxu0 0
    %312 = vmatprep.subr.bf16.mxu0 0
    %313 = vmatpush1.bf16.xpose.msra.mxu0 0
    %314 = vmatprep.subr.bf16.mxu0 0
    %315 = vmatpush1.bf16.xpose.msra.mxu0 0
    %316 = vmatprep.subr.bf16.mxu0 0
    %317 = vmatpush1.bf16.xpose.msra.mxu0 0
    %318 = vmatprep.subr.bf16.mxu0 0
    %319 = vmatpush1.bf16.xpose.msra.mxu0 0
    %320 = vmatprep.subr.bf16.mxu0 0
    %321 = vmatpush1.bf16.xpose.msra.mxu0 0
    %322 = vmatprep.subr.bf16.mxu0 0
    %323 = vmatpush1.bf16.xpose.msra.mxu0 0
    %324 = vmatprep.subr.bf16.mxu0 0
    %325 = vmatpush1.bf16.xpose.msra.mxu0 0
    %326 = vmatprep.subr.bf16.mxu0 0
    %327 = vmatpush1.bf16.xpose.msra.mxu0 0
    %328 = vmatprep.subr.bf16.mxu0 0
    %329 = vmatpush1.bf16.xpose.msra.mxu0 0
    %330 = vmatprep.subr.bf16.mxu0 0
    %331 = vmatpush1.bf16.xpose.msra.mxu0 0
    %332 = vmatprep.mubr.bf16.mxu0 0
    %333 = vmatmul.mubr.bf16.gmra.mrb[0].mxu0 %v295
    %v334 = vpop.f32.mrb[0].mxu0
    %v335 = vadd.f32 0.0, %v334
    %v336 = vpop.f32.mrb[0].mxu0
    %v337 = vpop.f32.mrb[0].mxu0
    %v338 = vpop.f32.mrb[0].mxu0
    %339 = vdwg.mxu0
    %v341 = vsel %vm129, %v289, 0
    %v344 = vsel %vm129, %v291, 0
    %346 = vmatprep.subr.bf16.mxu0 0
    %347 = vmatpush1.bf16.xpose.msra.mxu0 %v344
    %348 = vmatprep.subr.bf16.mxu0 0
    %349 = vmatpush1.bf16.xpose.msra.mxu0 0
    %350 = vmatprep.subr.bf16.mxu0 0
    %351 = vmatpush1.bf16.xpose.msra.mxu0 0
    %352 = vmatprep.subr.bf16.mxu0 0
    %353 = vmatpush1.bf16.xpose.msra.mxu0 0
    %354 = vmatprep.subr.bf16.mxu0 0
    %355 = vmatpush1.bf16.xpose.msra.mxu0 0
    %356 = vmatprep.subr.bf16.mxu0 0
    %357 = vmatpush1.bf16.xpose.msra.mxu0 0
    %358 = vmatprep.subr.bf16.mxu0 0
    %359 = vmatpush1.bf16.xpose.msra.mxu0 0
    %360 = vmatprep.subr.bf16.mxu0 0
    %361 = vmatpush1.bf16.xpose.msra.mxu0 0
    %362 = vmatprep.subr.bf16.mxu0 0
    %363 = vmatpush1.bf16.xpose.msra.mxu0 0
    %364 = vmatprep.subr.bf16.mxu0 0
    %365 = vmatpush1.bf16.xpose.msra.mxu0 0
    %366 = vmatprep.subr.bf16.mxu0 0
    %367 = vmatpush1.bf16.xpose.msra.mxu0 0
    %368 = vmatprep.subr.bf16.mxu0 0
    %369 = vmatpush1.bf16.xpose.msra.mxu0 0
    %370 = vmatprep.subr.bf16.mxu0 0
    %371 = vmatpush1.bf16.xpose.msra.mxu0 0
    %372 = vmatprep.subr.bf16.mxu0 0
    %373 = vmatpush1.bf16.xpose.msra.mxu0 0
    %374 = vmatprep.subr.bf16.mxu0 0
    %375 = vmatpush1.bf16.xpose.msra.mxu0 0
    %376 = vmatprep.subr.bf16.mxu0 0
    %377 = vmatpush1.bf16.xpose.msra.mxu0 0
    %378 = vmatprep.mubr.bf16.mxu0 0
    %379 = vmatmul.mubr.bf16.gmra.mrb[0].mxu0 %v341
    %v380 = vpop.f32.mrb[0].mxu0
    %v381 = vadd.f32 0.0, %v380
    %v382 = vpop.f32.mrb[0].mxu0
    %v383 = vpop.f32.mrb[0].mxu0
    %v384 = vpop.f32.mrb[0].mxu0
    %385 = vdwg.mxu0
    %v386 = vmul.f32 %v335, 0.17677669
    %v387 = vmul.f32 %v381, 0.17677669
    %v388 = vadd.f32 %v386, %v112
    %v389 = vadd.f32 %v387, %v112
    %vm390 = vcmask 64512
    %v391 = vsel %vm390, %v388, -inf
    %392 = vmax.xlane.f32.xlu0 %v391
    %v393 = vpop.xlane.xlu0 %392
    %v394 = vsel %vm390, %v389, -inf
    %395 = vmax.xlane.f32.xlu0 %v394
    %v396 = vpop.xlane.xlu0 %395
    %v397 = vsub.f32 %v388, %v393
    %v398 = vsub.f32 %v389, %v396
    %v399 = vmul.f32 %v397, 1.442695
    %v400 = vpow.pop %v399
    %v401 = vmul.f32 %v398, 1.442695
    %v402 = vpow.pop %v401
    %v403 = vsel %vm390, %v400, 0.0
    %404 = vadd.xlane.f32.xlu0 %v403
    %v405 = vpop.xlane.xlu0 %404
    %v406 = vsel %vm390, %v402, 0.0
    %407 = vadd.xlane.f32.xlu0 %v406
    %v408 = vpop.xlane.xlu0 %407
    %v409 = vrcp.pop %v405
    %v410 = vrcp.pop %v408
    %v411 = vmul.f32 %v400, %v409
    %v412 = vmul.f32 %v402, %v410
    %v413 = vpack.c.bf16 %v411, %v411
    %v414 = vpack.c.bf16 %v412, %v412
    %v416 = vsel %vm390, %v413, 0
    %vm418 = vcmask 1043456
    %v420 = vsel %vm418, %v292, 0
    %422 = vmatprep.subr.bf16.mxu0 0
    %423 = vmatpush1.bf16.msra.mxu0 %v420
    %424 = vmatprep.subr.bf16.mxu0 0
    %425 = vmatpush1.bf16.msra.mxu0 0
    %426 = vmatprep.subr.bf16.mxu0 0
    %427 = vmatpush1.bf16.msra.mxu0 0
    %428 = vmatprep.subr.bf16.mxu0 0
    %429 = vmatpush1.bf16.msra.mxu0 0
    %430 = vmatprep.subr.bf16.mxu0 0
    %431 = vmatpush1.bf16.msra.mxu0 0
    %432 = vmatprep.subr.bf16.mxu0 0
    %433 = vmatpush1.bf16.msra.mxu0 0
    %434 = vmatprep.subr.bf16.mxu0 0
    %435 = vmatpush1.bf16.msra.mxu0 0
    %436 = vmatprep.subr.bf16.mxu0 0
    %437 = vmatpush1.bf16.msra.mxu0 0
    %438 = vmatprep.subr.bf16.mxu0 0
    %439 = vmatpush1.bf16.msra.mxu0 0
    %440 = vmatprep.subr.bf16.mxu0 0
    %441 = vmatpush1.bf16.msra.mxu0 0
    %442 = vmatprep.subr.bf16.mxu0 0
    %443 = vmatpush1.bf16.msra.mxu0 0
    %444 = vmatprep.subr.bf16.mxu0 0
    %445 = vmatpush1.bf16.msra.mxu0 0
    %446 = vmatprep.subr.bf16.mxu0 0
    %447 = vmatpush1.bf16.msra.mxu0 0
    %448 = vmatprep.subr.bf16.mxu0 0
    %449 = vmatpush1.bf16.msra.mxu0 0
    %450 = vmatprep.subr.bf16.mxu0 0
    %451 = vmatpush1.bf16.msra.mxu0 0
    %452 = vmatprep.subr.bf16.mxu0 0
    %453 = vmatpush1.bf16.msra.mxu0 0
    %454 = vmatprep.mubr.bf16.mxu0 0
    %455 = vmatmul.mubr.bf16.gmra.mrb[0].mxu0 %v416
    %v456 = vpop.f32.mrb[0].mxu0
    %v457 = vadd.f32 0.0, %v456
    %v458 = vpop.f32.mrb[0].mxu0
    %v459 = vpop.f32.mrb[0].mxu0
    %v460 = vpop.f32.mrb[0].mxu0
    %461 = vdwg.mxu0
    %v463 = vsel %vm390, %v414, 0
    %v466 = vsel %vm418, %v293, 0
    %468 = vmatprep.subr.bf16.mxu0 0
    %469 = vmatpush1.bf16.msra.mxu0 %v466
    %470 = vmatprep.subr.bf16.mxu0 0
    %471 = vmatpush1.bf16.msra.mxu0 0
    %472 = vmatprep.subr.bf16.mxu0 0
    %473 = vmatpush1.bf16.msra.mxu0 0
    %474 = vmatprep.subr.bf16.mxu0 0
    %475 = vmatpush1.bf16.msra.mxu0 0
    %476 = vmatprep.subr.bf16.mxu0 0
    %477 = vmatpush1.bf16.msra.mxu0 0
    %478 = vmatprep.subr.bf16.mxu0 0
    %479 = vmatpush1.bf16.msra.mxu0 0
    %480 = vmatprep.subr.bf16.mxu0 0
    %481 = vmatpush1.bf16.msra.mxu0 0
    %482 = vmatprep.subr.bf16.mxu0 0
    %483 = vmatpush1.bf16.msra.mxu0 0
    %484 = vmatprep.subr.bf16.mxu0 0
    %485 = vmatpush1.bf16.msra.mxu0 0
    %486 = vmatprep.subr.bf16.mxu0 0
    %487 = vmatpush1.bf16.msra.mxu0 0
    %488 = vmatprep.subr.bf16.mxu0 0
    %489 = vmatpush1.bf16.msra.mxu0 0
    %490 = vmatprep.subr.bf16.mxu0 0
    %491 = vmatpush1.bf16.msra.mxu0 0
    %492 = vmatprep.subr.bf16.mxu0 0
    %493 = vmatpush1.bf16.msra.mxu0 0
    %494 = vmatprep.subr.bf16.mxu0 0
    %495 = vmatpush1.bf16.msra.mxu0 0
    %496 = vmatprep.subr.bf16.mxu0 0
    %497 = vmatpush1.bf16.msra.mxu0 0
    %498 = vmatprep.subr.bf16.mxu0 0
    %499 = vmatpush1.bf16.msra.mxu0 0
    %500 = vmatprep.mubr.bf16.mxu0 0
    %501 = vmatmul.mubr.bf16.gmra.mrb[0].mxu0 %v463
    %v502 = vpop.f32.mrb[0].mxu0
    %v503 = vadd.f32 0.0, %v502
    %v504 = vpop.f32.mrb[0].mxu0
    %v505 = vpop.f32.mrb[0].mxu0
    %v506 = vpop.f32.mrb[0].mxu0
    %507 = vdwg.mxu0
    %v508 = vpack.c.bf16 %v503, %v457
    %v509 = vld [vmem:[#allocation8] sm:$0xf]
    %v510 = vld [vmem:[#allocation8 + $0x4] sm:$0xf]
    %v511 = vld [vmem:[#allocation8 + $0x8] sm:$0xf]
    %v512 = vld [vmem:[#allocation8 + $0xc] sm:$0xf]
    %s513 = scalar_lea.vmem [#allocation2], 16
    %v514 = vld [vmem:[%s513] sm:$0xf]
    %v515 = vld [vmem:[%s513 + $0x4] sm:$0xf]
    %v516 = vld [vmem:[%s513 + $0x8] sm:$0xf]
    %v517 = vld [vmem:[%s513 + $0xc] sm:$0xf]
    %v522 = vunpack.c.l.b16 %v514
    %v523 = vunpack.c.l.b16 %v515
    %v524 = vunpack.c.l.b16 %v516
    %v525 = vunpack.c.l.b16 %v517
    %v526 = vpack.c.b16 %v523, %v522
    %v527 = vpack.c.b16 %v525, %v524
    %530 = vmatprep.subr.bf16.mxu0 0
    %531 = vmatpush1.bf16.msra.mxu0 %v526
    %532 = vmatprep.subr.bf16.mxu0 0
    %533 = vmatpush1.bf16.msra.mxu0 %v527
    %534 = vmatprep.subr.bf16.mxu0 0
    %535 = vmatpush1.bf16.msra.mxu0 0
    %536 = vmatprep.subr.bf16.mxu0 0
    %537 = vmatpush1.bf16.msra.mxu0 0
    %538 = vmatprep.subr.bf16.mxu0 0
    %539 = vmatpush1.bf16.msra.mxu0 0
    %540 = vmatprep.subr.bf16.mxu0 0
    %541 = vmatpush1.bf16.msra.mxu0 0
    %542 = vmatprep.subr.bf16.mxu0 0
    %543 = vmatpush1.bf16.msra.mxu0 0
    %544 = vmatprep.subr.bf16.mxu0 0
    %545 = vmatpush1.bf16.msra.mxu0 0
    %546 = vmatprep.subr.bf16.mxu0 0
    %547 = vmatpush1.bf16.msra.mxu0 0
    %548 = vmatprep.subr.bf16.mxu0 0
    %549 = vmatpush1.bf16.msra.mxu0 0
    %550 = vmatprep.subr.bf16.mxu0 0
    %551 = vmatpush1.bf16.msra.mxu0 0
    %552 = vmatprep.subr.bf16.mxu0 0
    %553 = vmatpush1.bf16.msra.mxu0 0
    %554 = vmatprep.subr.bf16.mxu0 0
    %555 = vmatpush1.bf16.msra.mxu0 0
    %556 = vmatprep.subr.bf16.mxu0 0
    %557 = vmatpush1.bf16.msra.mxu0 0
    %558 = vmatprep.subr.bf16.mxu0 0
    %559 = vmatpush1.bf16.msra.mxu0 0
    %560 = vmatprep.subr.bf16.mxu0 0
    %561 = vmatpush1.bf16.msra.mxu0 0
    %562 = vmatprep.mubr.bf16.mxu0 0
    %563 = vmatmul.mubr.bf16.gmra.mrb[0].mxu0 %v131
    %v564 = vpop.f32.mrb[0].mxu0
    %v565 = vadd.f32 0.0, %v564
    %v566 = vpop.f32.mrb[0].mxu0
    %v567 = vpop.f32.mrb[0].mxu0
    %v568 = vadd.f32 0.0, %v567
    %v569 = vpop.f32.mrb[0].mxu0
    %570 = vdwg.mxu0
    %s571 = scalar_lea.vmem [#allocation5], 16
    %v572 = vld [vmem:[%s571] sm:$0xf]
    %v573 = vld [vmem:[%s571 + $0x4] sm:$0xf]
    %v574 = vld [vmem:[%s571 + $0x8] sm:$0xf]
    %v575 = vld [vmem:[%s571 + $0xc] sm:$0xf]
    %v580 = vunpack.c.l.b16 %v572
    %v581 = vunpack.c.l.b16 %v573
    %v582 = vunpack.c.l.b16 %v574
    %v583 = vunpack.c.l.b16 %v575
    %v584 = vpack.c.b16 %v581, %v580
    %v585 = vpack.c.b16 %v583, %v582
    %588 = vmatprep.subr.bf16.mxu0 0
    %589 = vmatpush1.bf16.msra.mxu0 %v584
    %590 = vmatprep.subr.bf16.mxu0 0
    %591 = vmatpush1.bf16.msra.mxu0 %v585
    %592 = vmatprep.subr.bf16.mxu0 0
    %593 = vmatpush1.bf16.msra.mxu0 0
    %594 = vmatprep.subr.bf16.mxu0 0
    %595 = vmatpush1.bf16.msra.mxu0 0
    %596 = vmatprep.subr.bf16.mxu0 0
    %597 = vmatpush1.bf16.msra.mxu0 0
    %598 = vmatprep.subr.bf16.mxu0 0
    %599 = vmatpush1.bf16.msra.mxu0 0
    %600 = vmatprep.subr.bf16.mxu0 0
    %601 = vmatpush1.bf16.msra.mxu0 0
    %602 = vmatprep.subr.bf16.mxu0 0
    %603 = vmatpush1.bf16.msra.mxu0 0
    %604 = vmatprep.subr.bf16.mxu0 0
    %605 = vmatpush1.bf16.msra.mxu0 0
    %606 = vmatprep.subr.bf16.mxu0 0
    %607 = vmatpush1.bf16.msra.mxu0 0
    %608 = vmatprep.subr.bf16.mxu0 0
    %609 = vmatpush1.bf16.msra.mxu0 0
    %610 = vmatprep.subr.bf16.mxu0 0
    %611 = vmatpush1.bf16.msra.mxu0 0
    %612 = vmatprep.subr.bf16.mxu0 0
    %613 = vmatpush1.bf16.msra.mxu0 0
    %614 = vmatprep.subr.bf16.mxu0 0
    %615 = vmatpush1.bf16.msra.mxu0 0
    %616 = vmatprep.subr.bf16.mxu0 0
    %617 = vmatpush1.bf16.msra.mxu0 0
    %618 = vmatprep.subr.bf16.mxu0 0
    %619 = vmatpush1.bf16.msra.mxu0 0
    %620 = vmatprep.mubr.bf16.mxu0 0
    %621 = vmatmul.mubr.bf16.gmra.mrb[0].mxu0 %v131
    %v622 = vpop.f32.mrb[0].mxu0
    %v623 = vadd.f32 0.0, %v622
    %v624 = vpop.f32.mrb[0].mxu0
    %v625 = vpop.f32.mrb[0].mxu0
    %v626 = vadd.f32 0.0, %v625
    %v627 = vpop.f32.mrb[0].mxu0
    %628 = vdwg.mxu0
    %s629 = scalar_lea.vmem [#allocation7], 16
    %v630 = vld [vmem:[%s629] sm:$0xf]
    %v631 = vld [vmem:[%s629 + $0x4] sm:$0xf]
    %v632 = vld [vmem:[%s629 + $0x8] sm:$0xf]
    %v633 = vld [vmem:[%s629 + $0xc] sm:$0xf]
    %v638 = vunpack.c.l.b16 %v630
    %v639 = vunpack.c.l.b16 %v631
    %v640 = vunpack.c.l.b16 %v632
    %v641 = vunpack.c.l.b16 %v633
    %v642 = vpack.c.b16 %v639, %v638
    %v643 = vpack.c.b16 %v641, %v640
    %646 = vmatprep.subr.bf16.mxu0 0
    %647 = vmatpush1.bf16.msra.mxu0 %v642
    %648 = vmatprep.subr.bf16.mxu0 0
    %649 = vmatpush1.bf16.msra.mxu0 %v643
    %650 = vmatprep.subr.bf16.mxu0 0
    %651 = vmatpush1.bf16.msra.mxu0 0
    %652 = vmatprep.subr.bf16.mxu0 0
    %653 = vmatpush1.bf16.msra.mxu0 0
    %654 = vmatprep.subr.bf16.mxu0 0
    %655 = vmatpush1.bf16.msra.mxu0 0
    %656 = vmatprep.subr.bf16.mxu0 0
    %657 = vmatpush1.bf16.msra.mxu0 0
    %658 = vmatprep.subr.bf16.mxu0 0
    %659 = vmatpush1.bf16.msra.mxu0 0
    %660 = vmatprep.subr.bf16.mxu0 0
    %661 = vmatpush1.bf16.msra.mxu0 0
    %662 = vmatprep.subr.bf16.mxu0 0
    %663 = vmatpush1.bf16.msra.mxu0 0
    %664 = vmatprep.subr.bf16.mxu0 0
    %665 = vmatpush1.bf16.msra.mxu0 0
    %666 = vmatprep.subr.bf16.mxu0 0
    %667 = vmatpush1.bf16.msra.mxu0 0
    %668 = vmatprep.subr.bf16.mxu0 0
    %669 = vmatpush1.bf16.msra.mxu0 0
    %670 = vmatprep.subr.bf16.mxu0 0
    %671 = vmatpush1.bf16.msra.mxu0 0
    %672 = vmatprep.subr.bf16.mxu0 0
    %673 = vmatpush1.bf16.msra.mxu0 0
    %674 = vmatprep.subr.bf16.mxu0 0
    %675 = vmatpush1.bf16.msra.mxu0 0
    %676 = vmatprep.subr.bf16.mxu0 0
    %677 = vmatpush1.bf16.msra.mxu0 0
    %678 = vmatprep.mubr.bf16.mxu0 0
    %679 = vmatmul.mubr.bf16.gmra.mrb[0].mxu0 %v131
    %v680 = vpop.f32.mrb[0].mxu0
    %v681 = vadd.f32 0.0, %v680
    %v682 = vpop.f32.mrb[0].mxu0
    %v683 = vpop.f32.mrb[0].mxu0
    %v684 = vadd.f32 0.0, %v683
    %v685 = vpop.f32.mrb[0].mxu0
    %686 = vdwg.mxu0
    %v687 = vpack.c.bf16 %v565, %v565
    %v688 = vpack.c.bf16 %v568, %v568
    %v689 = vpack.c.bf16 %v623, %v623
    %v690 = vpack.c.bf16 %v626, %v626
    %v691 = vpack.c.bf16 %v681, %v681
    %v692 = vpack.c.bf16 %v684, %v684
    %v694 = vsel %vm129, %v687, 0
    %v697 = vsel %vm129, %v689, 0
    %699 = vmatprep.subr.bf16.mxu0 0
    %700 = vmatpush1.bf16.xpose.msra.mxu0 %v697
    %701 = vmatprep.subr.bf16.mxu0 0
    %702 = vmatpush1.bf16.xpose.msra.mxu0 0
    %703 = vmatprep.subr.bf16.mxu0 0
    %704 = vmatpush1.bf16.xpose.msra.mxu0 0
    %705 = vmatprep.subr.bf16.mxu0 0
    %706 = vmatpush1.bf16.xpose.msra.mxu0 0
    %707 = vmatprep.subr.bf16.mxu0 0
    %708 = vmatpush1.bf16.xpose.msra.mxu0 0
    %709 = vmatprep.subr.bf16.mxu0 0
    %710 = vmatpush1.bf16.xpose.msra.mxu0 0
    %711 = vmatprep.subr.bf16.mxu0 0
    %712 = vmatpush1.bf16.xpose.msra.mxu0 0
    %713 = vmatprep.subr.bf16.mxu0 0
    %714 = vmatpush1.bf16.xpose.msra.mxu0 0
    %715 = vmatprep.subr.bf16.mxu0 0
    %716 = vmatpush1.bf16.xpose.msra.mxu0 0
    %717 = vmatprep.subr.bf16.mxu0 0
    %718 = vmatpush1.bf16.xpose.msra.mxu0 0
    %719 = vmatprep.subr.bf16.mxu0 0
    %720 = vmatpush1.bf16.xpose.msra.mxu0 0
    %721 = vmatprep.subr.bf16.mxu0 0
    %722 = vmatpush1.bf16.xpose.msra.mxu0 0
    %723 = vmatprep.subr.bf16.mxu0 0
    %724 = vmatpush1.bf16.xpose.msra.mxu0 0
    %725 = vmatprep.subr.bf16.mxu0 0
    %726 = vmatpush1.bf16.xpose.msra.mxu0 0
    %727 = vmatprep.subr.bf16.mxu0 0
    %728 = vmatpush1.bf16.xpose.msra.mxu0 0
    %729 = vmatprep.subr.bf16.mxu0 0
    %730 = vmatpush1.bf16.xpose.msra.mxu0 0
    %731 = vmatprep.mubr.bf16.mxu0 0
    %732 = vmatmul.mubr.bf16.gmra.mrb[0].mxu0 %v694
    %v733 = vpop.f32.mrb[0].mxu0
    %v734 = vadd.f32 0.0, %v733
    %v735 = vpop.f32.mrb[0].mxu0
    %v736 = vpop.f32.mrb[0].mxu0
    %v737 = vpop.f32.mrb[0].mxu0
    %738 = vdwg.mxu0
    %v740 = vsel %vm129, %v688, 0
    %v743 = vsel %vm129, %v690, 0
    %745 = vmatprep.subr.bf16.mxu0 0
    %746 = vmatpush1.bf16.xpose.msra.mxu0 %v743
    %747 = vmatprep.subr.bf16.mxu0 0
    %748 = vmatpush1.bf16.xpose.msra.mxu0 0
    %749 = vmatprep.subr.bf16.mxu0 0
    %750 = vmatpush1.bf16.xpose.msra.mxu0 0
    %751 = vmatprep.subr.bf16.mxu0 0
    %752 = vmatpush1.bf16.xpose.msra.mxu0 0
    %753 = vmatprep.subr.bf16.mxu0 0
    %754 = vmatpush1.bf16.xpose.msra.mxu0 0
    %755 = vmatprep.subr.bf16.mxu0 0
    %756 = vmatpush1.bf16.xpose.msra.mxu0 0
    %757 = vmatprep.subr.bf16.mxu0 0
    %758 = vmatpush1.bf16.xpose.msra.mxu0 0
    %759 = vmatprep.subr.bf16.mxu0 0
    %760 = vmatpush1.bf16.xpose.msra.mxu0 0
    %761 = vmatprep.subr.bf16.mxu0 0
    %762 = vmatpush1.bf16.xpose.msra.mxu0 0
    %763 = vmatprep.subr.bf16.mxu0 0
    %764 = vmatpush1.bf16.xpose.msra.mxu0 0
    %765 = vmatprep.subr.bf16.mxu0 0
    %766 = vmatpush1.bf16.xpose.msra.mxu0 0
    %767 = vmatprep.subr.bf16.mxu0 0
    %768 = vmatpush1.bf16.xpose.msra.mxu0 0
    %769 = vmatprep.subr.bf16.mxu0 0
    %770 = vmatpush1.bf16.xpose.msra.mxu0 0
    %771 = vmatprep.subr.bf16.mxu0 0
    %772 = vmatpush1.bf16.xpose.msra.mxu0 0
    %773 = vmatprep.subr.bf16.mxu0 0
    %774 = vmatpush1.bf16.xpose.msra.mxu0 0
    %775 = vmatprep.subr.bf16.mxu0 0
    %776 = vmatpush1.bf16.xpose.msra.mxu0 0
    %777 = vmatprep.mubr.bf16.mxu0 0
    %778 = vmatmul.mubr.bf16.gmra.mrb[0].mxu0 %v740
    %v779 = vpop.f32.mrb[0].mxu0
    %v780 = vadd.f32 0.0, %v779
    %v781 = vpop.f32.mrb[0].mxu0
    %v782 = vpop.f32.mrb[0].mxu0
    %v783 = vpop.f32.mrb[0].mxu0
    %784 = vdwg.mxu0
    %v785 = vmul.f32 %v734, 0.17677669
    %v786 = vmul.f32 %v780, 0.17677669
    %v787 = vadd.f32 %v785, %v112
    %v788 = vadd.f32 %v786, %v112
    %v789 = vsel %vm390, %v787, -inf
    %790 = vmax.xlane.f32.xlu0 %v789
    %v791 = vpop.xlane.xlu0 %790
    %v792 = vsel %vm390, %v788, -inf
    %793 = vmax.xlane.f32.xlu0 %v792
    %v794 = vpop.xlane.xlu0 %793
    %v795 = vsub.f32 %v787, %v791
    %v796 = vsub.f32 %v788, %v794
    %v797 = vmul.f32 %v795, 1.442695
    %v798 = vpow.pop %v797
    %v799 = vmul.f32 %v796, 1.442695
    %v800 = vpow.pop %v799
    %v801 = vsel %vm390, %v798, 0.0
    %802 = vadd.xlane.f32.xlu0 %v801
    %v803 = vpop.xlane.xlu0 %802
    %v804 = vsel %vm390, %v800, 0.0
    %805 = vadd.xlane.f32.xlu0 %v804
    %v806 = vpop.xlane.xlu0 %805
    %v807 = vrcp.pop %v803
    %v808 = vrcp.pop %v806
    %v809 = vmul.f32 %v798, %v807
    %v810 = vmul.f32 %v800, %v808
    %v811 = vpack.c.bf16 %v809, %v809
    %v812 = vpack.c.bf16 %v810, %v810
    %v814 = vsel %vm390, %v811, 0
    %v817 = vsel %vm418, %v691, 0
    %819 = vmatprep.subr.bf16.mxu0 0
    %820 = vmatpush1.bf16.msra.mxu0 %v817
    %821 = vmatprep.subr.bf16.mxu0 0
    %822 = vmatpush1.bf16.msra.mxu0 0
    %823 = vmatprep.subr.bf16.mxu0 0
    %824 = vmatpush1.bf16.msra.mxu0 0
    %825 = vmatprep.subr.bf16.mxu0 0
    %826 = vmatpush1.bf16.msra.mxu0 0
    %827 = vmatprep.subr.bf16.mxu0 0
    %828 = vmatpush1.bf16.msra.mxu0 0
    %829 = vmatprep.subr.bf16.mxu0 0
    %830 = vmatpush1.bf16.msra.mxu0 0
    %831 = vmatprep.subr.bf16.mxu0 0
    %832 = vmatpush1.bf16.msra.mxu0 0
    %833 = vmatprep.subr.bf16.mxu0 0
    %834 = vmatpush1.bf16.msra.mxu0 0
    %835 = vmatprep.subr.bf16.mxu0 0
    %836 = vmatpush1.bf16.msra.mxu0 0
    %837 = vmatprep.subr.bf16.mxu0 0
    %838 = vmatpush1.bf16.msra.mxu0 0
    %839 = vmatprep.subr.bf16.mxu0 0
    %840 = vmatpush1.bf16.msra.mxu0 0
    %841 = vmatprep.subr.bf16.mxu0 0
    %842 = vmatpush1.bf16.msra.mxu0 0
    %843 = vmatprep.subr.bf16.mxu0 0
    %844 = vmatpush1.bf16.msra.mxu0 0
    %845 = vmatprep.subr.bf16.mxu0 0
    %846 = vmatpush1.bf16.msra.mxu0 0
    %847 = vmatprep.subr.bf16.mxu0 0
    %848 = vmatpush1.bf16.msra.mxu0 0
    %849 = vmatprep.subr.bf16.mxu0 0
    %850 = vmatpush1.bf16.msra.mxu0 0
    %851 = vmatprep.mubr.bf16.mxu0 0
    %852 = vmatmul.mubr.bf16.gmra.mrb[0].mxu0 %v814
    %v853 = vpop.f32.mrb[0].mxu0
    %v854 = vadd.f32 0.0, %v853
    %v855 = vpop.f32.mrb[0].mxu0
    %v856 = vpop.f32.mrb[0].mxu0
    %v857 = vpop.f32.mrb[0].mxu0
    %858 = vdwg.mxu0
    %v860 = vsel %vm390, %v812, 0
    %v863 = vsel %vm418, %v692, 0
    %865 = vmatprep.subr.bf16.mxu0 0
    %866 = vmatpush1.bf16.msra.mxu0 %v863
    %867 = vmatprep.subr.bf16.mxu0 0
    %868 = vmatpush1.bf16.msra.mxu0 0
    %869 = vmatprep.subr.bf16.mxu0 0
    %870 = vmatpush1.bf16.msra.mxu0 0
    %871 = vmatprep.subr.bf16.mxu0 0
    %872 = vmatpush1.bf16.msra.mxu0 0
    %873 = vmatprep.subr.bf16.mxu0 0
    %874 = vmatpush1.bf16.msra.mxu0 0
    %875 = vmatprep.subr.bf16.mxu0 0
    %876 = vmatpush1.bf16.msra.mxu0 0
    %877 = vmatprep.subr.bf16.mxu0 0
    %878 = vmatpush1.bf16.msra.mxu0 0
    %879 = vmatprep.subr.bf16.mxu0 0
    %880 = vmatpush1.bf16.msra.mxu0 0
    %881 = vmatprep.subr.bf16.mxu0 0
    %882 = vmatpush1.bf16.msra.mxu0 0
    %883 = vmatprep.subr.bf16.mxu0 0
    %884 = vmatpush1.bf16.msra.mxu0 0
    %885 = vmatprep.subr.bf16.mxu0 0
    %886 = vmatpush1.bf16.msra.mxu0 0
    %887 = vmatprep.subr.bf16.mxu0 0
    %888 = vmatpush1.bf16.msra.mxu0 0
    %889 = vmatprep.subr.bf16.mxu0 0
    %890 = vmatpush1.bf16.msra.mxu0 0
    %891 = vmatprep.subr.bf16.mxu0 0
    %892 = vmatpush1.bf16.msra.mxu0 0
    %893 = vmatprep.subr.bf16.mxu0 0
    %894 = vmatpush1.bf16.msra.mxu0 0
    %895 = vmatprep.subr.bf16.mxu0 0
    %896 = vmatpush1.bf16.msra.mxu0 0
    %897 = vmatprep.mubr.bf16.mxu0 0
    %898 = vmatmul.mubr.bf16.gmra.mrb[0].mxu0 %v860
    %v899 = vpop.f32.mrb[0].mxu0
    %v900 = vadd.f32 0.0, %v899
    %v901 = vpop.f32.mrb[0].mxu0
    %v902 = vpop.f32.mrb[0].mxu0
    %v903 = vpop.f32.mrb[0].mxu0
    %904 = vdwg.mxu0
    %v905 = vpack.c.bf16 %v900, %v854
    %s906 = scalar_lea.vmem [#allocation8], 16
    %v907 = vld [vmem:[%s906] sm:$0xf]
    %v908 = vld [vmem:[%s906 + $0x4] sm:$0xf]
    %v909 = vld [vmem:[%s906 + $0x8] sm:$0xf]
    %v910 = vld [vmem:[%s906 + $0xc] sm:$0xf]
    %v915 = vunpack.c.l.b16 %v907
    %v916 = vunpack.c.l.b16 %v908
    %v917 = vunpack.c.l.b16 %v909
    %v918 = vunpack.c.l.b16 %v910
    %v919 = vpack.c.b16 %v916, %v915
    %v920 = vpack.c.b16 %v918, %v917
    %v924 = vsel %vm129, %v905, 0
    %926 = vmatprep.subr.bf16.mxu0 0
    %927 = vmatpush1.bf16.msra.mxu0 %v919
    %928 = vmatprep.subr.bf16.mxu0 0
    %929 = vmatpush1.bf16.msra.mxu0 %v920
    %930 = vmatprep.subr.bf16.mxu0 0
    %931 = vmatpush1.bf16.msra.mxu0 0
    %932 = vmatprep.subr.bf16.mxu0 0
    %933 = vmatpush1.bf16.msra.mxu0 0
    %934 = vmatprep.subr.bf16.mxu0 0
    %935 = vmatpush1.bf16.msra.mxu0 0
    %936 = vmatprep.subr.bf16.mxu0 0
    %937 = vmatpush1.bf16.msra.mxu0 0
    %938 = vmatprep.subr.bf16.mxu0 0
    %939 = vmatpush1.bf16.msra.mxu0 0
    %940 = vmatprep.subr.bf16.mxu0 0
    %941 = vmatpush1.bf16.msra.mxu0 0
    %942 = vmatprep.subr.bf16.mxu0 0
    %943 = vmatpush1.bf16.msra.mxu0 0
    %944 = vmatprep.subr.bf16.mxu0 0
    %945 = vmatpush1.bf16.msra.mxu0 0
    %946 = vmatprep.subr.bf16.mxu0 0
    %947 = vmatpush1.bf16.msra.mxu0 0
    %948 = vmatprep.subr.bf16.mxu0 0
    %949 = vmatpush1.bf16.msra.mxu0 0
    %950 = vmatprep.subr.bf16.mxu0 0
    %951 = vmatpush1.bf16.msra.mxu0 0
    %952 = vmatprep.subr.bf16.mxu0 0
    %953 = vmatpush1.bf16.msra.mxu0 0
    %954 = vmatprep.subr.bf16.mxu0 0
    %955 = vmatpush1.bf16.msra.mxu0 0
    %956 = vmatprep.subr.bf16.mxu0 0
    %957 = vmatpush1.bf16.msra.mxu0 0
    %958 = vmatprep.mubr.bf16.mxu0 0
    %959 = vmatmul.mubr.bf16.gmra.mrb[0].mxu0 %v924
    %v960 = vpop.f32.mrb[0].mxu0
    %v961 = vadd.f32 0.0, %v960
    %v962 = vpop.f32.mrb[0].mxu0
    %v963 = vpop.f32.mrb[0].mxu0
    %v964 = vadd.f32 0.0, %v963
    %v965 = vpop.f32.mrb[0].mxu0
    %966 = vdwg.mxu0
    %v971 = vunpack.c.l.b16 %v509
    %v972 = vunpack.c.l.b16 %v510
    %v973 = vunpack.c.l.b16 %v511
    %v974 = vunpack.c.l.b16 %v512
    %v975 = vpack.c.b16 %v972, %v971
    %v976 = vpack.c.b16 %v974, %v973
    %v980 = vsel %vm129, %v508, 0
    %982 = vmatprep.subr.bf16.mxu0 0
    %983 = vmatpush1.bf16.msra.mxu0 %v975
    %984 = vmatprep.subr.bf16.mxu0 0
    %985 = vmatpush1.bf16.msra.mxu0 %v976
    %986 = vmatprep.subr.bf16.mxu0 0
    %987 = vmatpush1.bf16.msra.mxu0 0
    %988 = vmatprep.subr.bf16.mxu0 0
    %989 = vmatpush1.bf16.msra.mxu0 0
    %990 = vmatprep.subr.bf16.mxu0 0
    %991 = vmatpush1.bf16.msra.mxu0 0
    %992 = vmatprep.subr.bf16.mxu0 0
    %993 = vmatpush1.bf16.msra.mxu0 0
    %994 = vmatprep.subr.bf16.mxu0 0
    %995 = vmatpush1.bf16.msra.mxu0 0
    %996 = vmatprep.subr.bf16.mxu0 0
    %997 = vmatpush1.bf16.msra.mxu0 0
    %998 = vmatprep.subr.bf16.mxu0 0
    %999 = vmatpush1.bf16.msra.mxu0 0
    %1000 = vmatprep.subr.bf16.mxu0 0
    %1001 = vmatpush1.bf16.msra.mxu0 0
    %1002 = vmatprep.subr.bf16.mxu0 0
    %1003 = vmatpush1.bf16.msra.mxu0 0
    %1004 = vmatprep.subr.bf16.mxu0 0
    %1005 = vmatpush1.bf16.msra.mxu0 0
    %1006 = vmatprep.subr.bf16.mxu0 0
    %1007 = vmatpush1.bf16.msra.mxu0 0
    %1008 = vmatprep.subr.bf16.mxu0 0
    %1009 = vmatpush1.bf16.msra.mxu0 0
    %1010 = vmatprep.subr.bf16.mxu0 0
    %1011 = vmatpush1.bf16.msra.mxu0 0
    %1012 = vmatprep.subr.bf16.mxu0 0
    %1013 = vmatpush1.bf16.msra.mxu0 0
    %1014 = vmatprep.mubr.bf16.mxu0 0
    %1015 = vmatmul.mubr.bf16.gmra.mrb[0].mxu0 %v980
    %v1016 = vpop.f32.mrb[0].mxu0
    %v1017 = vadd.f32 %v961, %v1016
    %v1018 = vpop.f32.mrb[0].mxu0
    %v1019 = vpop.f32.mrb[0].mxu0
    %v1020 = vadd.f32 %v964, %v1019
    %v1021 = vpop.f32.mrb[0].mxu0
    %1022 = vdwg.mxu0
    %s1023 = scalar_lea.vmem [#allocation2], 32
    %v1024 = vld [vmem:[%s1023] sm:$0xf]
    %v1025 = vld [vmem:[%s1023 + $0x4] sm:$0xf]
    %v1026 = vld [vmem:[%s1023 + $0x8] sm:$0xf]
    %v1027 = vld [vmem:[%s1023 + $0xc] sm:$0xf]
    %v1032 = vunpack.c.l.b16 %v1024
    %v1033 = vunpack.c.l.b16 %v1025
    %v1034 = vunpack.c.l.b16 %v1026
    %v1035 = vunpack.c.l.b16 %v1027
    %v1036 = vpack.c.b16 %v1033, %v1032
    %v1037 = vpack.c.b16 %v1035, %v1034
    %1040 = vmatprep.subr.bf16.mxu0 0
    %1041 = vmatpush1.bf16.msra.mxu0 %v1036
    %1042 = vmatprep.subr.bf16.mxu0 0
    %1043 = vmatpush1.bf16.msra.mxu0 %v1037
    %1044 = vmatprep.subr.bf16.mxu0 0
    %1045 = vmatpush1.bf16.msra.mxu0 0
    %1046 = vmatprep.subr.bf16.mxu0 0
    %1047 = vmatpush1.bf16.msra.mxu0 0
    %1048 = vmatprep.subr.bf16.mxu0 0
    %1049 = vmatpush1.bf16.msra.mxu0 0
    %1050 = vmatprep.subr.bf16.mxu0 0
    %1051 = vmatpush1.bf16.msra.mxu0 0
    %1052 = vmatprep.subr.bf16.mxu0 0
    %1053 = vmatpush1.bf16.msra.mxu0 0
    %1054 = vmatprep.subr.bf16.mxu0 0
    %1055 = vmatpush1.bf16.msra.mxu0 0
    %1056 = vmatprep.subr.bf16.mxu0 0
    %1057 = vmatpush1.bf16.msra.mxu0 0
    %1058 = vmatprep.subr.bf16.mxu0 0
    %1059 = vmatpush1.bf16.msra.mxu0 0
    %1060 = vmatprep.subr.bf16.mxu0 0
    %1061 = vmatpush1.bf16.msra.mxu0 0
    %1062 = vmatprep.subr.bf16.mxu0 0
    %1063 = vmatpush1.bf16.msra.mxu0 0
    %1064 = vmatprep.subr.bf16.mxu0 0
    %1065 = vmatpush1.bf16.msra.mxu0 0
    %1066 = vmatprep.subr.bf16.mxu0 0
    %1067 = vmatpush1.bf16.msra.mxu0 0
    %1068 = vmatprep.subr.bf16.mxu0 0
    %1069 = vmatpush1.bf16.msra.mxu0 0
    %1070 = vmatprep.subr.bf16.mxu0 0
    %1071 = vmatpush1.bf16.msra.mxu0 0
    %1072 = vmatprep.mubr.bf16.mxu0 0
    %1073 = vmatmul.mubr.bf16.gmra.mrb[0].mxu0 %v131
    %v1074 = vpop.f32.mrb[0].mxu0
    %v1075 = vadd.f32 0.0, %v1074
    %v1076 = vpop.f32.mrb[0].mxu0
    %v1077 = vpop.f32.mrb[0].mxu0
    %v1078 = vadd.f32 0.0, %v1077
    %v1079 = vpop.f32.mrb[0].mxu0
    %1080 = vdwg.mxu0
    %s1081 = scalar_lea.vmem [#allocation5], 32
    %v1082 = vld [vmem:[%s1081] sm:$0xf]
    %v1083 = vld [vmem:[%s1081 + $0x4] sm:$0xf]
    %v1084 = vld [vmem:[%s1081 + $0x8] sm:$0xf]
    %v1085 = vld [vmem:[%s1081 + $0xc] sm:$0xf]
    %v1090 = vunpack.c.l.b16 %v1082
    %v1091 = vunpack.c.l.b16 %v1083
    %v1092 = vunpack.c.l.b16 %v1084
    %v1093 = vunpack.c.l.b16 %v1085
    %v1094 = vpack.c.b16 %v1091, %v1090
    %v1095 = vpack.c.b16 %v1093, %v1092
    %1098 = vmatprep.subr.bf16.mxu0 0
    %1099 = vmatpush1.bf16.msra.mxu0 %v1094
    %1100 = vmatprep.subr.bf16.mxu0 0
    %1101 = vmatpush1.bf16.msra.mxu0 %v1095
    %1102 = vmatprep.subr.bf16.mxu0 0
    %1103 = vmatpush1.bf16.msra.mxu0 0
    %1104 = vmatprep.subr.bf16.mxu0 0
    %1105 = vmatpush1.bf16.msra.mxu0 0
    %1106 = vmatprep.subr.bf16.mxu0 0
    %1107 = vmatpush1.bf16.msra.mxu0 0
    %1108 = vmatprep.subr.bf16.mxu0 0
    %1109 = vmatpush1.bf16.msra.mxu0 0
    %1110 = vmatprep.subr.bf16.mxu0 0
    %1111 = vmatpush1.bf16.msra.mxu0 0
    %1112 = vmatprep.subr.bf16.mxu0 0
    %1113 = vmatpush1.bf16.msra.mxu0 0
    %1114 = vmatprep.subr.bf16.mxu0 0
    %1115 = vmatpush1.bf16.msra.mxu0 0
    %1116 = vmatprep.subr.bf16.mxu0 0
    %1117 = vmatpush1.bf16.msra.mxu0 0
    %1118 = vmatprep.subr.bf16.mxu0 0
    %1119 = vmatpush1.bf16.msra.mxu0 0
    %1120 = vmatprep.subr.bf16.mxu0 0
    %1121 = vmatpush1.bf16.msra.mxu0 0
    %1122 = vmatprep.subr.bf16.mxu0 0
    %1123 = vmatpush1.bf16.msra.mxu0 0
    %1124 = vmatprep.subr.bf16.mxu0 0
    %1125 = vmatpush1.bf16.msra.mxu0 0
    %1126 = vmatprep.subr.bf16.mxu0 0
    %1127 = vmatpush1.bf16.msra.mxu0 0
    %1128 = vmatprep.subr.bf16.mxu0 0
    %1129 = vmatpush1.bf16.msra.mxu0 0
    %1130 = vmatprep.mubr.bf16.mxu0 0
    %1131 = vmatmul.mubr.bf16.gmra.mrb[0].mxu0 %v131
    %v1132 = vpop.f32.mrb[0].mxu0
    %v1133 = vadd.f32 0.0, %v1132
    %v1134 = vpop.f32.mrb[0].mxu0
    %v1135 = vpop.f32.mrb[0].mxu0
    %v1136 = vadd.f32 0.0, %v1135
    %v1137 = vpop.f32.mrb[0].mxu0
    %1138 = vdwg.mxu0
    %s1139 = scalar_lea.vmem [#allocation7], 32
    %v1140 = vld [vmem:[%s1139] sm:$0xf]
    %v1141 = vld [vmem:[%s1139 + $0x4] sm:$0xf]
    %v1142 = vld [vmem:[%s1139 + $0x8] sm:$0xf]
    %v1143 = vld [vmem:[%s1139 + $0xc] sm:$0xf]
    %v1148 = vunpack.c.l.b16 %v1140
    %v1149 = vunpack.c.l.b16 %v1141
    %v1150 = vunpack.c.l.b16 %v1142
    %v1151 = vunpack.c.l.b16 %v1143
    %v1152 = vpack.c.b16 %v1149, %v1148
    %v1153 = vpack.c.b16 %v1151, %v1150
    %1156 = vmatprep.subr.bf16.mxu0 0
    %1157 = vmatpush1.bf16.msra.mxu0 %v1152
    %1158 = vmatprep.subr.bf16.mxu0 0
    %1159 = vmatpush1.bf16.msra.mxu0 %v1153
    %1160 = vmatprep.subr.bf16.mxu0 0
    %1161 = vmatpush1.bf16.msra.mxu0 0
    %1162 = vmatprep.subr.bf16.mxu0 0
    %1163 = vmatpush1.bf16.msra.mxu0 0
    %1164 = vmatprep.subr.bf16.mxu0 0
    %1165 = vmatpush1.bf16.msra.mxu0 0
    %1166 = vmatprep.subr.bf16.mxu0 0
    %1167 = vmatpush1.bf16.msra.mxu0 0
    %1168 = vmatprep.subr.bf16.mxu0 0
    %1169 = vmatpush1.bf16.msra.mxu0 0
    %1170 = vmatprep.subr.bf16.mxu0 0
    %1171 = vmatpush1.bf16.msra.mxu0 0
    %1172 = vmatprep.subr.bf16.mxu0 0
    %1173 = vmatpush1.bf16.msra.mxu0 0
    %1174 = vmatprep.subr.bf16.mxu0 0
    %1175 = vmatpush1.bf16.msra.mxu0 0
    %1176 = vmatprep.subr.bf16.mxu0 0
    %1177 = vmatpush1.bf16.msra.mxu0 0
    %1178 = vmatprep.subr.bf16.mxu0 0
    %1179 = vmatpush1.bf16.msra.mxu0 0
    %1180 = vmatprep.subr.bf16.mxu0 0
    %1181 = vmatpush1.bf16.msra.mxu0 0
    %1182 = vmatprep.subr.bf16.mxu0 0
    %1183 = vmatpush1.bf16.msra.mxu0 0
    %1184 = vmatprep.subr.bf16.mxu0 0
    %1185 = vmatpush1.bf16.msra.mxu0 0
    %1186 = vmatprep.subr.bf16.mxu0 0
    %1187 = vmatpush1.bf16.msra.mxu0 0
    %1188 = vmatprep.mubr.bf16.mxu0 0
    %1189 = vmatmul.mubr.bf16.gmra.mrb[0].mxu0 %v131
    %v1190 = vpop.f32.mrb[0].mxu0
    %v1191 = vadd.f32 0.0, %v1190
    %v1192 = vpop.f32.mrb[0].mxu0
    %v1193 = vpop.f32.mrb[0].mxu0
    %v1194 = vadd.f32 0.0, %v1193
    %v1195 = vpop.f32.mrb[0].mxu0
    %1196 = vdwg.mxu0
    %v1197 = vpack.c.bf16 %v1075, %v1075
    %v1198 = vpack.c.bf16 %v1078, %v1078
    %v1199 = vpack.c.bf16 %v1133, %v1133
    %v1200 = vpack.c.bf16 %v1136, %v1136
    %v1201 = vpack.c.bf16 %v1191, %v1191
    %v1202 = vpack.c.bf16 %v1194, %v1194
    %v1204 = vsel %vm129, %v1197, 0
    %v1207 = vsel %vm129, %v1199, 0
    %1209 = vmatprep.subr.bf16.mxu0 0
    %1210 = vmatpush1.bf16.xpose.msra.mxu0 %v1207
    %1211 = vmatprep.subr.bf16.mxu0 0
    %1212 = vmatpush1.bf16.xpose.msra.mxu0 0
    %1213 = vmatprep.subr.bf16.mxu0 0
    %1214 = vmatpush1.bf16.xpose.msra.mxu0 0
    %1215 = vmatprep.subr.bf16.mxu0 0
    %1216 = vmatpush1.bf16.xpose.msra.mxu0 0
    %1217 = vmatprep.subr.bf16.mxu0 0
    %1218 = vmatpush1.bf16.xpose.msra.mxu0 0
    %1219 = vmatprep.subr.bf16.mxu0 0
    %1220 = vmatpush1.bf16.xpose.msra.mxu0 0
    %1221 = vmatprep.subr.bf16.mxu0 0
    %1222 = vmatpush1.bf16.xpose.msra.mxu0 0
    %1223 = vmatprep.subr.bf16.mxu0 0
    %1224 = vmatpush1.bf16.xpose.msra.mxu0 0
    %1225 = vmatprep.subr.bf16.mxu0 0
    %1226 = vmatpush1.bf16.xpose.msra.mxu0 0
    %1227 = vmatprep.subr.bf16.mxu0 0
    %1228 = vmatpush1.bf16.xpose.msra.mxu0 0
    %1229 = vmatprep.subr.bf16.mxu0 0
    %1230 = vmatpush1.bf16.xpose.msra.mxu0 0
    %1231 = vmatprep.subr.bf16.mxu0 0
    %1232 = vmatpush1.bf16.xpose.msra.mxu0 0
    %1233 = vmatprep.subr.bf16.mxu0 0
    %1234 = vmatpush1.bf16.xpose.msra.mxu0 0
    %1235 = vmatprep.subr.bf16.mxu0 0
    %1236 = vmatpush1.bf16.xpose.msra.mxu0 0
    %1237 = vmatprep.subr.bf16.mxu0 0
    %1238 = vmatpush1.bf16.xpose.msra.mxu0 0
    %1239 = vmatprep.subr.bf16.mxu0 0
    %1240 = vmatpush1.bf16.xpose.msra.mxu0 0
    %1241 = vmatprep.mubr.bf16.mxu0 0
    %1242 = vmatmul.mubr.bf16.gmra.mrb[0].mxu0 %v1204
    %v1243 = vpop.f32.mrb[0].mxu0
    %v1244 = vadd.f32 0.0, %v1243
    %v1245 = vpop.f32.mrb[0].mxu0
    %v1246 = vpop.f32.mrb[0].mxu0
    %v1247 = vpop.f32.mrb[0].mxu0
    %1248 = vdwg.mxu0
    %v1250 = vsel %vm129, %v1198, 0
    %v1253 = vsel %vm129, %v1200, 0
    %1255 = vmatprep.subr.bf16.mxu0 0
    %1256 = vmatpush1.bf16.xpose.msra.mxu0 %v1253
    %1257 = vmatprep.subr.bf16.mxu0 0
    %1258 = vmatpush1.bf16.xpose.msra.mxu0 0
    %1259 = vmatprep.subr.bf16.mxu0 0
    %1260 = vmatpush1.bf16.xpose.msra.mxu0 0
    %1261 = vmatprep.subr.bf16.mxu0 0
    %1262 = vmatpush1.bf16.xpose.msra.mxu0 0
    %1263 = vmatprep.subr.bf16.mxu0 0
    %1264 = vmatpush1.bf16.xpose.msra.mxu0 0
    %1265 = vmatprep.subr.bf16.mxu0 0
    %1266 = vmatpush1.bf16.xpose.msra.mxu0 0
    %1267 = vmatprep.subr.bf16.mxu0 0
    %1268 = vmatpush1.bf16.xpose.msra.mxu0 0
    %1269 = vmatprep.subr.bf16.mxu0 0
    %1270 = vmatpush1.bf16.xpose.msra.mxu0 0
    %1271 = vmatprep.subr.bf16.mxu0 0
    %1272 = vmatpush1.bf16.xpose.msra.mxu0 0
    %1273 = vmatprep.subr.bf16.mxu0 0
    %1274 = vmatpush1.bf16.xpose.msra.mxu0 0
    %1275 = vmatprep.subr.bf16.mxu0 0
    %1276 = vmatpush1.bf16.xpose.msra.mxu0 0
    %1277 = vmatprep.subr.bf16.mxu0 0
    %1278 = vmatpush1.bf16.xpose.msra.mxu0 0
    %1279 = vmatprep.subr.bf16.mxu0 0
    %1280 = vmatpush1.bf16.xpose.msra.mxu0 0
    %1281 = vmatprep.subr.bf16.mxu0 0
    %1282 = vmatpush1.bf16.xpose.msra.mxu0 0
    %1283 = vmatprep.subr.bf16.mxu0 0
    %1284 = vmatpush1.bf16.xpose.msra.mxu0 0
    %1285 = vmatprep.subr.bf16.mxu0 0
    %1286 = vmatpush1.bf16.xpose.msra.mxu0 0
    %1287 = vmatprep.mubr.bf16.mxu0 0
    %1288 = vmatmul.mubr.bf16.gmra.mrb[0].mxu0 %v1250
    %v1289 = vpop.f32.mrb[0].mxu0
    %v1290 = vadd.f32 0.0, %v1289
    %v1291 = vpop.f32.mrb[0].mxu0
    %v1292 = vpop.f32.mrb[0].mxu0
    %v1293 = vpop.f32.mrb[0].mxu0
    %1294 = vdwg.mxu0
    %v1295 = vmul.f32 %v1244, 0.17677669
    %v1296 = vmul.f32 %v1290, 0.17677669
    %v1297 = vadd.f32 %v1295, %v112
    %v1298 = vadd.f32 %v1296, %v112
    %v1299 = vsel %vm390, %v1297, -inf
    %1300 = vmax.xlane.f32.xlu0 %v1299
    %v1301 = vpop.xlane.xlu0 %1300
    %v1302 = vsel %vm390, %v1298, -inf
    %1303 = vmax.xlane.f32.xlu0 %v1302
    %v1304 = vpop.xlane.xlu0 %1303
    %v1305 = vsub.f32 %v1297, %v1301
    %v1306 = vsub.f32 %v1298, %v1304
    %v1307 = vmul.f32 %v1305, 1.442695
    %v1308 = vpow.pop %v1307
    %v1309 = vmul.f32 %v1306, 1.442695
    %v1310 = vpow.pop %v1309
    %v1311 = vsel %vm390, %v1308, 0.0
    %1312 = vadd.xlane.f32.xlu0 %v1311
    %v1313 = vpop.xlane.xlu0 %1312
    %v1314 = vsel %vm390, %v1310, 0.0
    %1315 = vadd.xlane.f32.xlu0 %v1314
    %v1316 = vpop.xlane.xlu0 %1315
    %v1317 = vrcp.pop %v1313
    %v1318 = vrcp.pop %v1316
    %v1319 = vmul.f32 %v1308, %v1317
    %v1320 = vmul.f32 %v1310, %v1318
    %v1321 = vpack.c.bf16 %v1319, %v1319
    %v1322 = vpack.c.bf16 %v1320, %v1320
    %v1324 = vsel %vm390, %v1321, 0
    %v1327 = vsel %vm418, %v1201, 0
    %1329 = vmatprep.subr.bf16.mxu0 0
    %1330 = vmatpush1.bf16.msra.mxu0 %v1327
    %1331 = vmatprep.subr.bf16.mxu0 0
    %1332 = vmatpush1.bf16.msra.mxu0 0
    %1333 = vmatprep.subr.bf16.mxu0 0
    %1334 = vmatpush1.bf16.msra.mxu0 0
    %1335 = vmatprep.subr.bf16.mxu0 0
    %1336 = vmatpush1.bf16.msra.mxu0 0
    %1337 = vmatprep.subr.bf16.mxu0 0
    %1338 = vmatpush1.bf16.msra.mxu0 0
    %1339 = vmatprep.subr.bf16.mxu0 0
    %1340 = vmatpush1.bf16.msra.mxu0 0
    %1341 = vmatprep.subr.bf16.mxu0 0
    %1342 = vmatpush1.bf16.msra.mxu0 0
    %1343 = vmatprep.subr.bf16.mxu0 0
    %1344 = vmatpush1.bf16.msra.mxu0 0
    %1345 = vmatprep.subr.bf16.mxu0 0
    %1346 = vmatpush1.bf16.msra.mxu0 0
    %1347 = vmatprep.subr.bf16.mxu0 0
    %1348 = vmatpush1.bf16.msra.mxu0 0
    %1349 = vmatprep.subr.bf16.mxu0 0
    %1350 = vmatpush1.bf16.msra.mxu0 0
    %1351 = vmatprep.subr.bf16.mxu0 0
    %1352 = vmatpush1.bf16.msra.mxu0 0
    %1353 = vmatprep.subr.bf16.mxu0 0
    %1354 = vmatpush1.bf16.msra.mxu0 0
    %1355 = vmatprep.subr.bf16.mxu0 0
    %1356 = vmatpush1.bf16.msra.mxu0 0
    %1357 = vmatprep.subr.bf16.mxu0 0
    %1358 = vmatpush1.bf16.msra.mxu0 0
    %1359 = vmatprep.subr.bf16.mxu0 0
    %1360 = vmatpush1.bf16.msra.mxu0 0
    %1361 = vmatprep.mubr.bf16.mxu0 0
    %1362 = vmatmul.mubr.bf16.gmra.mrb[0].mxu0 %v1324
    %v1363 = vpop.f32.mrb[0].mxu0
    %v1364 = vadd.f32 0.0, %v1363
    %v1365 = vpop.f32.mrb[0].mxu0
    %v1366 = vpop.f32.mrb[0].mxu0
    %v1367 = vpop.f32.mrb[0].mxu0
    %1368 = vdwg.mxu0
    %v1370 = vsel %vm390, %v1322, 0
    %v1373 = vsel %vm418, %v1202, 0
    %1375 = vmatprep.subr.bf16.mxu0 0
    %1376 = vmatpush1.bf16.msra.mxu0 %v1373
    %1377 = vmatprep.subr.bf16.mxu0 0
    %1378 = vmatpush1.bf16.msra.mxu0 0
    %1379 = vmatprep.subr.bf16.mxu0 0
    %1380 = vmatpush1.bf16.msra.mxu0 0
    %1381 = vmatprep.subr.bf16.mxu0 0
    %1382 = vmatpush1.bf16.msra.mxu0 0
    %1383 = vmatprep.subr.bf16.mxu0 0
    %1384 = vmatpush1.bf16.msra.mxu0 0
    %1385 = vmatprep.subr.bf16.mxu0 0
    %1386 = vmatpush1.bf16.msra.mxu0 0
    %1387 = vmatprep.subr.bf16.mxu0 0
    %1388 = vmatpush1.bf16.msra.mxu0 0
    %1389 = vmatprep.subr.bf16.mxu0 0
    %1390 = vmatpush1.bf16.msra.mxu0 0
    %1391 = vmatprep.subr.bf16.mxu0 0
    %1392 = vmatpush1.bf16.msra.mxu0 0
    %1393 = vmatprep.subr.bf16.mxu0 0
    %1394 = vmatpush1.bf16.msra.mxu0 0
    %1395 = vmatprep.subr.bf16.mxu0 0
    %1396 = vmatpush1.bf16.msra.mxu0 0
    %1397 = vmatprep.subr.bf16.mxu0 0
    %1398 = vmatpush1.bf16.msra.mxu0 0
    %1399 = vmatprep.subr.bf16.mxu0 0
    %1400 = vmatpush1.bf16.msra.mxu0 0
    %1401 = vmatprep.subr.bf16.mxu0 0
    %1402 = vmatpush1.bf16.msra.mxu0 0
    %1403 = vmatprep.subr.bf16.mxu0 0
    %1404 = vmatpush1.bf16.msra.mxu0 0
    %1405 = vmatprep.subr.bf16.mxu0 0
    %1406 = vmatpush1.bf16.msra.mxu0 0
    %1407 = vmatprep.mubr.bf16.mxu0 0
    %1408 = vmatmul.mubr.bf16.gmra.mrb[0].mxu0 %v1370
    %v1409 = vpop.f32.mrb[0].mxu0
    %v1410 = vadd.f32 0.0, %v1409
    %v1411 = vpop.f32.mrb[0].mxu0
    %v1412 = vpop.f32.mrb[0].mxu0
    %v1413 = vpop.f32.mrb[0].mxu0
    %1414 = vdwg.mxu0
    %v1415 = vpack.c.bf16 %v1410, %v1364
    %s1416 = scalar_lea.vmem [#allocation8], 32
    %v1417 = vld [vmem:[%s1416] sm:$0xf]
    %v1418 = vld [vmem:[%s1416 + $0x4] sm:$0xf]
    %v1419 = vld [vmem:[%s1416 + $0x8] sm:$0xf]
    %v1420 = vld [vmem:[%s1416 + $0xc] sm:$0xf]
    %v1425 = vunpack.c.l.b16 %v1417
    %v1426 = vunpack.c.l.b16 %v1418
    %v1427 = vunpack.c.l.b16 %v1419
    %v1428 = vunpack.c.l.b16 %v1420
    %v1429 = vpack.c.b16 %v1426, %v1425
    %v1430 = vpack.c.b16 %v1428, %v1427
    %v1434 = vsel %vm129, %v1415, 0
    %1436 = vmatprep.subr.bf16.mxu0 0
    %1437 = vmatpush1.bf16.msra.mxu0 %v1429
    %1438 = vmatprep.subr.bf16.mxu0 0
    %1439 = vmatpush1.bf16.msra.mxu0 %v1430
    %1440 = vmatprep.subr.bf16.mxu0 0
    %1441 = vmatpush1.bf16.msra.mxu0 0
    %1442 = vmatprep.subr.bf16.mxu0 0
    %1443 = vmatpush1.bf16.msra.mxu0 0
    %1444 = vmatprep.subr.bf16.mxu0 0
    %1445 = vmatpush1.bf16.msra.mxu0 0
    %1446 = vmatprep.subr.bf16.mxu0 0
    %1447 = vmatpush1.bf16.msra.mxu0 0
    %1448 = vmatprep.subr.bf16.mxu0 0
    %1449 = vmatpush1.bf16.msra.mxu0 0
    %1450 = vmatprep.subr.bf16.mxu0 0
    %1451 = vmatpush1.bf16.msra.mxu0 0
    %1452 = vmatprep.subr.bf16.mxu0 0
    %1453 = vmatpush1.bf16.msra.mxu0 0
    %1454 = vmatprep.subr.bf16.mxu0 0
    %1455 = vmatpush1.bf16.msra.mxu0 0
    %1456 = vmatprep.subr.bf16.mxu0 0
    %1457 = vmatpush1.bf16.msra.mxu0 0
    %1458 = vmatprep.subr.bf16.mxu0 0
    %1459 = vmatpush1.bf16.msra.mxu0 0
    %1460 = vmatprep.subr.bf16.mxu0 0
    %1461 = vmatpush1.bf16.msra.mxu0 0
    %1462 = vmatprep.subr.bf16.mxu0 0
    %1463 = vmatpush1.bf16.msra.mxu0 0
    %1464 = vmatprep.subr.bf16.mxu0 0
    %1465 = vmatpush1.bf16.msra.mxu0 0
    %1466 = vmatprep.subr.bf16.mxu0 0
    %1467 = vmatpush1.bf16.msra.mxu0 0
    %1468 = vmatprep.mubr.bf16.mxu0 0
    %1469 = vmatmul.mubr.bf16.gmra.mrb[0].mxu0 %v1434
    %v1470 = vpop.f32.mrb[0].mxu0
    %v1471 = vadd.f32 0.0, %v1470
    %v1472 = vpop.f32.mrb[0].mxu0
    %v1473 = vpop.f32.mrb[0].mxu0
    %v1474 = vadd.f32 0.0, %v1473
    %v1475 = vpop.f32.mrb[0].mxu0
    %1476 = vdwg.mxu0
    %v1477 = vadd.f32 %v1017, %v1471
    %v1478 = vadd.f32 %v1020, %v1474
    %s1479 = scalar_lea.vmem [#allocation2], 48
    %v1480 = vld [vmem:[%s1479] sm:$0xf]
    %v1481 = vld [vmem:[%s1479 + $0x4] sm:$0xf]
    %v1482 = vld [vmem:[%s1479 + $0x8] sm:$0xf]
    %v1483 = vld [vmem:[%s1479 + $0xc] sm:$0xf]
    %v1488 = vunpack.c.l.b16 %v1480
    %v1489 = vunpack.c.l.b16 %v1481
    %v1490 = vunpack.c.l.b16 %v1482
    %v1491 = vunpack.c.l.b16 %v1483
    %v1492 = vpack.c.b16 %v1489, %v1488
    %v1493 = vpack.c.b16 %v1491, %v1490
    %1496 = vmatprep.subr.bf16.mxu0 0
    %1497 = vmatpush1.bf16.msra.mxu0 %v1492
    %1498 = vmatprep.subr.bf16.mxu0 0
    %1499 = vmatpush1.bf16.msra.mxu0 %v1493
    %1500 = vmatprep.subr.bf16.mxu0 0
    %1501 = vmatpush1.bf16.msra.mxu0 0
    %1502 = vmatprep.subr.bf16.mxu0 0
    %1503 = vmatpush1.bf16.msra.mxu0 0
    %1504 = vmatprep.subr.bf16.mxu0 0
    %1505 = vmatpush1.bf16.msra.mxu0 0
    %1506 = vmatprep.subr.bf16.mxu0 0
    %1507 = vmatpush1.bf16.msra.mxu0 0
    %1508 = vmatprep.subr.bf16.mxu0 0
    %1509 = vmatpush1.bf16.msra.mxu0 0
    %1510 = vmatprep.subr.bf16.mxu0 0
    %1511 = vmatpush1.bf16.msra.mxu0 0
    %1512 = vmatprep.subr.bf16.mxu0 0
    %1513 = vmatpush1.bf16.msra.mxu0 0
    %1514 = vmatprep.subr.bf16.mxu0 0
    %1515 = vmatpush1.bf16.msra.mxu0 0
    %1516 = vmatprep.subr.bf16.mxu0 0
    %1517 = vmatpush1.bf16.msra.mxu0 0
    %1518 = vmatprep.subr.bf16.mxu0 0
    %1519 = vmatpush1.bf16.msra.mxu0 0
    %1520 = vmatprep.subr.bf16.mxu0 0
    %1521 = vmatpush1.bf16.msra.mxu0 0
    %1522 = vmatprep.subr.bf16.mxu0 0
    %1523 = vmatpush1.bf16.msra.mxu0 0
    %1524 = vmatprep.subr.bf16.mxu0 0
    %1525 = vmatpush1.bf16.msra.mxu0 0
    %1526 = vmatprep.subr.bf16.mxu0 0
    %1527 = vmatpush1.bf16.msra.mxu0 0
    %1528 = vmatprep.mubr.bf16.mxu0 0
    %1529 = vmatmul.mubr.bf16.gmra.mrb[0].mxu0 %v131
    %v1530 = vpop.f32.mrb[0].mxu0
    %v1531 = vadd.f32 0.0, %v1530
    %v1532 = vpop.f32.mrb[0].mxu0
    %v1533 = vpop.f32.mrb[0].mxu0
    %v1534 = vadd.f32 0.0, %v1533
    %v1535 = vpop.f32.mrb[0].mxu0
    %1536 = vdwg.mxu0
    %s1537 = scalar_lea.vmem [#allocation5], 48
    %v1538 = vld [vmem:[%s1537] sm:$0xf]
    %v1539 = vld [vmem:[%s1537 + $0x4] sm:$0xf]
    %v1540 = vld [vmem:[%s1537 + $0x8] sm:$0xf]
    %v1541 = vld [vmem:[%s1537 + $0xc] sm:$0xf]
    %v1546 = vunpack.c.l.b16 %v1538
    %v1547 = vunpack.c.l.b16 %v1539
    %v1548 = vunpack.c.l.b16 %v1540
    %v1549 = vunpack.c.l.b16 %v1541
    %v1550 = vpack.c.b16 %v1547, %v1546
    %v1551 = vpack.c.b16 %v1549, %v1548
    %1554 = vmatprep.subr.bf16.mxu0 0
    %1555 = vmatpush1.bf16.msra.mxu0 %v1550
    %1556 = vmatprep.subr.bf16.mxu0 0
    %1557 = vmatpush1.bf16.msra.mxu0 %v1551
    %1558 = vmatprep.subr.bf16.mxu0 0
    %1559 = vmatpush1.bf16.msra.mxu0 0
    %1560 = vmatprep.subr.bf16.mxu0 0
    %1561 = vmatpush1.bf16.msra.mxu0 0
    %1562 = vmatprep.subr.bf16.mxu0 0
    %1563 = vmatpush1.bf16.msra.mxu0 0
    %1564 = vmatprep.subr.bf16.mxu0 0
    %1565 = vmatpush1.bf16.msra.mxu0 0
    %1566 = vmatprep.subr.bf16.mxu0 0
    %1567 = vmatpush1.bf16.msra.mxu0 0
    %1568 = vmatprep.subr.bf16.mxu0 0
    %1569 = vmatpush1.bf16.msra.mxu0 0
    %1570 = vmatprep.subr.bf16.mxu0 0
    %1571 = vmatpush1.bf16.msra.mxu0 0
    %1572 = vmatprep.subr.bf16.mxu0 0
    %1573 = vmatpush1.bf16.msra.mxu0 0
    %1574 = vmatprep.subr.bf16.mxu0 0
    %1575 = vmatpush1.bf16.msra.mxu0 0
    %1576 = vmatprep.subr.bf16.mxu0 0
    %1577 = vmatpush1.bf16.msra.mxu0 0
    %1578 = vmatprep.subr.bf16.mxu0 0
    %1579 = vmatpush1.bf16.msra.mxu0 0
    %1580 = vmatprep.subr.bf16.mxu0 0
    %1581 = vmatpush1.bf16.msra.mxu0 0
    %1582 = vmatprep.subr.bf16.mxu0 0
    %1583 = vmatpush1.bf16.msra.mxu0 0
    %1584 = vmatprep.subr.bf16.mxu0 0
    %1585 = vmatpush1.bf16.msra.mxu0 0
    %1586 = vmatprep.mubr.bf16.mxu0 0
    %1587 = vmatmul.mubr.bf16.gmra.mrb[0].mxu0 %v131
    %v1588 = vpop.f32.mrb[0].mxu0
    %v1589 = vadd.f32 0.0, %v1588
    %v1590 = vpop.f32.mrb[0].mxu0
    %v1591 = vpop.f32.mrb[0].mxu0
    %v1592 = vadd.f32 0.0, %v1591
    %v1593 = vpop.f32.mrb[0].mxu0
    %1594 = vdwg.mxu0
    %s1595 = scalar_lea.vmem [#allocation7], 48
    %v1596 = vld [vmem:[%s1595] sm:$0xf]
    %v1597 = vld [vmem:[%s1595 + $0x4] sm:$0xf]
    %v1598 = vld [vmem:[%s1595 + $0x8] sm:$0xf]
    %v1599 = vld [vmem:[%s1595 + $0xc] sm:$0xf]
    %v1604 = vunpack.c.l.b16 %v1596
    %v1605 = vunpack.c.l.b16 %v1597
    %v1606 = vunpack.c.l.b16 %v1598
    %v1607 = vunpack.c.l.b16 %v1599
    %v1608 = vpack.c.b16 %v1605, %v1604
    %v1609 = vpack.c.b16 %v1607, %v1606
    %1612 = vmatprep.subr.bf16.mxu0 0
    %1613 = vmatpush1.bf16.msra.mxu0 %v1608
    %1614 = vmatprep.subr.bf16.mxu0 0
    %1615 = vmatpush1.bf16.msra.mxu0 %v1609
    %1616 = vmatprep.subr.bf16.mxu0 0
    %1617 = vmatpush1.bf16.msra.mxu0 0
    %1618 = vmatprep.subr.bf16.mxu0 0
    %1619 = vmatpush1.bf16.msra.mxu0 0
    %1620 = vmatprep.subr.bf16.mxu0 0
    %1621 = vmatpush1.bf16.msra.mxu0 0
    %1622 = vmatprep.subr.bf16.mxu0 0
    %1623 = vmatpush1.bf16.msra.mxu0 0
    %1624 = vmatprep.subr.bf16.mxu0 0
    %1625 = vmatpush1.bf16.msra.mxu0 0
    %1626 = vmatprep.subr.bf16.mxu0 0
    %1627 = vmatpush1.bf16.msra.mxu0 0
    %1628 = vmatprep.subr.bf16.mxu0 0
    %1629 = vmatpush1.bf16.msra.mxu0 0
    %1630 = vmatprep.subr.bf16.mxu0 0
    %1631 = vmatpush1.bf16.msra.mxu0 0
    %1632 = vmatprep.subr.bf16.mxu0 0
    %1633 = vmatpush1.bf16.msra.mxu0 0
    %1634 = vmatprep.subr.bf16.mxu0 0
    %1635 = vmatpush1.bf16.msra.mxu0 0
    %1636 = vmatprep.subr.bf16.mxu0 0
    %1637 = vmatpush1.bf16.msra.mxu0 0
    %1638 = vmatprep.subr.bf16.mxu0 0
    %1639 = vmatpush1.bf16.msra.mxu0 0
    %1640 = vmatprep.subr.bf16.mxu0 0
    %1641 = vmatpush1.bf16.msra.mxu0 0
    %1642 = vmatprep.subr.bf16.mxu0 0
    %1643 = vmatpush1.bf16.msra.mxu0 0
    %1644 = vmatprep.mubr.bf16.mxu0 0
    %1645 = vmatmul.mubr.bf16.gmra.mrb[0].mxu0 %v131
    %v1646 = vpop.f32.mrb[0].mxu0
    %v1647 = vadd.f32 0.0, %v1646
    %v1648 = vpop.f32.mrb[0].mxu0
    %v1649 = vpop.f32.mrb[0].mxu0
    %v1650 = vadd.f32 0.0, %v1649
    %v1651 = vpop.f32.mrb[0].mxu0
    %1652 = vdwg.mxu0
    %v1653 = vpack.c.bf16 %v1531, %v1531
    %v1654 = vpack.c.bf16 %v1534, %v1534
    %v1655 = vpack.c.bf16 %v1589, %v1589
    %v1656 = vpack.c.bf16 %v1592, %v1592
    %v1657 = vpack.c.bf16 %v1647, %v1647
    %v1658 = vpack.c.bf16 %v1650, %v1650
    %v1660 = vsel %vm129, %v1653, 0
    %v1663 = vsel %vm129, %v1655, 0
    %1665 = vmatprep.subr.bf16.mxu0 0
    %1666 = vmatpush1.bf16.xpose.msra.mxu0 %v1663
    %1667 = vmatprep.subr.bf16.mxu0 0
    %1668 = vmatpush1.bf16.xpose.msra.mxu0 0
    %1669 = vmatprep.subr.bf16.mxu0 0
    %1670 = vmatpush1.bf16.xpose.msra.mxu0 0
    %1671 = vmatprep.subr.bf16.mxu0 0
    %1672 = vmatpush1.bf16.xpose.msra.mxu0 0
    %1673 = vmatprep.subr.bf16.mxu0 0
    %1674 = vmatpush1.bf16.xpose.msra.mxu0 0
    %1675 = vmatprep.subr.bf16.mxu0 0
    %1676 = vmatpush1.bf16.xpose.msra.mxu0 0
    %1677 = vmatprep.subr.bf16.mxu0 0
    %1678 = vmatpush1.bf16.xpose.msra.mxu0 0
    %1679 = vmatprep.subr.bf16.mxu0 0
    %1680 = vmatpush1.bf16.xpose.msra.mxu0 0
    %1681 = vmatprep.subr.bf16.mxu0 0
    %1682 = vmatpush1.bf16.xpose.msra.mxu0 0
    %1683 = vmatprep.subr.bf16.mxu0 0
    %1684 = vmatpush1.bf16.xpose.msra.mxu0 0
    %1685 = vmatprep.subr.bf16.mxu0 0
    %1686 = vmatpush1.bf16.xpose.msra.mxu0 0
    %1687 = vmatprep.subr.bf16.mxu0 0
    %1688 = vmatpush1.bf16.xpose.msra.mxu0 0
    %1689 = vmatprep.subr.bf16.mxu0 0
    %1690 = vmatpush1.bf16.xpose.msra.mxu0 0
    %1691 = vmatprep.subr.bf16.mxu0 0
    %1692 = vmatpush1.bf16.xpose.msra.mxu0 0
    %1693 = vmatprep.subr.bf16.mxu0 0
    %1694 = vmatpush1.bf16.xpose.msra.mxu0 0
    %1695 = vmatprep.subr.bf16.mxu0 0
    %1696 = vmatpush1.bf16.xpose.msra.mxu0 0
    %1697 = vmatprep.mubr.bf16.mxu0 0
    %1698 = vmatmul.mubr.bf16.gmra.mrb[0].mxu0 %v1660
    %v1699 = vpop.f32.mrb[0].mxu0
    %v1700 = vadd.f32 0.0, %v1699
    %v1701 = vpop.f32.mrb[0].mxu0
    %v1702 = vpop.f32.mrb[0].mxu0
    %v1703 = vpop.f32.mrb[0].mxu0
    %1704 = vdwg.mxu0
    %v1706 = vsel %vm129, %v1654, 0
    %v1709 = vsel %vm129, %v1656, 0
    %1711 = vmatprep.subr.bf16.mxu0 0
    %1712 = vmatpush1.bf16.xpose.msra.mxu0 %v1709
    %1713 = vmatprep.subr.bf16.mxu0 0
    %1714 = vmatpush1.bf16.xpose.msra.mxu0 0
    %1715 = vmatprep.subr.bf16.mxu0 0
    %1716 = vmatpush1.bf16.xpose.msra.mxu0 0
    %1717 = vmatprep.subr.bf16.mxu0 0
    %1718 = vmatpush1.bf16.xpose.msra.mxu0 0
    %1719 = vmatprep.subr.bf16.mxu0 0
    %1720 = vmatpush1.bf16.xpose.msra.mxu0 0
    %1721 = vmatprep.subr.bf16.mxu0 0
    %1722 = vmatpush1.bf16.xpose.msra.mxu0 0
    %1723 = vmatprep.subr.bf16.mxu0 0
    %1724 = vmatpush1.bf16.xpose.msra.mxu0 0
    %1725 = vmatprep.subr.bf16.mxu0 0
    %1726 = vmatpush1.bf16.xpose.msra.mxu0 0
    %1727 = vmatprep.subr.bf16.mxu0 0
    %1728 = vmatpush1.bf16.xpose.msra.mxu0 0
    %1729 = vmatprep.subr.bf16.mxu0 0
    %1730 = vmatpush1.bf16.xpose.msra.mxu0 0
    %1731 = vmatprep.subr.bf16.mxu0 0
    %1732 = vmatpush1.bf16.xpose.msra.mxu0 0
    %1733 = vmatprep.subr.bf16.mxu0 0
    %1734 = vmatpush1.bf16.xpose.msra.mxu0 0
    %1735 = vmatprep.subr.bf16.mxu0 0
    %1736 = vmatpush1.bf16.xpose.msra.mxu0 0
    %1737 = vmatprep.subr.bf16.mxu0 0
    %1738 = vmatpush1.bf16.xpose.msra.mxu0 0
    %1739 = vmatprep.subr.bf16.mxu0 0
    %1740 = vmatpush1.bf16.xpose.msra.mxu0 0
    %1741 = vmatprep.subr.bf16.mxu0 0
    %1742 = vmatpush1.bf16.xpose.msra.mxu0 0
    %1743 = vmatprep.mubr.bf16.mxu0 0
    %1744 = vmatmul.mubr.bf16.gmra.mrb[0].mxu0 %v1706
    %v1745 = vpop.f32.mrb[0].mxu0
    %v1746 = vadd.f32 0.0, %v1745
    %v1747 = vpop.f32.mrb[0].mxu0
    %v1748 = vpop.f32.mrb[0].mxu0
    %v1749 = vpop.f32.mrb[0].mxu0
    %1750 = vdwg.mxu0
    %v1751 = vmul.f32 %v1700, 0.17677669
    %v1752 = vmul.f32 %v1746, 0.17677669
    %v1753 = vadd.f32 %v1751, %v112
    %v1754 = vadd.f32 %v1752, %v112
    %v1755 = vsel %vm390, %v1753, -inf
    %1756 = vmax.xlane.f32.xlu0 %v1755
    %v1757 = vpop.xlane.xlu0 %1756
    %v1758 = vsel %vm390, %v1754, -inf
    %1759 = vmax.xlane.f32.xlu0 %v1758
    %v1760 = vpop.xlane.xlu0 %1759
    %v1761 = vsub.f32 %v1753, %v1757
    %v1762 = vsub.f32 %v1754, %v1760
    %v1763 = vmul.f32 %v1761, 1.442695
    %v1764 = vpow.pop %v1763
    %v1765 = vmul.f32 %v1762, 1.442695
    %v1766 = vpow.pop %v1765
    %v1767 = vsel %vm390, %v1764, 0.0
    %1768 = vadd.xlane.f32.xlu0 %v1767
    %v1769 = vpop.xlane.xlu0 %1768
    %v1770 = vsel %vm390, %v1766, 0.0
    %1771 = vadd.xlane.f32.xlu0 %v1770
    %v1772 = vpop.xlane.xlu0 %1771
    %v1773 = vrcp.pop %v1769
    %v1774 = vrcp.pop %v1772
    %v1775 = vmul.f32 %v1764, %v1773
    %v1776 = vmul.f32 %v1766, %v1774
    %v1777 = vpack.c.bf16 %v1775, %v1775
    %v1778 = vpack.c.bf16 %v1776, %v1776
    %v1780 = vsel %vm390, %v1777, 0
    %v1783 = vsel %vm418, %v1657, 0
    %1785 = vmatprep.subr.bf16.mxu0 0
    %1786 = vmatpush1.bf16.msra.mxu0 %v1783
    %1787 = vmatprep.subr.bf16.mxu0 0
    %1788 = vmatpush1.bf16.msra.mxu0 0
    %1789 = vmatprep.subr.bf16.mxu0 0
    %1790 = vmatpush1.bf16.msra.mxu0 0
    %1791 = vmatprep.subr.bf16.mxu0 0
    %1792 = vmatpush1.bf16.msra.mxu0 0
    %1793 = vmatprep.subr.bf16.mxu0 0
    %1794 = vmatpush1.bf16.msra.mxu0 0
    %1795 = vmatprep.subr.bf16.mxu0 0
    %1796 = vmatpush1.bf16.msra.mxu0 0
    %1797 = vmatprep.subr.bf16.mxu0 0
    %1798 = vmatpush1.bf16.msra.mxu0 0
    %1799 = vmatprep.subr.bf16.mxu0 0
    %1800 = vmatpush1.bf16.msra.mxu0 0
    %1801 = vmatprep.subr.bf16.mxu0 0
    %1802 = vmatpush1.bf16.msra.mxu0 0
    %1803 = vmatprep.subr.bf16.mxu0 0
    %1804 = vmatpush1.bf16.msra.mxu0 0
    %1805 = vmatprep.subr.bf16.mxu0 0
    %1806 = vmatpush1.bf16.msra.mxu0 0
    %1807 = vmatprep.subr.bf16.mxu0 0
    %1808 = vmatpush1.bf16.msra.mxu0 0
    %1809 = vmatprep.subr.bf16.mxu0 0
    %1810 = vmatpush1.bf16.msra.mxu0 0
    %1811 = vmatprep.subr.bf16.mxu0 0
    %1812 = vmatpush1.bf16.msra.mxu0 0
    %1813 = vmatprep.subr.bf16.mxu0 0
    %1814 = vmatpush1.bf16.msra.mxu0 0
    %1815 = vmatprep.subr.bf16.mxu0 0
    %1816 = vmatpush1.bf16.msra.mxu0 0
    %1817 = vmatprep.mubr.bf16.mxu0 0
    %1818 = vmatmul.mubr.bf16.gmra.mrb[0].mxu0 %v1780
    %v1819 = vpop.f32.mrb[0].mxu0
    %v1820 = vadd.f32 0.0, %v1819
    %v1821 = vpop.f32.mrb[0].mxu0
    %v1822 = vpop.f32.mrb[0].mxu0
    %v1823 = vpop.f32.mrb[0].mxu0
    %1824 = vdwg.mxu0
    %v1826 = vsel %vm390, %v1778, 0
    %v1829 = vsel %vm418, %v1658, 0
    %1831 = vmatprep.subr.bf16.mxu0 0
    %1832 = vmatpush1.bf16.msra.mxu0 %v1829
    %1833 = vmatprep.subr.bf16.mxu0 0
    %1834 = vmatpush1.bf16.msra.mxu0 0
    %1835 = vmatprep.subr.bf16.mxu0 0
    %1836 = vmatpush1.bf16.msra.mxu0 0
    %1837 = vmatprep.subr.bf16.mxu0 0
    %1838 = vmatpush1.bf16.msra.mxu0 0
    %1839 = vmatprep.subr.bf16.mxu0 0
    %1840 = vmatpush1.bf16.msra.mxu0 0
    %1841 = vmatprep.subr.bf16.mxu0 0
    %1842 = vmatpush1.bf16.msra.mxu0 0
    %1843 = vmatprep.subr.bf16.mxu0 0
    %1844 = vmatpush1.bf16.msra.mxu0 0
    %1845 = vmatprep.subr.bf16.mxu0 0
    %1846 = vmatpush1.bf16.msra.mxu0 0
    %1847 = vmatprep.subr.bf16.mxu0 0
    %1848 = vmatpush1.bf16.msra.mxu0 0
    %1849 = vmatprep.subr.bf16.mxu0 0
    %1850 = vmatpush1.bf16.msra.mxu0 0
    %1851 = vmatprep.subr.bf16.mxu0 0
    %1852 = vmatpush1.bf16.msra.mxu0 0
    %1853 = vmatprep.subr.bf16.mxu0 0
    %1854 = vmatpush1.bf16.msra.mxu0 0
    %1855 = vmatprep.subr.bf16.mxu0 0
    %1856 = vmatpush1.bf16.msra.mxu0 0
    %1857 = vmatprep.subr.bf16.mxu0 0
    %1858 = vmatpush1.bf16.msra.mxu0 0
    %1859 = vmatprep.subr.bf16.mxu0 0
    %1860 = vmatpush1.bf16.msra.mxu0 0
    %1861 = vmatprep.subr.bf16.mxu0 0
    %1862 = vmatpush1.bf16.msra.mxu0 0
    %1863 = vmatprep.mubr.bf16.mxu0 0
    %1864 = vmatmul.mubr.bf16.gmra.mrb[0].mxu0 %v1826
    %v1865 = vpop.f32.mrb[0].mxu0
    %v1866 = vadd.f32 0.0, %v1865
    %v1867 = vpop.f32.mrb[0].mxu0
    %v1868 = vpop.f32.mrb[0].mxu0
    %v1869 = vpop.f32.mrb[0].mxu0
    %1870 = vdwg.mxu0
    %v1871 = vpack.c.bf16 %v1866, %v1820
    %s1872 = scalar_lea.vmem [#allocation8], 48
    %v1873 = vld [vmem:[%s1872] sm:$0xf]
    %v1874 = vld [vmem:[%s1872 + $0x4] sm:$0xf]
    %v1875 = vld [vmem:[%s1872 + $0x8] sm:$0xf]
    %v1876 = vld [vmem:[%s1872 + $0xc] sm:$0xf]
    %v1881 = vunpack.c.l.b16 %v1873
    %v1882 = vunpack.c.l.b16 %v1874
    %v1883 = vunpack.c.l.b16 %v1875
    %v1884 = vunpack.c.l.b16 %v1876
    %v1885 = vpack.c.b16 %v1882, %v1881
    %v1886 = vpack.c.b16 %v1884, %v1883
    %v1890 = vsel %vm129, %v1871, 0
    %1892 = vmatprep.subr.bf16.mxu0 0
    %1893 = vmatpush1.bf16.msra.mxu0 %v1885
    %1894 = vmatprep.subr.bf16.mxu0 0
    %1895 = vmatpush1.bf16.msra.mxu0 %v1886
    %1896 = vmatprep.subr.bf16.mxu0 0
    %1897 = vmatpush1.bf16.msra.mxu0 0
    %1898 = vmatprep.subr.bf16.mxu0 0
    %1899 = vmatpush1.bf16.msra.mxu0 0
    %1900 = vmatprep.subr.bf16.mxu0 0
    %1901 = vmatpush1.bf16.msra.mxu0 0
    %1902 = vmatprep.subr.bf16.mxu0 0
    %1903 = vmatpush1.bf16.msra.mxu0 0
    %1904 = vmatprep.subr.bf16.mxu0 0
    %1905 = vmatpush1.bf16.msra.mxu0 0
    %1906 = vmatprep.subr.bf16.mxu0 0
    %1907 = vmatpush1.bf16.msra.mxu0 0
    %1908 = vmatprep.subr.bf16.mxu0 0
    %1909 = vmatpush1.bf16.msra.mxu0 0
    %1910 = vmatprep.subr.bf16.mxu0 0
    %1911 = vmatpush1.bf16.msra.mxu0 0
    %1912 = vmatprep.subr.bf16.mxu0 0
    %1913 = vmatpush1.bf16.msra.mxu0 0
    %1914 = vmatprep.subr.bf16.mxu0 0
    %1915 = vmatpush1.bf16.msra.mxu0 0
    %1916 = vmatprep.subr.bf16.mxu0 0
    %1917 = vmatpush1.bf16.msra.mxu0 0
    %1918 = vmatprep.subr.bf16.mxu0 0
    %1919 = vmatpush1.bf16.msra.mxu0 0
    %1920 = vmatprep.subr.bf16.mxu0 0
    %1921 = vmatpush1.bf16.msra.mxu0 0
    %1922 = vmatprep.subr.bf16.mxu0 0
    %1923 = vmatpush1.bf16.msra.mxu0 0
    %1924 = vmatprep.mubr.bf16.mxu0 0
    %1925 = vmatmul.mubr.bf16.gmra.mrb[0].mxu0 %v1890
    %v1926 = vpop.f32.mrb[0].mxu0
    %v1927 = vadd.f32 0.0, %v1926
    %v1928 = vpop.f32.mrb[0].mxu0
    %v1929 = vpop.f32.mrb[0].mxu0
    %v1930 = vadd.f32 0.0, %v1929
    %v1931 = vpop.f32.mrb[0].mxu0
    %1932 = vdwg.mxu0
    %v1933 = vadd.f32 %v1477, %v1927
    %v1934 = vadd.f32 %v1478, %v1930
    %s1935 = scalar_lea.vmem [#allocation2], 64
    %v1936 = vld [vmem:[%s1935] sm:$0xf]
    %v1937 = vld [vmem:[%s1935 + $0x4] sm:$0xf]
    %v1938 = vld [vmem:[%s1935 + $0x8] sm:$0xf]
    %v1939 = vld [vmem:[%s1935 + $0xc] sm:$0xf]
    %v1944 = vunpack.c.l.b16 %v1936
    %v1945 = vunpack.c.l.b16 %v1937
    %v1946 = vunpack.c.l.b16 %v1938
    %v1947 = vunpack.c.l.b16 %v1939
    %v1948 = vpack.c.b16 %v1945, %v1944
    %v1949 = vpack.c.b16 %v1947, %v1946
    %1952 = vmatprep.subr.bf16.mxu0 0
    %1953 = vmatpush1.bf16.msra.mxu0 %v1948
    %1954 = vmatprep.subr.bf16.mxu0 0
    %1955 = vmatpush1.bf16.msra.mxu0 %v1949
    %1956 = vmatprep.subr.bf16.mxu0 0
    %1957 = vmatpush1.bf16.msra.mxu0 0
    %1958 = vmatprep.subr.bf16.mxu0 0
    %1959 = vmatpush1.bf16.msra.mxu0 0
    %1960 = vmatprep.subr.bf16.mxu0 0
    %1961 = vmatpush1.bf16.msra.mxu0 0
    %1962 = vmatprep.subr.bf16.mxu0 0
    %1963 = vmatpush1.bf16.msra.mxu0 0
    %1964 = vmatprep.subr.bf16.mxu0 0
    %1965 = vmatpush1.bf16.msra.mxu0 0
    %1966 = vmatprep.subr.bf16.mxu0 0
    %1967 = vmatpush1.bf16.msra.mxu0 0
    %1968 = vmatprep.subr.bf16.mxu0 0
    %1969 = vmatpush1.bf16.msra.mxu0 0
    %1970 = vmatprep.subr.bf16.mxu0 0
    %1971 = vmatpush1.bf16.msra.mxu0 0
    %1972 = vmatprep.subr.bf16.mxu0 0
    %1973 = vmatpush1.bf16.msra.mxu0 0
    %1974 = vmatprep.subr.bf16.mxu0 0
    %1975 = vmatpush1.bf16.msra.mxu0 0
    %1976 = vmatprep.subr.bf16.mxu0 0
    %1977 = vmatpush1.bf16.msra.mxu0 0
    %1978 = vmatprep.subr.bf16.mxu0 0
    %1979 = vmatpush1.bf16.msra.mxu0 0
    %1980 = vmatprep.subr.bf16.mxu0 0
    %1981 = vmatpush1.bf16.msra.mxu0 0
    %1982 = vmatprep.subr.bf16.mxu0 0
    %1983 = vmatpush1.bf16.msra.mxu0 0
    %1984 = vmatprep.mubr.bf16.mxu0 0
    %1985 = vmatmul.mubr.bf16.gmra.mrb[0].mxu0 %v131
    %v1986 = vpop.f32.mrb[0].mxu0
    %v1987 = vadd.f32 0.0, %v1986
    %v1988 = vpop.f32.mrb[0].mxu0
    %v1989 = vpop.f32.mrb[0].mxu0
    %v1990 = vadd.f32 0.0, %v1989
    %v1991 = vpop.f32.mrb[0].mxu0
    %1992 = vdwg.mxu0
    %s1993 = scalar_lea.vmem [#allocation5], 64
    %v1994 = vld [vmem:[%s1993] sm:$0xf]
    %v1995 = vld [vmem:[%s1993 + $0x4] sm:$0xf]
    %v1996 = vld [vmem:[%s1993 + $0x8] sm:$0xf]
    %v1997 = vld [vmem:[%s1993 + $0xc] sm:$0xf]
    %v2002 = vunpack.c.l.b16 %v1994
    %v2003 = vunpack.c.l.b16 %v1995
    %v2004 = vunpack.c.l.b16 %v1996
    %v2005 = vunpack.c.l.b16 %v1997
    %v2006 = vpack.c.b16 %v2003, %v2002
    %v2007 = vpack.c.b16 %v2005, %v2004
    %2010 = vmatprep.subr.bf16.mxu0 0
    %2011 = vmatpush1.bf16.msra.mxu0 %v2006
    %2012 = vmatprep.subr.bf16.mxu0 0
    %2013 = vmatpush1.bf16.msra.mxu0 %v2007
    %2014 = vmatprep.subr.bf16.mxu0 0
    %2015 = vmatpush1.bf16.msra.mxu0 0
    %2016 = vmatprep.subr.bf16.mxu0 0
    %2017 = vmatpush1.bf16.msra.mxu0 0
    %2018 = vmatprep.subr.bf16.mxu0 0
    %2019 = vmatpush1.bf16.msra.mxu0 0
    %2020 = vmatprep.subr.bf16.mxu0 0
    %2021 = vmatpush1.bf16.msra.mxu0 0
    %2022 = vmatprep.subr.bf16.mxu0 0
    %2023 = vmatpush1.bf16.msra.mxu0 0
    %2024 = vmatprep.subr.bf16.mxu0 0
    %2025 = vmatpush1.bf16.msra.mxu0 0
    %2026 = vmatprep.subr.bf16.mxu0 0
    %2027 = vmatpush1.bf16.msra.mxu0 0
    %2028 = vmatprep.subr.bf16.mxu0 0
    %2029 = vmatpush1.bf16.msra.mxu0 0
    %2030 = vmatprep.subr.bf16.mxu0 0
    %2031 = vmatpush1.bf16.msra.mxu0 0
    %2032 = vmatprep.subr.bf16.mxu0 0
    %2033 = vmatpush1.bf16.msra.mxu0 0
    %2034 = vmatprep.subr.bf16.mxu0 0
    %2035 = vmatpush1.bf16.msra.mxu0 0
    %2036 = vmatprep.subr.bf16.mxu0 0
    %2037 = vmatpush1.bf16.msra.mxu0 0
    %2038 = vmatprep.subr.bf16.mxu0 0
    %2039 = vmatpush1.bf16.msra.mxu0 0
    %2040 = vmatprep.subr.bf16.mxu0 0
    %2041 = vmatpush1.bf16.msra.mxu0 0
    %2042 = vmatprep.mubr.bf16.mxu0 0
    %2043 = vmatmul.mubr.bf16.gmra.mrb[0].mxu0 %v131
    %v2044 = vpop.f32.mrb[0].mxu0
    %v2045 = vadd.f32 0.0, %v2044
    %v2046 = vpop.f32.mrb[0].mxu0
    %v2047 = vpop.f32.mrb[0].mxu0
    %v2048 = vadd.f32 0.0, %v2047
    %v2049 = vpop.f32.mrb[0].mxu0
    %2050 = vdwg.mxu0
    %s2051 = scalar_lea.vmem [#allocation7], 64
    %v2052 = vld [vmem:[%s2051] sm:$0xf]
    %v2053 = vld [vmem:[%s2051 + $0x4] sm:$0xf]
    %v2054 = vld [vmem:[%s2051 + $0x8] sm:$0xf]
    %v2055 = vld [vmem:[%s2051 + $0xc] sm:$0xf]
    %v2060 = vunpack.c.l.b16 %v2052
    %v2061 = vunpack.c.l.b16 %v2053
    %v2062 = vunpack.c.l.b16 %v2054
    %v2063 = vunpack.c.l.b16 %v2055
    %v2064 = vpack.c.b16 %v2061, %v2060
    %v2065 = vpack.c.b16 %v2063, %v2062
    %2068 = vmatprep.subr.bf16.mxu0 0
    %2069 = vmatpush1.bf16.msra.mxu0 %v2064
    %2070 = vmatprep.subr.bf16.mxu0 0
    %2071 = vmatpush1.bf16.msra.mxu0 %v2065
    %2072 = vmatprep.subr.bf16.mxu0 0
    %2073 = vmatpush1.bf16.msra.mxu0 0
    %2074 = vmatprep.subr.bf16.mxu0 0
    %2075 = vmatpush1.bf16.msra.mxu0 0
    %2076 = vmatprep.subr.bf16.mxu0 0
    %2077 = vmatpush1.bf16.msra.mxu0 0
    %2078 = vmatprep.subr.bf16.mxu0 0
    %2079 = vmatpush1.bf16.msra.mxu0 0
    %2080 = vmatprep.subr.bf16.mxu0 0
    %2081 = vmatpush1.bf16.msra.mxu0 0
    %2082 = vmatprep.subr.bf16.mxu0 0
    %2083 = vmatpush1.bf16.msra.mxu0 0
    %2084 = vmatprep.subr.bf16.mxu0 0
    %2085 = vmatpush1.bf16.msra.mxu0 0
    %2086 = vmatprep.subr.bf16.mxu0 0
    %2087 = vmatpush1.bf16.msra.mxu0 0
    %2088 = vmatprep.subr.bf16.mxu0 0
    %2089 = vmatpush1.bf16.msra.mxu0 0
    %2090 = vmatprep.subr.bf16.mxu0 0
    %2091 = vmatpush1.bf16.msra.mxu0 0
    %2092 = vmatprep.subr.bf16.mxu0 0
    %2093 = vmatpush1.bf16.msra.mxu0 0
    %2094 = vmatprep.subr.bf16.mxu0 0
    %2095 = vmatpush1.bf16.msra.mxu0 0
    %2096 = vmatprep.subr.bf16.mxu0 0
    %2097 = vmatpush1.bf16.msra.mxu0 0
    %2098 = vmatprep.subr.bf16.mxu0 0
    %2099 = vmatpush1.bf16.msra.mxu0 0
    %2100 = vmatprep.mubr.bf16.mxu0 0
    %2101 = vmatmul.mubr.bf16.gmra.mrb[0].mxu0 %v131
    %v2102 = vpop.f32.mrb[0].mxu0
    %v2103 = vadd.f32 0.0, %v2102
    %v2104 = vpop.f32.mrb[0].mxu0
    %v2105 = vpop.f32.mrb[0].mxu0
    %v2106 = vadd.f32 0.0, %v2105
    %v2107 = vpop.f32.mrb[0].mxu0
    %2108 = vdwg.mxu0
    %v2109 = vpack.c.bf16 %v1987, %v1987
    %v2110 = vpack.c.bf16 %v1990, %v1990
    %v2111 = vpack.c.bf16 %v2045, %v2045
    %v2112 = vpack.c.bf16 %v2048, %v2048
    %v2113 = vpack.c.bf16 %v2103, %v2103
    %v2114 = vpack.c.bf16 %v2106, %v2106
    %v2116 = vsel %vm129, %v2109, 0
    %v2119 = vsel %vm129, %v2111, 0
    %2121 = vmatprep.subr.bf16.mxu0 0
    %2122 = vmatpush1.bf16.xpose.msra.mxu0 %v2119
    %2123 = vmatprep.subr.bf16.mxu0 0
    %2124 = vmatpush1.bf16.xpose.msra.mxu0 0
    %2125 = vmatprep.subr.bf16.mxu0 0
    %2126 = vmatpush1.bf16.xpose.msra.mxu0 0
    %2127 = vmatprep.subr.bf16.mxu0 0
    %2128 = vmatpush1.bf16.xpose.msra.mxu0 0
    %2129 = vmatprep.subr.bf16.mxu0 0
    %2130 = vmatpush1.bf16.xpose.msra.mxu0 0
    %2131 = vmatprep.subr.bf16.mxu0 0
    %2132 = vmatpush1.bf16.xpose.msra.mxu0 0
    %2133 = vmatprep.subr.bf16.mxu0 0
    %2134 = vmatpush1.bf16.xpose.msra.mxu0 0
    %2135 = vmatprep.subr.bf16.mxu0 0
    %2136 = vmatpush1.bf16.xpose.msra.mxu0 0
    %2137 = vmatprep.subr.bf16.mxu0 0
    %2138 = vmatpush1.bf16.xpose.msra.mxu0 0
    %2139 = vmatprep.subr.bf16.mxu0 0
    %2140 = vmatpush1.bf16.xpose.msra.mxu0 0
    %2141 = vmatprep.subr.bf16.mxu0 0
    %2142 = vmatpush1.bf16.xpose.msra.mxu0 0
    %2143 = vmatprep.subr.bf16.mxu0 0
    %2144 = vmatpush1.bf16.xpose.msra.mxu0 0
    %2145 = vmatprep.subr.bf16.mxu0 0
    %2146 = vmatpush1.bf16.xpose.msra.mxu0 0
    %2147 = vmatprep.subr.bf16.mxu0 0
    %2148 = vmatpush1.bf16.xpose.msra.mxu0 0
    %2149 = vmatprep.subr.bf16.mxu0 0
    %2150 = vmatpush1.bf16.xpose.msra.mxu0 0
    %2151 = vmatprep.subr.bf16.mxu0 0
    %2152 = vmatpush1.bf16.xpose.msra.mxu0 0
    %2153 = vmatprep.mubr.bf16.mxu0 0
    %2154 = vmatmul.mubr.bf16.gmra.mrb[0].mxu0 %v2116
    %v2155 = vpop.f32.mrb[0].mxu0
    %v2156 = vadd.f32 0.0, %v2155
    %v2157 = vpop.f32.mrb[0].mxu0
    %v2158 = vpop.f32.mrb[0].mxu0
    %v2159 = vpop.f32.mrb[0].mxu0
    %2160 = vdwg.mxu0
    %v2162 = vsel %vm129, %v2110, 0
    %v2165 = vsel %vm129, %v2112, 0
    %2167 = vmatprep.subr.bf16.mxu0 0
    %2168 = vmatpush1.bf16.xpose.msra.mxu0 %v2165
    %2169 = vmatprep.subr.bf16.mxu0 0
    %2170 = vmatpush1.bf16.xpose.msra.mxu0 0
    %2171 = vmatprep.subr.bf16.mxu0 0
    %2172 = vmatpush1.bf16.xpose.msra.mxu0 0
    %2173 = vmatprep.subr.bf16.mxu0 0
    %2174 = vmatpush1.bf16.xpose.msra.mxu0 0
    %2175 = vmatprep.subr.bf16.mxu0 0
    %2176 = vmatpush1.bf16.xpose.msra.mxu0 0
    %2177 = vmatprep.subr.bf16.mxu0 0
    %2178 = vmatpush1.bf16.xpose.msra.mxu0 0
    %2179 = vmatprep.subr.bf16.mxu0 0
    %2180 = vmatpush1.bf16.xpose.msra.mxu0 0
    %2181 = vmatprep.subr.bf16.mxu0 0
    %2182 = vmatpush1.bf16.xpose.msra.mxu0 0
    %2183 = vmatprep.subr.bf16.mxu0 0
    %2184 = vmatpush1.bf16.xpose.msra.mxu0 0
    %2185 = vmatprep.subr.bf16.mxu0 0
    %2186 = vmatpush1.bf16.xpose.msra.mxu0 0
    %2187 = vmatprep.subr.bf16.mxu0 0
    %2188 = vmatpush1.bf16.xpose.msra.mxu0 0
    %2189 = vmatprep.subr.bf16.mxu0 0
    %2190 = vmatpush1.bf16.xpose.msra.mxu0 0
    %2191 = vmatprep.subr.bf16.mxu0 0
    %2192 = vmatpush1.bf16.xpose.msra.mxu0 0
    %2193 = vmatprep.subr.bf16.mxu0 0
    %2194 = vmatpush1.bf16.xpose.msra.mxu0 0
    %2195 = vmatprep.subr.bf16.mxu0 0
    %2196 = vmatpush1.bf16.xpose.msra.mxu0 0
    %2197 = vmatprep.subr.bf16.mxu0 0
    %2198 = vmatpush1.bf16.xpose.msra.mxu0 0
    %2199 = vmatprep.mubr.bf16.mxu0 0
    %2200 = vmatmul.mubr.bf16.gmra.mrb[0].mxu0 %v2162
    %v2201 = vpop.f32.mrb[0].mxu0
    %v2202 = vadd.f32 0.0, %v2201
    %v2203 = vpop.f32.mrb[0].mxu0
    %v2204 = vpop.f32.mrb[0].mxu0
    %v2205 = vpop.f32.mrb[0].mxu0
    %2206 = vdwg.mxu0
    %v2207 = vmul.f32 %v2156, 0.17677669
    %v2208 = vmul.f32 %v2202, 0.17677669
    %v2209 = vadd.f32 %v2207, %v112
    %v2210 = vadd.f32 %v2208, %v112
    %v2211 = vsel %vm390, %v2209, -inf
    %2212 = vmax.xlane.f32.xlu0 %v2211
    %v2213 = vpop.xlane.xlu0 %2212
    %v2214 = vsel %vm390, %v2210, -inf
    %2215 = vmax.xlane.f32.xlu0 %v2214
    %v2216 = vpop.xlane.xlu0 %2215
    %v2217 = vsub.f32 %v2209, %v2213
    %v2218 = vsub.f32 %v2210, %v2216
    %v2219 = vmul.f32 %v2217, 1.442695
    %v2220 = vpow.pop %v2219
    %v2221 = vmul.f32 %v2218, 1.442695
    %v2222 = vpow.pop %v2221
    %v2223 = vsel %vm390, %v2220, 0.0
    %2224 = vadd.xlane.f32.xlu0 %v2223
    %v2225 = vpop.xlane.xlu0 %2224
    %v2226 = vsel %vm390, %v2222, 0.0
    %2227 = vadd.xlane.f32.xlu0 %v2226
    %v2228 = vpop.xlane.xlu0 %2227
    %v2229 = vrcp.pop %v2225
    %v2230 = vrcp.pop %v2228
    %v2231 = vmul.f32 %v2220, %v2229
    %v2232 = vmul.f32 %v2222, %v2230
    %v2233 = vpack.c.bf16 %v2231, %v2231
    %v2234 = vpack.c.bf16 %v2232, %v2232
    %v2236 = vsel %vm390, %v2233, 0
    %v2239 = vsel %vm418, %v2113, 0
    %2241 = vmatprep.subr.bf16.mxu0 0
    %2242 = vmatpush1.bf16.msra.mxu0 %v2239
    %2243 = vmatprep.subr.bf16.mxu0 0
    %2244 = vmatpush1.bf16.msra.mxu0 0
    %2245 = vmatprep.subr.bf16.mxu0 0
    %2246 = vmatpush1.bf16.msra.mxu0 0
    %2247 = vmatprep.subr.bf16.mxu0 0
    %2248 = vmatpush1.bf16.msra.mxu0 0
    %2249 = vmatprep.subr.bf16.mxu0 0
    %2250 = vmatpush1.bf16.msra.mxu0 0
    %2251 = vmatprep.subr.bf16.mxu0 0
    %2252 = vmatpush1.bf16.msra.mxu0 0
    %2253 = vmatprep.subr.bf16.mxu0 0
    %2254 = vmatpush1.bf16.msra.mxu0 0
    %2255 = vmatprep.subr.bf16.mxu0 0
    %2256 = vmatpush1.bf16.msra.mxu0 0
    %2257 = vmatprep.subr.bf16.mxu0 0
    %2258 = vmatpush1.bf16.msra.mxu0 0
    %2259 = vmatprep.subr.bf16.mxu0 0
    %2260 = vmatpush1.bf16.msra.mxu0 0
    %2261 = vmatprep.subr.bf16.mxu0 0
    %2262 = vmatpush1.bf16.msra.mxu0 0
    %2263 = vmatprep.subr.bf16.mxu0 0
    %2264 = vmatpush1.bf16.msra.mxu0 0
    %2265 = vmatprep.subr.bf16.mxu0 0
    %2266 = vmatpush1.bf16.msra.mxu0 0
    %2267 = vmatprep.subr.bf16.mxu0 0
    %2268 = vmatpush1.bf16.msra.mxu0 0
    %2269 = vmatprep.subr.bf16.mxu0 0
    %2270 = vmatpush1.bf16.msra.mxu0 0
    %2271 = vmatprep.subr.bf16.mxu0 0
    %2272 = vmatpush1.bf16.msra.mxu0 0
    %2273 = vmatprep.mubr.bf16.mxu0 0
    %2274 = vmatmul.mubr.bf16.gmra.mrb[0].mxu0 %v2236
    %v2275 = vpop.f32.mrb[0].mxu0
    %v2276 = vadd.f32 0.0, %v2275
    %v2277 = vpop.f32.mrb[0].mxu0
    %v2278 = vpop.f32.mrb[0].mxu0
    %v2279 = vpop.f32.mrb[0].mxu0
    %2280 = vdwg.mxu0
    %v2282 = vsel %vm390, %v2234, 0
    %v2285 = vsel %vm418, %v2114, 0
    %2287 = vmatprep.subr.bf16.mxu0 0
    %2288 = vmatpush1.bf16.msra.mxu0 %v2285
    %2289 = vmatprep.subr.bf16.mxu0 0
    %2290 = vmatpush1.bf16.msra.mxu0 0
    %2291 = vmatprep.subr.bf16.mxu0 0
    %2292 = vmatpush1.bf16.msra.mxu0 0
    %2293 = vmatprep.subr.bf16.mxu0 0
    %2294 = vmatpush1.bf16.msra.mxu0 0
    %2295 = vmatprep.subr.bf16.mxu0 0
    %2296 = vmatpush1.bf16.msra.mxu0 0
    %2297 = vmatprep.subr.bf16.mxu0 0
    %2298 = vmatpush1.bf16.msra.mxu0 0
    %2299 = vmatprep.subr.bf16.mxu0 0
    %2300 = vmatpush1.bf16.msra.mxu0 0
    %2301 = vmatprep.subr.bf16.mxu0 0
    %2302 = vmatpush1.bf16.msra.mxu0 0
    %2303 = vmatprep.subr.bf16.mxu0 0
    %2304 = vmatpush1.bf16.msra.mxu0 0
    %2305 = vmatprep.subr.bf16.mxu0 0
    %2306 = vmatpush1.bf16.msra.mxu0 0
    %2307 = vmatprep.subr.bf16.mxu0 0
    %2308 = vmatpush1.bf16.msra.mxu0 0
    %2309 = vmatprep.subr.bf16.mxu0 0
    %2310 = vmatpush1.bf16.msra.mxu0 0
    %2311 = vmatprep.subr.bf16.mxu0 0
    %2312 = vmatpush1.bf16.msra.mxu0 0
    %2313 = vmatprep.subr.bf16.mxu0 0
    %2314 = vmatpush1.bf16.msra.mxu0 0
    %2315 = vmatprep.subr.bf16.mxu0 0
    %2316 = vmatpush1.bf16.msra.mxu0 0
    %2317 = vmatprep.subr.bf16.mxu0 0
    %2318 = vmatpush1.bf16.msra.mxu0 0
    %2319 = vmatprep.mubr.bf16.mxu0 0
    %2320 = vmatmul.mubr.bf16.gmra.mrb[0].mxu0 %v2282
    %v2321 = vpop.f32.mrb[0].mxu0
    %v2322 = vadd.f32 0.0, %v2321
    %v2323 = vpop.f32.mrb[0].mxu0
    %v2324 = vpop.f32.mrb[0].mxu0
    %v2325 = vpop.f32.mrb[0].mxu0
    %2326 = vdwg.mxu0
    %v2327 = vpack.c.bf16 %v2322, %v2276
    %s2328 = scalar_lea.vmem [#allocation8], 64
    %v2329 = vld [vmem:[%s2328] sm:$0xf]
    %v2330 = vld [vmem:[%s2328 + $0x4] sm:$0xf]
    %v2331 = vld [vmem:[%s2328 + $0x8] sm:$0xf]
    %v2332 = vld [vmem:[%s2328 + $0xc] sm:$0xf]
    %v2337 = vunpack.c.l.b16 %v2329
    %v2338 = vunpack.c.l.b16 %v2330
    %v2339 = vunpack.c.l.b16 %v2331
    %v2340 = vunpack.c.l.b16 %v2332
    %v2341 = vpack.c.b16 %v2338, %v2337
    %v2342 = vpack.c.b16 %v2340, %v2339
    %v2346 = vsel %vm129, %v2327, 0
    %2348 = vmatprep.subr.bf16.mxu0 0
    %2349 = vmatpush1.bf16.msra.mxu0 %v2341
    %2350 = vmatprep.subr.bf16.mxu0 0
    %2351 = vmatpush1.bf16.msra.mxu0 %v2342
    %2352 = vmatprep.subr.bf16.mxu0 0
    %2353 = vmatpush1.bf16.msra.mxu0 0
    %2354 = vmatprep.subr.bf16.mxu0 0
    %2355 = vmatpush1.bf16.msra.mxu0 0
    %2356 = vmatprep.subr.bf16.mxu0 0
    %2357 = vmatpush1.bf16.msra.mxu0 0
    %2358 = vmatprep.subr.bf16.mxu0 0
    %2359 = vmatpush1.bf16.msra.mxu0 0
    %2360 = vmatprep.subr.bf16.mxu0 0
    %2361 = vmatpush1.bf16.msra.mxu0 0
    %2362 = vmatprep.subr.bf16.mxu0 0
    %2363 = vmatpush1.bf16.msra.mxu0 0
    %2364 = vmatprep.subr.bf16.mxu0 0
    %2365 = vmatpush1.bf16.msra.mxu0 0
    %2366 = vmatprep.subr.bf16.mxu0 0
    %2367 = vmatpush1.bf16.msra.mxu0 0
    %2368 = vmatprep.subr.bf16.mxu0 0
    %2369 = vmatpush1.bf16.msra.mxu0 0
    %2370 = vmatprep.subr.bf16.mxu0 0
    %2371 = vmatpush1.bf16.msra.mxu0 0
    %2372 = vmatprep.subr.bf16.mxu0 0
    %2373 = vmatpush1.bf16.msra.mxu0 0
    %2374 = vmatprep.subr.bf16.mxu0 0
    %2375 = vmatpush1.bf16.msra.mxu0 0
    %2376 = vmatprep.subr.bf16.mxu0 0
    %2377 = vmatpush1.bf16.msra.mxu0 0
    %2378 = vmatprep.subr.bf16.mxu0 0
    %2379 = vmatpush1.bf16.msra.mxu0 0
    %2380 = vmatprep.mubr.bf16.mxu0 0
    %2381 = vmatmul.mubr.bf16.gmra.mrb[0].mxu0 %v2346
    %v2382 = vpop.f32.mrb[0].mxu0
    %v2383 = vadd.f32 0.0, %v2382
    %v2384 = vpop.f32.mrb[0].mxu0
    %v2385 = vpop.f32.mrb[0].mxu0
    %v2386 = vadd.f32 0.0, %v2385
    %v2387 = vpop.f32.mrb[0].mxu0
    %2388 = vdwg.mxu0
    %v2389 = vadd.f32 %v1933, %v2383
    %v2390 = vadd.f32 %v1934, %v2386
    %s2391 = scalar_lea.vmem [#allocation2], 80
    %v2392 = vld [vmem:[%s2391] sm:$0xf]
    %v2393 = vld [vmem:[%s2391 + $0x4] sm:$0xf]
    %v2394 = vld [vmem:[%s2391 + $0x8] sm:$0xf]
    %v2395 = vld [vmem:[%s2391 + $0xc] sm:$0xf]
    %v2400 = vunpack.c.l.b16 %v2392
    %v2401 = vunpack.c.l.b16 %v2393
    %v2402 = vunpack.c.l.b16 %v2394
    %v2403 = vunpack.c.l.b16 %v2395
    %v2404 = vpack.c.b16 %v2401, %v2400
    %v2405 = vpack.c.b16 %v2403, %v2402
    %2408 = vmatprep.subr.bf16.mxu0 0
    %2409 = vmatpush1.bf16.msra.mxu0 %v2404
    %2410 = vmatprep.subr.bf16.mxu0 0
    %2411 = vmatpush1.bf16.msra.mxu0 %v2405
    %2412 = vmatprep.subr.bf16.mxu0 0
    %2413 = vmatpush1.bf16.msra.mxu0 0
    %2414 = vmatprep.subr.bf16.mxu0 0
    %2415 = vmatpush1.bf16.msra.mxu0 0
    %2416 = vmatprep.subr.bf16.mxu0 0
    %2417 = vmatpush1.bf16.msra.mxu0 0
    %2418 = vmatprep.subr.bf16.mxu0 0
    %2419 = vmatpush1.bf16.msra.mxu0 0
    %2420 = vmatprep.subr.bf16.mxu0 0
    %2421 = vmatpush1.bf16.msra.mxu0 0
    %2422 = vmatprep.subr.bf16.mxu0 0
    %2423 = vmatpush1.bf16.msra.mxu0 0
    %2424 = vmatprep.subr.bf16.mxu0 0
    %2425 = vmatpush1.bf16.msra.mxu0 0
    %2426 = vmatprep.subr.bf16.mxu0 0
    %2427 = vmatpush1.bf16.msra.mxu0 0
    %2428 = vmatprep.subr.bf16.mxu0 0
    %2429 = vmatpush1.bf16.msra.mxu0 0
    %2430 = vmatprep.subr.bf16.mxu0 0
    %2431 = vmatpush1.bf16.msra.mxu0 0
    %2432 = vmatprep.subr.bf16.mxu0 0
    %2433 = vmatpush1.bf16.msra.mxu0 0
    %2434 = vmatprep.subr.bf16.mxu0 0
    %2435 = vmatpush1.bf16.msra.mxu0 0
    %2436 = vmatprep.subr.bf16.mxu0 0
    %2437 = vmatpush1.bf16.msra.mxu0 0
    %2438 = vmatprep.subr.bf16.mxu0 0
    %2439 = vmatpush1.bf16.msra.mxu0 0
    %2440 = vmatprep.mubr.bf16.mxu0 0
    %2441 = vmatmul.mubr.bf16.gmra.mrb[0].mxu0 %v131
    %v2442 = vpop.f32.mrb[0].mxu0
    %v2443 = vadd.f32 0.0, %v2442
    %v2444 = vpop.f32.mrb[0].mxu0
    %v2445 = vpop.f32.mrb[0].mxu0
    %v2446 = vadd.f32 0.0, %v2445
    %v2447 = vpop.f32.mrb[0].mxu0
    %2448 = vdwg.mxu0
    %s2449 = scalar_lea.vmem [#allocation5], 80
    %v2450 = vld [vmem:[%s2449] sm:$0xf]
    %v2451 = vld [vmem:[%s2449 + $0x4] sm:$0xf]
    %v2452 = vld [vmem:[%s2449 + $0x8] sm:$0xf]
    %v2453 = vld [vmem:[%s2449 + $0xc] sm:$0xf]
    %v2458 = vunpack.c.l.b16 %v2450
    %v2459 = vunpack.c.l.b16 %v2451
    %v2460 = vunpack.c.l.b16 %v2452
    %v2461 = vunpack.c.l.b16 %v2453
    %v2462 = vpack.c.b16 %v2459, %v2458
    %v2463 = vpack.c.b16 %v2461, %v2460
    %2466 = vmatprep.subr.bf16.mxu0 0
    %2467 = vmatpush1.bf16.msra.mxu0 %v2462
    %2468 = vmatprep.subr.bf16.mxu0 0
    %2469 = vmatpush1.bf16.msra.mxu0 %v2463
    %2470 = vmatprep.subr.bf16.mxu0 0
    %2471 = vmatpush1.bf16.msra.mxu0 0
    %2472 = vmatprep.subr.bf16.mxu0 0
    %2473 = vmatpush1.bf16.msra.mxu0 0
    %2474 = vmatprep.subr.bf16.mxu0 0
    %2475 = vmatpush1.bf16.msra.mxu0 0
    %2476 = vmatprep.subr.bf16.mxu0 0
    %2477 = vmatpush1.bf16.msra.mxu0 0
    %2478 = vmatprep.subr.bf16.mxu0 0
    %2479 = vmatpush1.bf16.msra.mxu0 0
    %2480 = vmatprep.subr.bf16.mxu0 0
    %2481 = vmatpush1.bf16.msra.mxu0 0
    %2482 = vmatprep.subr.bf16.mxu0 0
    %2483 = vmatpush1.bf16.msra.mxu0 0
    %2484 = vmatprep.subr.bf16.mxu0 0
    %2485 = vmatpush1.bf16.msra.mxu0 0
    %2486 = vmatprep.subr.bf16.mxu0 0
    %2487 = vmatpush1.bf16.msra.mxu0 0
    %2488 = vmatprep.subr.bf16.mxu0 0
    %2489 = vmatpush1.bf16.msra.mxu0 0
    %2490 = vmatprep.subr.bf16.mxu0 0
    %2491 = vmatpush1.bf16.msra.mxu0 0
    %2492 = vmatprep.subr.bf16.mxu0 0
    %2493 = vmatpush1.bf16.msra.mxu0 0
    %2494 = vmatprep.subr.bf16.mxu0 0
    %2495 = vmatpush1.bf16.msra.mxu0 0
    %2496 = vmatprep.subr.bf16.mxu0 0
    %2497 = vmatpush1.bf16.msra.mxu0 0
    %2498 = vmatprep.mubr.bf16.mxu0 0
    %2499 = vmatmul.mubr.bf16.gmra.mrb[0].mxu0 %v131
    %v2500 = vpop.f32.mrb[0].mxu0
    %v2501 = vadd.f32 0.0, %v2500
    %v2502 = vpop.f32.mrb[0].mxu0
    %v2503 = vpop.f32.mrb[0].mxu0
    %v2504 = vadd.f32 0.0, %v2503
    %v2505 = vpop.f32.mrb[0].mxu0
    %2506 = vdwg.mxu0
    %s2507 = scalar_lea.vmem [#allocation7], 80
    %v2508 = vld [vmem:[%s2507] sm:$0xf]
    %v2509 = vld [vmem:[%s2507 + $0x4] sm:$0xf]
    %v2510 = vld [vmem:[%s2507 + $0x8] sm:$0xf]
    %v2511 = vld [vmem:[%s2507 + $0xc] sm:$0xf]
    %v2516 = vunpack.c.l.b16 %v2508
    %v2517 = vunpack.c.l.b16 %v2509
    %v2518 = vunpack.c.l.b16 %v2510
    %v2519 = vunpack.c.l.b16 %v2511
    %v2520 = vpack.c.b16 %v2517, %v2516
    %v2521 = vpack.c.b16 %v2519, %v2518
    %2524 = vmatprep.subr.bf16.mxu0 0
    %2525 = vmatpush1.bf16.msra.mxu0 %v2520
    %2526 = vmatprep.subr.bf16.mxu0 0
    %2527 = vmatpush1.bf16.msra.mxu0 %v2521
    %2528 = vmatprep.subr.bf16.mxu0 0
    %2529 = vmatpush1.bf16.msra.mxu0 0
    %2530 = vmatprep.subr.bf16.mxu0 0
    %2531 = vmatpush1.bf16.msra.mxu0 0
    %2532 = vmatprep.subr.bf16.mxu0 0
    %2533 = vmatpush1.bf16.msra.mxu0 0
    %2534 = vmatprep.subr.bf16.mxu0 0
    %2535 = vmatpush1.bf16.msra.mxu0 0
    %2536 = vmatprep.subr.bf16.mxu0 0
    %2537 = vmatpush1.bf16.msra.mxu0 0
    %2538 = vmatprep.subr.bf16.mxu0 0
    %2539 = vmatpush1.bf16.msra.mxu0 0
    %2540 = vmatprep.subr.bf16.mxu0 0
    %2541 = vmatpush1.bf16.msra.mxu0 0
    %2542 = vmatprep.subr.bf16.mxu0 0
    %2543 = vmatpush1.bf16.msra.mxu0 0
    %2544 = vmatprep.subr.bf16.mxu0 0
    %2545 = vmatpush1.bf16.msra.mxu0 0
    %2546 = vmatprep.subr.bf16.mxu0 0
    %2547 = vmatpush1.bf16.msra.mxu0 0
    %2548 = vmatprep.subr.bf16.mxu0 0
    %2549 = vmatpush1.bf16.msra.mxu0 0
    %2550 = vmatprep.subr.bf16.mxu0 0
    %2551 = vmatpush1.bf16.msra.mxu0 0
    %2552 = vmatprep.subr.bf16.mxu0 0
    %2553 = vmatpush1.bf16.msra.mxu0 0
    %2554 = vmatprep.subr.bf16.mxu0 0
    %2555 = vmatpush1.bf16.msra.mxu0 0
    %2556 = vmatprep.mubr.bf16.mxu0 0
    %2557 = vmatmul.mubr.bf16.gmra.mrb[0].mxu0 %v131
    %v2558 = vpop.f32.mrb[0].mxu0
    %v2559 = vadd.f32 0.0, %v2558
    %v2560 = vpop.f32.mrb[0].mxu0
    %v2561 = vpop.f32.mrb[0].mxu0
    %v2562 = vadd.f32 0.0, %v2561
    %v2563 = vpop.f32.mrb[0].mxu0
    %2564 = vdwg.mxu0
    %v2565 = vpack.c.bf16 %v2443, %v2443
    %v2566 = vpack.c.bf16 %v2446, %v2446
    %v2567 = vpack.c.bf16 %v2501, %v2501
    %v2568 = vpack.c.bf16 %v2504, %v2504
    %v2569 = vpack.c.bf16 %v2559, %v2559
    %v2570 = vpack.c.bf16 %v2562, %v2562
    %v2572 = vsel %vm129, %v2565, 0
    %v2575 = vsel %vm129, %v2567, 0
    %2577 = vmatprep.subr.bf16.mxu0 0
    %2578 = vmatpush1.bf16.xpose.msra.mxu0 %v2575
    %2579 = vmatprep.subr.bf16.mxu0 0
    %2580 = vmatpush1.bf16.xpose.msra.mxu0 0
    %2581 = vmatprep.subr.bf16.mxu0 0
    %2582 = vmatpush1.bf16.xpose.msra.mxu0 0
    %2583 = vmatprep.subr.bf16.mxu0 0
    %2584 = vmatpush1.bf16.xpose.msra.mxu0 0
    %2585 = vmatprep.subr.bf16.mxu0 0
    %2586 = vmatpush1.bf16.xpose.msra.mxu0 0
    %2587 = vmatprep.subr.bf16.mxu0 0
    %2588 = vmatpush1.bf16.xpose.msra.mxu0 0
    %2589 = vmatprep.subr.bf16.mxu0 0
    %2590 = vmatpush1.bf16.xpose.msra.mxu0 0
    %2591 = vmatprep.subr.bf16.mxu0 0
    %2592 = vmatpush1.bf16.xpose.msra.mxu0 0
    %2593 = vmatprep.subr.bf16.mxu0 0
    %2594 = vmatpush1.bf16.xpose.msra.mxu0 0
    %2595 = vmatprep.subr.bf16.mxu0 0
    %2596 = vmatpush1.bf16.xpose.msra.mxu0 0
    %2597 = vmatprep.subr.bf16.mxu0 0
    %2598 = vmatpush1.bf16.xpose.msra.mxu0 0
    %2599 = vmatprep.subr.bf16.mxu0 0
    %2600 = vmatpush1.bf16.xpose.msra.mxu0 0
    %2601 = vmatprep.subr.bf16.mxu0 0
    %2602 = vmatpush1.bf16.xpose.msra.mxu0 0
    %2603 = vmatprep.subr.bf16.mxu0 0
    %2604 = vmatpush1.bf16.xpose.msra.mxu0 0
    %2605 = vmatprep.subr.bf16.mxu0 0
    %2606 = vmatpush1.bf16.xpose.msra.mxu0 0
    %2607 = vmatprep.subr.bf16.mxu0 0
    %2608 = vmatpush1.bf16.xpose.msra.mxu0 0
    %2609 = vmatprep.mubr.bf16.mxu0 0
    %2610 = vmatmul.mubr.bf16.gmra.mrb[0].mxu0 %v2572
    %v2611 = vpop.f32.mrb[0].mxu0
    %v2612 = vadd.f32 0.0, %v2611
    %v2613 = vpop.f32.mrb[0].mxu0
    %v2614 = vpop.f32.mrb[0].mxu0
    %v2615 = vpop.f32.mrb[0].mxu0
    %2616 = vdwg.mxu0
    %v2618 = vsel %vm129, %v2566, 0
    %v2621 = vsel %vm129, %v2568, 0
    %2623 = vmatprep.subr.bf16.mxu0 0
    %2624 = vmatpush1.bf16.xpose.msra.mxu0 %v2621
    %2625 = vmatprep.subr.bf16.mxu0 0
    %2626 = vmatpush1.bf16.xpose.msra.mxu0 0
    %2627 = vmatprep.subr.bf16.mxu0 0
    %2628 = vmatpush1.bf16.xpose.msra.mxu0 0
    %2629 = vmatprep.subr.bf16.mxu0 0
    %2630 = vmatpush1.bf16.xpose.msra.mxu0 0
    %2631 = vmatprep.subr.bf16.mxu0 0
    %2632 = vmatpush1.bf16.xpose.msra.mxu0 0
    %2633 = vmatprep.subr.bf16.mxu0 0
    %2634 = vmatpush1.bf16.xpose.msra.mxu0 0
    %2635 = vmatprep.subr.bf16.mxu0 0
    %2636 = vmatpush1.bf16.xpose.msra.mxu0 0
    %2637 = vmatprep.subr.bf16.mxu0 0
    %2638 = vmatpush1.bf16.xpose.msra.mxu0 0
    %2639 = vmatprep.subr.bf16.mxu0 0
    %2640 = vmatpush1.bf16.xpose.msra.mxu0 0
    %2641 = vmatprep.subr.bf16.mxu0 0
    %2642 = vmatpush1.bf16.xpose.msra.mxu0 0
    %2643 = vmatprep.subr.bf16.mxu0 0
    %2644 = vmatpush1.bf16.xpose.msra.mxu0 0
    %2645 = vmatprep.subr.bf16.mxu0 0
    %2646 = vmatpush1.bf16.xpose.msra.mxu0 0
    %2647 = vmatprep.subr.bf16.mxu0 0
    %2648 = vmatpush1.bf16.xpose.msra.mxu0 0
    %2649 = vmatprep.subr.bf16.mxu0 0
    %2650 = vmatpush1.bf16.xpose.msra.mxu0 0
    %2651 = vmatprep.subr.bf16.mxu0 0
    %2652 = vmatpush1.bf16.xpose.msra.mxu0 0
    %2653 = vmatprep.subr.bf16.mxu0 0
    %2654 = vmatpush1.bf16.xpose.msra.mxu0 0
    %2655 = vmatprep.mubr.bf16.mxu0 0
    %2656 = vmatmul.mubr.bf16.gmra.mrb[0].mxu0 %v2618
    %v2657 = vpop.f32.mrb[0].mxu0
    %v2658 = vadd.f32 0.0, %v2657
    %v2659 = vpop.f32.mrb[0].mxu0
    %v2660 = vpop.f32.mrb[0].mxu0
    %v2661 = vpop.f32.mrb[0].mxu0
    %2662 = vdwg.mxu0
    %v2663 = vmul.f32 %v2612, 0.17677669
    %v2664 = vmul.f32 %v2658, 0.17677669
    %v2665 = vadd.f32 %v2663, %v112
    %v2666 = vadd.f32 %v2664, %v112
    %v2667 = vsel %vm390, %v2665, -inf
    %2668 = vmax.xlane.f32.xlu0 %v2667
    %v2669 = vpop.xlane.xlu0 %2668
    %v2670 = vsel %vm390, %v2666, -inf
    %2671 = vmax.xlane.f32.xlu0 %v2670
    %v2672 = vpop.xlane.xlu0 %2671
    %v2673 = vsub.f32 %v2665, %v2669
    %v2674 = vsub.f32 %v2666, %v2672
    %v2675 = vmul.f32 %v2673, 1.442695
    %v2676 = vpow.pop %v2675
    %v2677 = vmul.f32 %v2674, 1.442695
    %v2678 = vpow.pop %v2677
    %v2679 = vsel %vm390, %v2676, 0.0
    %2680 = vadd.xlane.f32.xlu0 %v2679
    %v2681 = vpop.xlane.xlu0 %2680
    %v2682 = vsel %vm390, %v2678, 0.0
    %2683 = vadd.xlane.f32.xlu0 %v2682
    %v2684 = vpop.xlane.xlu0 %2683
    %v2685 = vrcp.pop %v2681
    %v2686 = vrcp.pop %v2684
    %v2687 = vmul.f32 %v2676, %v2685
    %v2688 = vmul.f32 %v2678, %v2686
    %v2689 = vpack.c.bf16 %v2687, %v2687
    %v2690 = vpack.c.bf16 %v2688, %v2688
    %v2692 = vsel %vm390, %v2689, 0
    %v2695 = vsel %vm418, %v2569, 0
    %2697 = vmatprep.subr.bf16.mxu0 0
    %2698 = vmatpush1.bf16.msra.mxu0 %v2695
    %2699 = vmatprep.subr.bf16.mxu0 0
    %2700 = vmatpush1.bf16.msra.mxu0 0
    %2701 = vmatprep.subr.bf16.mxu0 0
    %2702 = vmatpush1.bf16.msra.mxu0 0
    %2703 = vmatprep.subr.bf16.mxu0 0
    %2704 = vmatpush1.bf16.msra.mxu0 0
    %2705 = vmatprep.subr.bf16.mxu0 0
    %2706 = vmatpush1.bf16.msra.mxu0 0
    %2707 = vmatprep.subr.bf16.mxu0 0
    %2708 = vmatpush1.bf16.msra.mxu0 0
    %2709 = vmatprep.subr.bf16.mxu0 0
    %2710 = vmatpush1.bf16.msra.mxu0 0
    %2711 = vmatprep.subr.bf16.mxu0 0
    %2712 = vmatpush1.bf16.msra.mxu0 0
    %2713 = vmatprep.subr.bf16.mxu0 0
    %2714 = vmatpush1.bf16.msra.mxu0 0
    %2715 = vmatprep.subr.bf16.mxu0 0
    %2716 = vmatpush1.bf16.msra.mxu0 0
    %2717 = vmatprep.subr.bf16.mxu0 0
    %2718 = vmatpush1.bf16.msra.mxu0 0
    %2719 = vmatprep.subr.bf16.mxu0 0
    %2720 = vmatpush1.bf16.msra.mxu0 0
    %2721 = vmatprep.subr.bf16.mxu0 0
    %2722 = vmatpush1.bf16.msra.mxu0 0
    %2723 = vmatprep.subr.bf16.mxu0 0
    %2724 = vmatpush1.bf16.msra.mxu0 0
    %2725 = vmatprep.subr.bf16.mxu0 0
    %2726 = vmatpush1.bf16.msra.mxu0 0
    %2727 = vmatprep.subr.bf16.mxu0 0
    %2728 = vmatpush1.bf16.msra.mxu0 0
    %2729 = vmatprep.mubr.bf16.mxu0 0
    %2730 = vmatmul.mubr.bf16.gmra.mrb[0].mxu0 %v2692
    %v2731 = vpop.f32.mrb[0].mxu0
    %v2732 = vadd.f32 0.0, %v2731
    %v2733 = vpop.f32.mrb[0].mxu0
    %v2734 = vpop.f32.mrb[0].mxu0
    %v2735 = vpop.f32.mrb[0].mxu0
    %2736 = vdwg.mxu0
    %v2738 = vsel %vm390, %v2690, 0
    %v2741 = vsel %vm418, %v2570, 0
    %2743 = vmatprep.subr.bf16.mxu0 0
    %2744 = vmatpush1.bf16.msra.mxu0 %v2741
    %2745 = vmatprep.subr.bf16.mxu0 0
    %2746 = vmatpush1.bf16.msra.mxu0 0
    %2747 = vmatprep.subr.bf16.mxu0 0
    %2748 = vmatpush1.bf16.msra.mxu0 0
    %2749 = vmatprep.subr.bf16.mxu0 0
    %2750 = vmatpush1.bf16.msra.mxu0 0
    %2751 = vmatprep.subr.bf16.mxu0 0
    %2752 = vmatpush1.bf16.msra.mxu0 0
    %2753 = vmatprep.subr.bf16.mxu0 0
    %2754 = vmatpush1.bf16.msra.mxu0 0
    %2755 = vmatprep.subr.bf16.mxu0 0
    %2756 = vmatpush1.bf16.msra.mxu0 0
    %2757 = vmatprep.subr.bf16.mxu0 0
    %2758 = vmatpush1.bf16.msra.mxu0 0
    %2759 = vmatprep.subr.bf16.mxu0 0
    %2760 = vmatpush1.bf16.msra.mxu0 0
    %2761 = vmatprep.subr.bf16.mxu0 0
    %2762 = vmatpush1.bf16.msra.mxu0 0
    %2763 = vmatprep.subr.bf16.mxu0 0
    %2764 = vmatpush1.bf16.msra.mxu0 0
    %2765 = vmatprep.subr.bf16.mxu0 0
    %2766 = vmatpush1.bf16.msra.mxu0 0
    %2767 = vmatprep.subr.bf16.mxu0 0
    %2768 = vmatpush1.bf16.msra.mxu0 0
    %2769 = vmatprep.subr.bf16.mxu0 0
    %2770 = vmatpush1.bf16.msra.mxu0 0
    %2771 = vmatprep.subr.bf16.mxu0 0
    %2772 = vmatpush1.bf16.msra.mxu0 0
    %2773 = vmatprep.subr.bf16.mxu0 0
    %2774 = vmatpush1.bf16.msra.mxu0 0
    %2775 = vmatprep.mubr.bf16.mxu0 0
    %2776 = vmatmul.mubr.bf16.gmra.mrb[0].mxu0 %v2738
    %v2777 = vpop.f32.mrb[0].mxu0
    %v2778 = vadd.f32 0.0, %v2777
    %v2779 = vpop.f32.mrb[0].mxu0
    %v2780 = vpop.f32.mrb[0].mxu0
    %v2781 = vpop.f32.mrb[0].mxu0
    %2782 = vdwg.mxu0
    %v2783 = vpack.c.bf16 %v2778, %v2732
    %s2784 = scalar_lea.vmem [#allocation8], 80
    %v2785 = vld [vmem:[%s2784] sm:$0xf]
    %v2786 = vld [vmem:[%s2784 + $0x4] sm:$0xf]
    %v2787 = vld [vmem:[%s2784 + $0x8] sm:$0xf]
    %v2788 = vld [vmem:[%s2784 + $0xc] sm:$0xf]
    %v2793 = vunpack.c.l.b16 %v2785
    %v2794 = vunpack.c.l.b16 %v2786
    %v2795 = vunpack.c.l.b16 %v2787
    %v2796 = vunpack.c.l.b16 %v2788
    %v2797 = vpack.c.b16 %v2794, %v2793
    %v2798 = vpack.c.b16 %v2796, %v2795
    %v2802 = vsel %vm129, %v2783, 0
    %2804 = vmatprep.subr.bf16.mxu0 0
    %2805 = vmatpush1.bf16.msra.mxu0 %v2797
    %2806 = vmatprep.subr.bf16.mxu0 0
    %2807 = vmatpush1.bf16.msra.mxu0 %v2798
    %2808 = vmatprep.subr.bf16.mxu0 0
    %2809 = vmatpush1.bf16.msra.mxu0 0
    %2810 = vmatprep.subr.bf16.mxu0 0
    %2811 = vmatpush1.bf16.msra.mxu0 0
    %2812 = vmatprep.subr.bf16.mxu0 0
    %2813 = vmatpush1.bf16.msra.mxu0 0
    %2814 = vmatprep.subr.bf16.mxu0 0
    %2815 = vmatpush1.bf16.msra.mxu0 0
    %2816 = vmatprep.subr.bf16.mxu0 0
    %2817 = vmatpush1.bf16.msra.mxu0 0
    %2818 = vmatprep.subr.bf16.mxu0 0
    %2819 = vmatpush1.bf16.msra.mxu0 0
    %2820 = vmatprep.subr.bf16.mxu0 0
    %2821 = vmatpush1.bf16.msra.mxu0 0
    %2822 = vmatprep.subr.bf16.mxu0 0
    %2823 = vmatpush1.bf16.msra.mxu0 0
    %2824 = vmatprep.subr.bf16.mxu0 0
    %2825 = vmatpush1.bf16.msra.mxu0 0
    %2826 = vmatprep.subr.bf16.mxu0 0
    %2827 = vmatpush1.bf16.msra.mxu0 0
    %2828 = vmatprep.subr.bf16.mxu0 0
    %2829 = vmatpush1.bf16.msra.mxu0 0
    %2830 = vmatprep.subr.bf16.mxu0 0
    %2831 = vmatpush1.bf16.msra.mxu0 0
    %2832 = vmatprep.subr.bf16.mxu0 0
    %2833 = vmatpush1.bf16.msra.mxu0 0
    %2834 = vmatprep.subr.bf16.mxu0 0
    %2835 = vmatpush1.bf16.msra.mxu0 0
    %2836 = vmatprep.mubr.bf16.mxu0 0
    %2837 = vmatmul.mubr.bf16.gmra.mrb[0].mxu0 %v2802
    %v2838 = vpop.f32.mrb[0].mxu0
    %v2839 = vadd.f32 0.0, %v2838
    %v2840 = vpop.f32.mrb[0].mxu0
    %v2841 = vpop.f32.mrb[0].mxu0
    %v2842 = vadd.f32 0.0, %v2841
    %v2843 = vpop.f32.mrb[0].mxu0
    %2844 = vdwg.mxu0
    %v2845 = vadd.f32 %v2389, %v2839
    %v2846 = vadd.f32 %v2390, %v2842
    %s2847 = scalar_lea.vmem [#allocation2], 96
    %v2848 = vld [vmem:[%s2847] sm:$0xf]
    %v2849 = vld [vmem:[%s2847 + $0x4] sm:$0xf]
    %v2850 = vld [vmem:[%s2847 + $0x8] sm:$0xf]
    %v2851 = vld [vmem:[%s2847 + $0xc] sm:$0xf]
    %v2856 = vunpack.c.l.b16 %v2848
    %v2857 = vunpack.c.l.b16 %v2849
    %v2858 = vunpack.c.l.b16 %v2850
    %v2859 = vunpack.c.l.b16 %v2851
    %v2860 = vpack.c.b16 %v2857, %v2856
    %v2861 = vpack.c.b16 %v2859, %v2858
    %2864 = vmatprep.subr.bf16.mxu0 0
    %2865 = vmatpush1.bf16.msra.mxu0 %v2860
    %2866 = vmatprep.subr.bf16.mxu0 0
    %2867 = vmatpush1.bf16.msra.mxu0 %v2861
    %2868 = vmatprep.subr.bf16.mxu0 0
    %2869 = vmatpush1.bf16.msra.mxu0 0
    %2870 = vmatprep.subr.bf16.mxu0 0
    %2871 = vmatpush1.bf16.msra.mxu0 0
    %2872 = vmatprep.subr.bf16.mxu0 0
    %2873 = vmatpush1.bf16.msra.mxu0 0
    %2874 = vmatprep.subr.bf16.mxu0 0
    %2875 = vmatpush1.bf16.msra.mxu0 0
    %2876 = vmatprep.subr.bf16.mxu0 0
    %2877 = vmatpush1.bf16.msra.mxu0 0
    %2878 = vmatprep.subr.bf16.mxu0 0
    %2879 = vmatpush1.bf16.msra.mxu0 0
    %2880 = vmatprep.subr.bf16.mxu0 0
    %2881 = vmatpush1.bf16.msra.mxu0 0
    %2882 = vmatprep.subr.bf16.mxu0 0
    %2883 = vmatpush1.bf16.msra.mxu0 0
    %2884 = vmatprep.subr.bf16.mxu0 0
    %2885 = vmatpush1.bf16.msra.mxu0 0
    %2886 = vmatprep.subr.bf16.mxu0 0
    %2887 = vmatpush1.bf16.msra.mxu0 0
    %2888 = vmatprep.subr.bf16.mxu0 0
    %2889 = vmatpush1.bf16.msra.mxu0 0
    %2890 = vmatprep.subr.bf16.mxu0 0
    %2891 = vmatpush1.bf16.msra.mxu0 0
    %2892 = vmatprep.subr.bf16.mxu0 0
    %2893 = vmatpush1.bf16.msra.mxu0 0
    %2894 = vmatprep.subr.bf16.mxu0 0
    %2895 = vmatpush1.bf16.msra.mxu0 0
    %2896 = vmatprep.mubr.bf16.mxu0 0
    %2897 = vmatmul.mubr.bf16.gmra.mrb[0].mxu0 %v131
    %v2898 = vpop.f32.mrb[0].mxu0
    %v2899 = vadd.f32 0.0, %v2898
    %v2900 = vpop.f32.mrb[0].mxu0
    %v2901 = vpop.f32.mrb[0].mxu0
    %v2902 = vadd.f32 0.0, %v2901
    %v2903 = vpop.f32.mrb[0].mxu0
    %2904 = vdwg.mxu0
    %s2905 = scalar_lea.vmem [#allocation5], 96
    %v2906 = vld [vmem:[%s2905] sm:$0xf]
    %v2907 = vld [vmem:[%s2905 + $0x4] sm:$0xf]
    %v2908 = vld [vmem:[%s2905 + $0x8] sm:$0xf]
    %v2909 = vld [vmem:[%s2905 + $0xc] sm:$0xf]
    %v2914 = vunpack.c.l.b16 %v2906
    %v2915 = vunpack.c.l.b16 %v2907
    %v2916 = vunpack.c.l.b16 %v2908
    %v2917 = vunpack.c.l.b16 %v2909
    %v2918 = vpack.c.b16 %v2915, %v2914
    %v2919 = vpack.c.b16 %v2917, %v2916
    %2922 = vmatprep.subr.bf16.mxu0 0
    %2923 = vmatpush1.bf16.msra.mxu0 %v2918
    %2924 = vmatprep.subr.bf16.mxu0 0
    %2925 = vmatpush1.bf16.msra.mxu0 %v2919
    %2926 = vmatprep.subr.bf16.mxu0 0
    %2927 = vmatpush1.bf16.msra.mxu0 0
    %2928 = vmatprep.subr.bf16.mxu0 0
    %2929 = vmatpush1.bf16.msra.mxu0 0
    %2930 = vmatprep.subr.bf16.mxu0 0
    %2931 = vmatpush1.bf16.msra.mxu0 0
    %2932 = vmatprep.subr.bf16.mxu0 0
    %2933 = vmatpush1.bf16.msra.mxu0 0
    %2934 = vmatprep.subr.bf16.mxu0 0
    %2935 = vmatpush1.bf16.msra.mxu0 0
    %2936 = vmatprep.subr.bf16.mxu0 0
    %2937 = vmatpush1.bf16.msra.mxu0 0
    %2938 = vmatprep.subr.bf16.mxu0 0
    %2939 = vmatpush1.bf16.msra.mxu0 0
    %2940 = vmatprep.subr.bf16.mxu0 0
    %2941 = vmatpush1.bf16.msra.mxu0 0
    %2942 = vmatprep.subr.bf16.mxu0 0
    %2943 = vmatpush1.bf16.msra.mxu0 0
    %2944 = vmatprep.subr.bf16.mxu0 0
    %2945 = vmatpush1.bf16.msra.mxu0 0
    %2946 = vmatprep.subr.bf16.mxu0 0
    %2947 = vmatpush1.bf16.msra.mxu0 0
    %2948 = vmatprep.subr.bf16.mxu0 0
    %2949 = vmatpush1.bf16.msra.mxu0 0
    %2950 = vmatprep.subr.bf16.mxu0 0
    %2951 = vmatpush1.bf16.msra.mxu0 0
    %2952 = vmatprep.subr.bf16.mxu0 0
    %2953 = vmatpush1.bf16.msra.mxu0 0
    %2954 = vmatprep.mubr.bf16.mxu0 0
    %2955 = vmatmul.mubr.bf16.gmra.mrb[0].mxu0 %v131
    %v2956 = vpop.f32.mrb[0].mxu0
    %v2957 = vadd.f32 0.0, %v2956
    %v2958 = vpop.f32.mrb[0].mxu0
    %v2959 = vpop.f32.mrb[0].mxu0
    %v2960 = vadd.f32 0.0, %v2959
    %v2961 = vpop.f32.mrb[0].mxu0
    %2962 = vdwg.mxu0
    %s2963 = scalar_lea.vmem [#allocation7], 96
    %v2964 = vld [vmem:[%s2963] sm:$0xf]
    %v2965 = vld [vmem:[%s2963 + $0x4] sm:$0xf]
    %v2966 = vld [vmem:[%s2963 + $0x8] sm:$0xf]
    %v2967 = vld [vmem:[%s2963 + $0xc] sm:$0xf]
    %v2972 = vunpack.c.l.b16 %v2964
    %v2973 = vunpack.c.l.b16 %v2965
    %v2974 = vunpack.c.l.b16 %v2966
    %v2975 = vunpack.c.l.b16 %v2967
    %v2976 = vpack.c.b16 %v2973, %v2972
    %v2977 = vpack.c.b16 %v2975, %v2974
    %2980 = vmatprep.subr.bf16.mxu0 0
    %2981 = vmatpush1.bf16.msra.mxu0 %v2976
    %2982 = vmatprep.subr.bf16.mxu0 0
    %2983 = vmatpush1.bf16.msra.mxu0 %v2977
    %2984 = vmatprep.subr.bf16.mxu0 0
    %2985 = vmatpush1.bf16.msra.mxu0 0
    %2986 = vmatprep.subr.bf16.mxu0 0
    %2987 = vmatpush1.bf16.msra.mxu0 0
    %2988 = vmatprep.subr.bf16.mxu0 0
    %2989 = vmatpush1.bf16.msra.mxu0 0
    %2990 = vmatprep.subr.bf16.mxu0 0
    %2991 = vmatpush1.bf16.msra.mxu0 0
    %2992 = vmatprep.subr.bf16.mxu0 0
    %2993 = vmatpush1.bf16.msra.mxu0 0
    %2994 = vmatprep.subr.bf16.mxu0 0
    %2995 = vmatpush1.bf16.msra.mxu0 0
    %2996 = vmatprep.subr.bf16.mxu0 0
    %2997 = vmatpush1.bf16.msra.mxu0 0
    %2998 = vmatprep.subr.bf16.mxu0 0
    %2999 = vmatpush1.bf16.msra.mxu0 0
    %3000 = vmatprep.subr.bf16.mxu0 0
    %3001 = vmatpush1.bf16.msra.mxu0 0
    %3002 = vmatprep.subr.bf16.mxu0 0
    %3003 = vmatpush1.bf16.msra.mxu0 0
    %3004 = vmatprep.subr.bf16.mxu0 0
    %3005 = vmatpush1.bf16.msra.mxu0 0
    %3006 = vmatprep.subr.bf16.mxu0 0
    %3007 = vmatpush1.bf16.msra.mxu0 0
    %3008 = vmatprep.subr.bf16.mxu0 0
    %3009 = vmatpush1.bf16.msra.mxu0 0
    %3010 = vmatprep.subr.bf16.mxu0 0
    %3011 = vmatpush1.bf16.msra.mxu0 0
    %3012 = vmatprep.mubr.bf16.mxu0 0
    %3013 = vmatmul.mubr.bf16.gmra.mrb[0].mxu0 %v131
    %v3014 = vpop.f32.mrb[0].mxu0
    %v3015 = vadd.f32 0.0, %v3014
    %v3016 = vpop.f32.mrb[0].mxu0
    %v3017 = vpop.f32.mrb[0].mxu0
    %v3018 = vadd.f32 0.0, %v3017
    %v3019 = vpop.f32.mrb[0].mxu0
    %3020 = vdwg.mxu0
    %v3021 = vpack.c.bf16 %v2899, %v2899
    %v3022 = vpack.c.bf16 %v2902, %v2902
    %v3023 = vpack.c.bf16 %v2957, %v2957
    %v3024 = vpack.c.bf16 %v2960, %v2960
    %v3025 = vpack.c.bf16 %v3015, %v3015
    %v3026 = vpack.c.bf16 %v3018, %v3018
    %v3028 = vsel %vm129, %v3021, 0
    %v3031 = vsel %vm129, %v3023, 0
    %3033 = vmatprep.subr.bf16.mxu0 0
    %3034 = vmatpush1.bf16.xpose.msra.mxu0 %v3031
    %3035 = vmatprep.subr.bf16.mxu0 0
    %3036 = vmatpush1.bf16.xpose.msra.mxu0 0
    %3037 = vmatprep.subr.bf16.mxu0 0
    %3038 = vmatpush1.bf16.xpose.msra.mxu0 0
    %3039 = vmatprep.subr.bf16.mxu0 0
    %3040 = vmatpush1.bf16.xpose.msra.mxu0 0
    %3041 = vmatprep.subr.bf16.mxu0 0
    %3042 = vmatpush1.bf16.xpose.msra.mxu0 0
    %3043 = vmatprep.subr.bf16.mxu0 0
    %3044 = vmatpush1.bf16.xpose.msra.mxu0 0
    %3045 = vmatprep.subr.bf16.mxu0 0
    %3046 = vmatpush1.bf16.xpose.msra.mxu0 0
    %3047 = vmatprep.subr.bf16.mxu0 0
    %3048 = vmatpush1.bf16.xpose.msra.mxu0 0
    %3049 = vmatprep.subr.bf16.mxu0 0
    %3050 = vmatpush1.bf16.xpose.msra.mxu0 0
    %3051 = vmatprep.subr.bf16.mxu0 0
    %3052 = vmatpush1.bf16.xpose.msra.mxu0 0
    %3053 = vmatprep.subr.bf16.mxu0 0
    %3054 = vmatpush1.bf16.xpose.msra.mxu0 0
    %3055 = vmatprep.subr.bf16.mxu0 0
    %3056 = vmatpush1.bf16.xpose.msra.mxu0 0
    %3057 = vmatprep.subr.bf16.mxu0 0
    %3058 = vmatpush1.bf16.xpose.msra.mxu0 0
    %3059 = vmatprep.subr.bf16.mxu0 0
    %3060 = vmatpush1.bf16.xpose.msra.mxu0 0
    %3061 = vmatprep.subr.bf16.mxu0 0
    %3062 = vmatpush1.bf16.xpose.msra.mxu0 0
    %3063 = vmatprep.subr.bf16.mxu0 0
    %3064 = vmatpush1.bf16.xpose.msra.mxu0 0
    %3065 = vmatprep.mubr.bf16.mxu0 0
    %3066 = vmatmul.mubr.bf16.gmra.mrb[0].mxu0 %v3028
    %v3067 = vpop.f32.mrb[0].mxu0
    %v3068 = vadd.f32 0.0, %v3067
    %v3069 = vpop.f32.mrb[0].mxu0
    %v3070 = vpop.f32.mrb[0].mxu0
    %v3071 = vpop.f32.mrb[0].mxu0
    %3072 = vdwg.mxu0
    %v3074 = vsel %vm129, %v3022, 0
    %v3077 = vsel %vm129, %v3024, 0
    %3079 = vmatprep.subr.bf16.mxu0 0
    %3080 = vmatpush1.bf16.xpose.msra.mxu0 %v3077
    %3081 = vmatprep.subr.bf16.mxu0 0
    %3082 = vmatpush1.bf16.xpose.msra.mxu0 0
    %3083 = vmatprep.subr.bf16.mxu0 0
    %3084 = vmatpush1.bf16.xpose.msra.mxu0 0
    %3085 = vmatprep.subr.bf16.mxu0 0
    %3086 = vmatpush1.bf16.xpose.msra.mxu0 0
    %3087 = vmatprep.subr.bf16.mxu0 0
    %3088 = vmatpush1.bf16.xpose.msra.mxu0 0
    %3089 = vmatprep.subr.bf16.mxu0 0
    %3090 = vmatpush1.bf16.xpose.msra.mxu0 0
    %3091 = vmatprep.subr.bf16.mxu0 0
    %3092 = vmatpush1.bf16.xpose.msra.mxu0 0
    %3093 = vmatprep.subr.bf16.mxu0 0
    %3094 = vmatpush1.bf16.xpose.msra.mxu0 0
    %3095 = vmatprep.subr.bf16.mxu0 0
    %3096 = vmatpush1.bf16.xpose.msra.mxu0 0
    %3097 = vmatprep.subr.bf16.mxu0 0
    %3098 = vmatpush1.bf16.xpose.msra.mxu0 0
    %3099 = vmatprep.subr.bf16.mxu0 0
    %3100 = vmatpush1.bf16.xpose.msra.mxu0 0
    %3101 = vmatprep.subr.bf16.mxu0 0
    %3102 = vmatpush1.bf16.xpose.msra.mxu0 0
    %3103 = vmatprep.subr.bf16.mxu0 0
    %3104 = vmatpush1.bf16.xpose.msra.mxu0 0
    %3105 = vmatprep.subr.bf16.mxu0 0
    %3106 = vmatpush1.bf16.xpose.msra.mxu0 0
    %3107 = vmatprep.subr.bf16.mxu0 0
    %3108 = vmatpush1.bf16.xpose.msra.mxu0 0
    %3109 = vmatprep.subr.bf16.mxu0 0
    %3110 = vmatpush1.bf16.xpose.msra.mxu0 0
    %3111 = vmatprep.mubr.bf16.mxu0 0
    %3112 = vmatmul.mubr.bf16.gmra.mrb[0].mxu0 %v3074
    %v3113 = vpop.f32.mrb[0].mxu0
    %v3114 = vadd.f32 0.0, %v3113
    %v3115 = vpop.f32.mrb[0].mxu0
    %v3116 = vpop.f32.mrb[0].mxu0
    %v3117 = vpop.f32.mrb[0].mxu0
    %3118 = vdwg.mxu0
    %v3119 = vmul.f32 %v3068, 0.17677669
    %v3120 = vmul.f32 %v3114, 0.17677669
    %v3121 = vadd.f32 %v3119, %v112
    %v3122 = vadd.f32 %v3120, %v112
    %v3123 = vsel %vm390, %v3121, -inf
    %3124 = vmax.xlane.f32.xlu0 %v3123
    %v3125 = vpop.xlane.xlu0 %3124
    %v3126 = vsel %vm390, %v3122, -inf
    %3127 = vmax.xlane.f32.xlu0 %v3126
    %v3128 = vpop.xlane.xlu0 %3127
    %v3129 = vsub.f32 %v3121, %v3125
    %v3130 = vsub.f32 %v3122, %v3128
    %v3131 = vmul.f32 %v3129, 1.442695
    %v3132 = vpow.pop %v3131
    %v3133 = vmul.f32 %v3130, 1.442695
    %v3134 = vpow.pop %v3133
    %v3135 = vsel %vm390, %v3132, 0.0
    %3136 = vadd.xlane.f32.xlu0 %v3135
    %v3137 = vpop.xlane.xlu0 %3136
    %v3138 = vsel %vm390, %v3134, 0.0
    %3139 = vadd.xlane.f32.xlu0 %v3138
    %v3140 = vpop.xlane.xlu0 %3139
    %v3141 = vrcp.pop %v3137
    %v3142 = vrcp.pop %v3140
    %v3143 = vmul.f32 %v3132, %v3141
    %v3144 = vmul.f32 %v3134, %v3142
    %v3145 = vpack.c.bf16 %v3143, %v3143
    %v3146 = vpack.c.bf16 %v3144, %v3144
    %v3148 = vsel %vm390, %v3145, 0
    %v3151 = vsel %vm418, %v3025, 0
    %3153 = vmatprep.subr.bf16.mxu0 0
    %3154 = vmatpush1.bf16.msra.mxu0 %v3151
    %3155 = vmatprep.subr.bf16.mxu0 0
    %3156 = vmatpush1.bf16.msra.mxu0 0
    %3157 = vmatprep.subr.bf16.mxu0 0
    %3158 = vmatpush1.bf16.msra.mxu0 0
    %3159 = vmatprep.subr.bf16.mxu0 0
    %3160 = vmatpush1.bf16.msra.mxu0 0
    %3161 = vmatprep.subr.bf16.mxu0 0
    %3162 = vmatpush1.bf16.msra.mxu0 0
    %3163 = vmatprep.subr.bf16.mxu0 0
    %3164 = vmatpush1.bf16.msra.mxu0 0
    %3165 = vmatprep.subr.bf16.mxu0 0
    %3166 = vmatpush1.bf16.msra.mxu0 0
    %3167 = vmatprep.subr.bf16.mxu0 0
    %3168 = vmatpush1.bf16.msra.mxu0 0
    %3169 = vmatprep.subr.bf16.mxu0 0
    %3170 = vmatpush1.bf16.msra.mxu0 0
    %3171 = vmatprep.subr.bf16.mxu0 0
    %3172 = vmatpush1.bf16.msra.mxu0 0
    %3173 = vmatprep.subr.bf16.mxu0 0
    %3174 = vmatpush1.bf16.msra.mxu0 0
    %3175 = vmatprep.subr.bf16.mxu0 0
    %3176 = vmatpush1.bf16.msra.mxu0 0
    %3177 = vmatprep.subr.bf16.mxu0 0
    %3178 = vmatpush1.bf16.msra.mxu0 0
    %3179 = vmatprep.subr.bf16.mxu0 0
    %3180 = vmatpush1.bf16.msra.mxu0 0
    %3181 = vmatprep.subr.bf16.mxu0 0
    %3182 = vmatpush1.bf16.msra.mxu0 0
    %3183 = vmatprep.subr.bf16.mxu0 0
    %3184 = vmatpush1.bf16.msra.mxu0 0
    %3185 = vmatprep.mubr.bf16.mxu0 0
    %3186 = vmatmul.mubr.bf16.gmra.mrb[0].mxu0 %v3148
    %v3187 = vpop.f32.mrb[0].mxu0
    %v3188 = vadd.f32 0.0, %v3187
    %v3189 = vpop.f32.mrb[0].mxu0
    %v3190 = vpop.f32.mrb[0].mxu0
    %v3191 = vpop.f32.mrb[0].mxu0
    %3192 = vdwg.mxu0
    %v3194 = vsel %vm390, %v3146, 0
    %v3197 = vsel %vm418, %v3026, 0
    %3199 = vmatprep.subr.bf16.mxu0 0
    %3200 = vmatpush1.bf16.msra.mxu0 %v3197
    %3201 = vmatprep.subr.bf16.mxu0 0
    %3202 = vmatpush1.bf16.msra.mxu0 0
    %3203 = vmatprep.subr.bf16.mxu0 0
    %3204 = vmatpush1.bf16.msra.mxu0 0
    %3205 = vmatprep.subr.bf16.mxu0 0
    %3206 = vmatpush1.bf16.msra.mxu0 0
    %3207 = vmatprep.subr.bf16.mxu0 0
    %3208 = vmatpush1.bf16.msra.mxu0 0
    %3209 = vmatprep.subr.bf16.mxu0 0
    %3210 = vmatpush1.bf16.msra.mxu0 0
    %3211 = vmatprep.subr.bf16.mxu0 0
    %3212 = vmatpush1.bf16.msra.mxu0 0
    %3213 = vmatprep.subr.bf16.mxu0 0
    %3214 = vmatpush1.bf16.msra.mxu0 0
    %3215 = vmatprep.subr.bf16.mxu0 0
    %3216 = vmatpush1.bf16.msra.mxu0 0
    %3217 = vmatprep.subr.bf16.mxu0 0
    %3218 = vmatpush1.bf16.msra.mxu0 0
    %3219 = vmatprep.subr.bf16.mxu0 0
    %3220 = vmatpush1.bf16.msra.mxu0 0
    %3221 = vmatprep.subr.bf16.mxu0 0
    %3222 = vmatpush1.bf16.msra.mxu0 0
    %3223 = vmatprep.subr.bf16.mxu0 0
    %3224 = vmatpush1.bf16.msra.mxu0 0
    %3225 = vmatprep.subr.bf16.mxu0 0
    %3226 = vmatpush1.bf16.msra.mxu0 0
    %3227 = vmatprep.subr.bf16.mxu0 0
    %3228 = vmatpush1.bf16.msra.mxu0 0
    %3229 = vmatprep.subr.bf16.mxu0 0
    %3230 = vmatpush1.bf16.msra.mxu0 0
    %3231 = vmatprep.mubr.bf16.mxu0 0
    %3232 = vmatmul.mubr.bf16.gmra.mrb[0].mxu0 %v3194
    %v3233 = vpop.f32.mrb[0].mxu0
    %v3234 = vadd.f32 0.0, %v3233
    %v3235 = vpop.f32.mrb[0].mxu0
    %v3236 = vpop.f32.mrb[0].mxu0
    %v3237 = vpop.f32.mrb[0].mxu0
    %3238 = vdwg.mxu0
    %v3239 = vpack.c.bf16 %v3234, %v3188
    %s3240 = scalar_lea.vmem [#allocation8], 96
    %v3241 = vld [vmem:[%s3240] sm:$0xf]
    %v3242 = vld [vmem:[%s3240 + $0x4] sm:$0xf]
    %v3243 = vld [vmem:[%s3240 + $0x8] sm:$0xf]
    %v3244 = vld [vmem:[%s3240 + $0xc] sm:$0xf]
    %v3249 = vunpack.c.l.b16 %v3241
    %v3250 = vunpack.c.l.b16 %v3242
    %v3251 = vunpack.c.l.b16 %v3243
    %v3252 = vunpack.c.l.b16 %v3244
    %v3253 = vpack.c.b16 %v3250, %v3249
    %v3254 = vpack.c.b16 %v3252, %v3251
    %v3258 = vsel %vm129, %v3239, 0
    %3260 = vmatprep.subr.bf16.mxu0 0
    %3261 = vmatpush1.bf16.msra.mxu0 %v3253
    %3262 = vmatprep.subr.bf16.mxu0 0
    %3263 = vmatpush1.bf16.msra.mxu0 %v3254
    %3264 = vmatprep.subr.bf16.mxu0 0
    %3265 = vmatpush1.bf16.msra.mxu0 0
    %3266 = vmatprep.subr.bf16.mxu0 0
    %3267 = vmatpush1.bf16.msra.mxu0 0
    %3268 = vmatprep.subr.bf16.mxu0 0
    %3269 = vmatpush1.bf16.msra.mxu0 0
    %3270 = vmatprep.subr.bf16.mxu0 0
    %3271 = vmatpush1.bf16.msra.mxu0 0
    %3272 = vmatprep.subr.bf16.mxu0 0
    %3273 = vmatpush1.bf16.msra.mxu0 0
    %3274 = vmatprep.subr.bf16.mxu0 0
    %3275 = vmatpush1.bf16.msra.mxu0 0
    %3276 = vmatprep.subr.bf16.mxu0 0
    %3277 = vmatpush1.bf16.msra.mxu0 0
    %3278 = vmatprep.subr.bf16.mxu0 0
    %3279 = vmatpush1.bf16.msra.mxu0 0
    %3280 = vmatprep.subr.bf16.mxu0 0
    %3281 = vmatpush1.bf16.msra.mxu0 0
    %3282 = vmatprep.subr.bf16.mxu0 0
    %3283 = vmatpush1.bf16.msra.mxu0 0
    %3284 = vmatprep.subr.bf16.mxu0 0
    %3285 = vmatpush1.bf16.msra.mxu0 0
    %3286 = vmatprep.subr.bf16.mxu0 0
    %3287 = vmatpush1.bf16.msra.mxu0 0
    %3288 = vmatprep.subr.bf16.mxu0 0
    %3289 = vmatpush1.bf16.msra.mxu0 0
    %3290 = vmatprep.subr.bf16.mxu0 0
    %3291 = vmatpush1.bf16.msra.mxu0 0
    %3292 = vmatprep.mubr.bf16.mxu0 0
    %3293 = vmatmul.mubr.bf16.gmra.mrb[0].mxu0 %v3258
    %v3294 = vpop.f32.mrb[0].mxu0
    %v3295 = vadd.f32 0.0, %v3294
    %v3296 = vpop.f32.mrb[0].mxu0
    %v3297 = vpop.f32.mrb[0].mxu0
    %v3298 = vadd.f32 0.0, %v3297
    %v3299 = vpop.f32.mrb[0].mxu0
    %3300 = vdwg.mxu0
    %v3301 = vadd.f32 %v2845, %v3295
    %v3302 = vadd.f32 %v2846, %v3298
    %s3303 = scalar_lea.vmem [#allocation2], 112
    %v3304 = vld [vmem:[%s3303] sm:$0xf]
    %v3305 = vld [vmem:[%s3303 + $0x4] sm:$0xf]
    %v3306 = vld [vmem:[%s3303 + $0x8] sm:$0xf]
    %v3307 = vld [vmem:[%s3303 + $0xc] sm:$0xf]
    %v3312 = vunpack.c.l.b16 %v3304
    %v3313 = vunpack.c.l.b16 %v3305
    %v3314 = vunpack.c.l.b16 %v3306
    %v3315 = vunpack.c.l.b16 %v3307
    %v3316 = vpack.c.b16 %v3313, %v3312
    %v3317 = vpack.c.b16 %v3315, %v3314
    %3320 = vmatprep.subr.bf16.mxu0 0
    %3321 = vmatpush1.bf16.msra.mxu0 %v3316
    %3322 = vmatprep.subr.bf16.mxu0 0
    %3323 = vmatpush1.bf16.msra.mxu0 %v3317
    %3324 = vmatprep.subr.bf16.mxu0 0
    %3325 = vmatpush1.bf16.msra.mxu0 0
    %3326 = vmatprep.subr.bf16.mxu0 0
    %3327 = vmatpush1.bf16.msra.mxu0 0
    %3328 = vmatprep.subr.bf16.mxu0 0
    %3329 = vmatpush1.bf16.msra.mxu0 0
    %3330 = vmatprep.subr.bf16.mxu0 0
    %3331 = vmatpush1.bf16.msra.mxu0 0
    %3332 = vmatprep.subr.bf16.mxu0 0
    %3333 = vmatpush1.bf16.msra.mxu0 0
    %3334 = vmatprep.subr.bf16.mxu0 0
    %3335 = vmatpush1.bf16.msra.mxu0 0
    %3336 = vmatprep.subr.bf16.mxu0 0
    %3337 = vmatpush1.bf16.msra.mxu0 0
    %3338 = vmatprep.subr.bf16.mxu0 0
    %3339 = vmatpush1.bf16.msra.mxu0 0
    %3340 = vmatprep.subr.bf16.mxu0 0
    %3341 = vmatpush1.bf16.msra.mxu0 0
    %3342 = vmatprep.subr.bf16.mxu0 0
    %3343 = vmatpush1.bf16.msra.mxu0 0
    %3344 = vmatprep.subr.bf16.mxu0 0
    %3345 = vmatpush1.bf16.msra.mxu0 0
    %3346 = vmatprep.subr.bf16.mxu0 0
    %3347 = vmatpush1.bf16.msra.mxu0 0
    %3348 = vmatprep.subr.bf16.mxu0 0
    %3349 = vmatpush1.bf16.msra.mxu0 0
    %3350 = vmatprep.subr.bf16.mxu0 0
    %3351 = vmatpush1.bf16.msra.mxu0 0
    %3352 = vmatprep.mubr.bf16.mxu0 0
    %3353 = vmatmul.mubr.bf16.gmra.mrb[0].mxu0 %v131
    %v3354 = vpop.f32.mrb[0].mxu0
    %v3355 = vadd.f32 0.0, %v3354
    %v3356 = vpop.f32.mrb[0].mxu0
    %v3357 = vpop.f32.mrb[0].mxu0
    %v3358 = vadd.f32 0.0, %v3357
    %v3359 = vpop.f32.mrb[0].mxu0
    %3360 = vdwg.mxu0
    %s3361 = scalar_lea.vmem [#allocation5], 112
    %v3362 = vld [vmem:[%s3361] sm:$0xf]
    %v3363 = vld [vmem:[%s3361 + $0x4] sm:$0xf]
    %v3364 = vld [vmem:[%s3361 + $0x8] sm:$0xf]
    %v3365 = vld [vmem:[%s3361 + $0xc] sm:$0xf]
    %v3370 = vunpack.c.l.b16 %v3362
    %v3371 = vunpack.c.l.b16 %v3363
    %v3372 = vunpack.c.l.b16 %v3364
    %v3373 = vunpack.c.l.b16 %v3365
    %v3374 = vpack.c.b16 %v3371, %v3370
    %v3375 = vpack.c.b16 %v3373, %v3372
    %3378 = vmatprep.subr.bf16.mxu0 0
    %3379 = vmatpush1.bf16.msra.mxu0 %v3374
    %3380 = vmatprep.subr.bf16.mxu0 0
    %3381 = vmatpush1.bf16.msra.mxu0 %v3375
    %3382 = vmatprep.subr.bf16.mxu0 0
    %3383 = vmatpush1.bf16.msra.mxu0 0
    %3384 = vmatprep.subr.bf16.mxu0 0
    %3385 = vmatpush1.bf16.msra.mxu0 0
    %3386 = vmatprep.subr.bf16.mxu0 0
    %3387 = vmatpush1.bf16.msra.mxu0 0
    %3388 = vmatprep.subr.bf16.mxu0 0
    %3389 = vmatpush1.bf16.msra.mxu0 0
    %3390 = vmatprep.subr.bf16.mxu0 0
    %3391 = vmatpush1.bf16.msra.mxu0 0
    %3392 = vmatprep.subr.bf16.mxu0 0
    %3393 = vmatpush1.bf16.msra.mxu0 0
    %3394 = vmatprep.subr.bf16.mxu0 0
    %3395 = vmatpush1.bf16.msra.mxu0 0
    %3396 = vmatprep.subr.bf16.mxu0 0
    %3397 = vmatpush1.bf16.msra.mxu0 0
    %3398 = vmatprep.subr.bf16.mxu0 0
    %3399 = vmatpush1.bf16.msra.mxu0 0
    %3400 = vmatprep.subr.bf16.mxu0 0
    %3401 = vmatpush1.bf16.msra.mxu0 0
    %3402 = vmatprep.subr.bf16.mxu0 0
    %3403 = vmatpush1.bf16.msra.mxu0 0
    %3404 = vmatprep.subr.bf16.mxu0 0
    %3405 = vmatpush1.bf16.msra.mxu0 0
    %3406 = vmatprep.subr.bf16.mxu0 0
    %3407 = vmatpush1.bf16.msra.mxu0 0
    %3408 = vmatprep.subr.bf16.mxu0 0
    %3409 = vmatpush1.bf16.msra.mxu0 0
    %3410 = vmatprep.mubr.bf16.mxu0 0
    %3411 = vmatmul.mubr.bf16.gmra.mrb[0].mxu0 %v131
    %v3412 = vpop.f32.mrb[0].mxu0
    %v3413 = vadd.f32 0.0, %v3412
    %v3414 = vpop.f32.mrb[0].mxu0
    %v3415 = vpop.f32.mrb[0].mxu0
    %v3416 = vadd.f32 0.0, %v3415
    %v3417 = vpop.f32.mrb[0].mxu0
    %3418 = vdwg.mxu0
    %s3419 = scalar_lea.vmem [#allocation7], 112
    %v3420 = vld [vmem:[%s3419] sm:$0xf]
    %v3421 = vld [vmem:[%s3419 + $0x4] sm:$0xf]
    %v3422 = vld [vmem:[%s3419 + $0x8] sm:$0xf]
    %v3423 = vld [vmem:[%s3419 + $0xc] sm:$0xf]
    %v3428 = vunpack.c.l.b16 %v3420
    %v3429 = vunpack.c.l.b16 %v3421
    %v3430 = vunpack.c.l.b16 %v3422
    %v3431 = vunpack.c.l.b16 %v3423
    %v3432 = vpack.c.b16 %v3429, %v3428
    %v3433 = vpack.c.b16 %v3431, %v3430
    %3436 = vmatprep.subr.bf16.mxu0 0
    %3437 = vmatpush1.bf16.msra.mxu0 %v3432
    %3438 = vmatprep.subr.bf16.mxu0 0
    %3439 = vmatpush1.bf16.msra.mxu0 %v3433
    %3440 = vmatprep.subr.bf16.mxu0 0
    %3441 = vmatpush1.bf16.msra.mxu0 0
    %3442 = vmatprep.subr.bf16.mxu0 0
    %3443 = vmatpush1.bf16.msra.mxu0 0
    %3444 = vmatprep.subr.bf16.mxu0 0
    %3445 = vmatpush1.bf16.msra.mxu0 0
    %3446 = vmatprep.subr.bf16.mxu0 0
    %3447 = vmatpush1.bf16.msra.mxu0 0
    %3448 = vmatprep.subr.bf16.mxu0 0
    %3449 = vmatpush1.bf16.msra.mxu0 0
    %3450 = vmatprep.subr.bf16.mxu0 0
    %3451 = vmatpush1.bf16.msra.mxu0 0
    %3452 = vmatprep.subr.bf16.mxu0 0
    %3453 = vmatpush1.bf16.msra.mxu0 0
    %3454 = vmatprep.subr.bf16.mxu0 0
    %3455 = vmatpush1.bf16.msra.mxu0 0
    %3456 = vmatprep.subr.bf16.mxu0 0
    %3457 = vmatpush1.bf16.msra.mxu0 0
    %3458 = vmatprep.subr.bf16.mxu0 0
    %3459 = vmatpush1.bf16.msra.mxu0 0
    %3460 = vmatprep.subr.bf16.mxu0 0
    %3461 = vmatpush1.bf16.msra.mxu0 0
    %3462 = vmatprep.subr.bf16.mxu0 0
    %3463 = vmatpush1.bf16.msra.mxu0 0
    %3464 = vmatprep.subr.bf16.mxu0 0
    %3465 = vmatpush1.bf16.msra.mxu0 0
    %3466 = vmatprep.subr.bf16.mxu0 0
    %3467 = vmatpush1.bf16.msra.mxu0 0
    %3468 = vmatprep.mubr.bf16.mxu0 0
    %3469 = vmatmul.mubr.bf16.gmra.mrb[0].mxu0 %v131
    %v3470 = vpop.f32.mrb[0].mxu0
    %v3471 = vadd.f32 0.0, %v3470
    %v3472 = vpop.f32.mrb[0].mxu0
    %v3473 = vpop.f32.mrb[0].mxu0
    %v3474 = vadd.f32 0.0, %v3473
    %v3475 = vpop.f32.mrb[0].mxu0
    %3476 = vdwg.mxu0
    %v3477 = vpack.c.bf16 %v3355, %v3355
    %v3478 = vpack.c.bf16 %v3358, %v3358
    %v3479 = vpack.c.bf16 %v3413, %v3413
    %v3480 = vpack.c.bf16 %v3416, %v3416
    %v3481 = vpack.c.bf16 %v3471, %v3471
    %v3482 = vpack.c.bf16 %v3474, %v3474
    %v3484 = vsel %vm129, %v3477, 0
    %v3487 = vsel %vm129, %v3479, 0
    %3489 = vmatprep.subr.bf16.mxu0 0
    %3490 = vmatpush1.bf16.xpose.msra.mxu0 %v3487
    %3491 = vmatprep.subr.bf16.mxu0 0
    %3492 = vmatpush1.bf16.xpose.msra.mxu0 0
    %3493 = vmatprep.subr.bf16.mxu0 0
    %3494 = vmatpush1.bf16.xpose.msra.mxu0 0
    %3495 = vmatprep.subr.bf16.mxu0 0
    %3496 = vmatpush1.bf16.xpose.msra.mxu0 0
    %3497 = vmatprep.subr.bf16.mxu0 0
    %3498 = vmatpush1.bf16.xpose.msra.mxu0 0
    %3499 = vmatprep.subr.bf16.mxu0 0
    %3500 = vmatpush1.bf16.xpose.msra.mxu0 0
    %3501 = vmatprep.subr.bf16.mxu0 0
    %3502 = vmatpush1.bf16.xpose.msra.mxu0 0
    %3503 = vmatprep.subr.bf16.mxu0 0
    %3504 = vmatpush1.bf16.xpose.msra.mxu0 0
    %3505 = vmatprep.subr.bf16.mxu0 0
    %3506 = vmatpush1.bf16.xpose.msra.mxu0 0
    %3507 = vmatprep.subr.bf16.mxu0 0
    %3508 = vmatpush1.bf16.xpose.msra.mxu0 0
    %3509 = vmatprep.subr.bf16.mxu0 0
    %3510 = vmatpush1.bf16.xpose.msra.mxu0 0
    %3511 = vmatprep.subr.bf16.mxu0 0
    %3512 = vmatpush1.bf16.xpose.msra.mxu0 0
    %3513 = vmatprep.subr.bf16.mxu0 0
    %3514 = vmatpush1.bf16.xpose.msra.mxu0 0
    %3515 = vmatprep.subr.bf16.mxu0 0
    %3516 = vmatpush1.bf16.xpose.msra.mxu0 0
    %3517 = vmatprep.subr.bf16.mxu0 0
    %3518 = vmatpush1.bf16.xpose.msra.mxu0 0
    %3519 = vmatprep.subr.bf16.mxu0 0
    %3520 = vmatpush1.bf16.xpose.msra.mxu0 0
    %3521 = vmatprep.mubr.bf16.mxu0 0
    %3522 = vmatmul.mubr.bf16.gmra.mrb[0].mxu0 %v3484
    %v3523 = vpop.f32.mrb[0].mxu0
    %v3524 = vadd.f32 0.0, %v3523
    %v3525 = vpop.f32.mrb[0].mxu0
    %v3526 = vpop.f32.mrb[0].mxu0
    %v3527 = vpop.f32.mrb[0].mxu0
    %3528 = vdwg.mxu0
    %v3530 = vsel %vm129, %v3478, 0
    %v3533 = vsel %vm129, %v3480, 0
    %3535 = vmatprep.subr.bf16.mxu0 0
    %3536 = vmatpush1.bf16.xpose.msra.mxu0 %v3533
    %3537 = vmatprep.subr.bf16.mxu0 0
    %3538 = vmatpush1.bf16.xpose.msra.mxu0 0
    %3539 = vmatprep.subr.bf16.mxu0 0
    %3540 = vmatpush1.bf16.xpose.msra.mxu0 0
    %3541 = vmatprep.subr.bf16.mxu0 0
    %3542 = vmatpush1.bf16.xpose.msra.mxu0 0
    %3543 = vmatprep.subr.bf16.mxu0 0
    %3544 = vmatpush1.bf16.xpose.msra.mxu0 0
    %3545 = vmatprep.subr.bf16.mxu0 0
    %3546 = vmatpush1.bf16.xpose.msra.mxu0 0
    %3547 = vmatprep.subr.bf16.mxu0 0
    %3548 = vmatpush1.bf16.xpose.msra.mxu0 0
    %3549 = vmatprep.subr.bf16.mxu0 0
    %3550 = vmatpush1.bf16.xpose.msra.mxu0 0
    %3551 = vmatprep.subr.bf16.mxu0 0
    %3552 = vmatpush1.bf16.xpose.msra.mxu0 0
    %3553 = vmatprep.subr.bf16.mxu0 0
    %3554 = vmatpush1.bf16.xpose.msra.mxu0 0
    %3555 = vmatprep.subr.bf16.mxu0 0
    %3556 = vmatpush1.bf16.xpose.msra.mxu0 0
    %3557 = vmatprep.subr.bf16.mxu0 0
    %3558 = vmatpush1.bf16.xpose.msra.mxu0 0
    %3559 = vmatprep.subr.bf16.mxu0 0
    %3560 = vmatpush1.bf16.xpose.msra.mxu0 0
    %3561 = vmatprep.subr.bf16.mxu0 0
    %3562 = vmatpush1.bf16.xpose.msra.mxu0 0
    %3563 = vmatprep.subr.bf16.mxu0 0
    %3564 = vmatpush1.bf16.xpose.msra.mxu0 0
    %3565 = vmatprep.subr.bf16.mxu0 0
    %3566 = vmatpush1.bf16.xpose.msra.mxu0 0
    %3567 = vmatprep.mubr.bf16.mxu0 0
    %3568 = vmatmul.mubr.bf16.gmra.mrb[0].mxu0 %v3530
    %v3569 = vpop.f32.mrb[0].mxu0
    %v3570 = vadd.f32 0.0, %v3569
    %v3571 = vpop.f32.mrb[0].mxu0
    %v3572 = vpop.f32.mrb[0].mxu0
    %v3573 = vpop.f32.mrb[0].mxu0
    %3574 = vdwg.mxu0
    %v3575 = vmul.f32 %v3524, 0.17677669
    %v3576 = vmul.f32 %v3570, 0.17677669
    %v3577 = vadd.f32 %v3575, %v112
    %v3578 = vadd.f32 %v3576, %v112
    %v3579 = vsel %vm390, %v3577, -inf
    %3580 = vmax.xlane.f32.xlu0 %v3579
    %v3581 = vpop.xlane.xlu0 %3580
    %v3582 = vsel %vm390, %v3578, -inf
    %3583 = vmax.xlane.f32.xlu0 %v3582
    %v3584 = vpop.xlane.xlu0 %3583
    %v3585 = vsub.f32 %v3577, %v3581
    %v3586 = vsub.f32 %v3578, %v3584
    %v3587 = vmul.f32 %v3585, 1.442695
    %v3588 = vpow.pop %v3587
    %v3589 = vmul.f32 %v3586, 1.442695
    %v3590 = vpow.pop %v3589
    %v3591 = vsel %vm390, %v3588, 0.0
    %3592 = vadd.xlane.f32.xlu0 %v3591
    %v3593 = vpop.xlane.xlu0 %3592
    %v3594 = vsel %vm390, %v3590, 0.0
    %3595 = vadd.xlane.f32.xlu0 %v3594
    %v3596 = vpop.xlane.xlu0 %3595
    %v3597 = vrcp.pop %v3593
    %v3598 = vrcp.pop %v3596
    %v3599 = vmul.f32 %v3588, %v3597
    %v3600 = vmul.f32 %v3590, %v3598
    %v3601 = vpack.c.bf16 %v3599, %v3599
    %v3602 = vpack.c.bf16 %v3600, %v3600
    %v3604 = vsel %vm390, %v3601, 0
    %v3607 = vsel %vm418, %v3481, 0
    %3609 = vmatprep.subr.bf16.mxu0 0
    %3610 = vmatpush1.bf16.msra.mxu0 %v3607
    %3611 = vmatprep.subr.bf16.mxu0 0
    %3612 = vmatpush1.bf16.msra.mxu0 0
    %3613 = vmatprep.subr.bf16.mxu0 0
    %3614 = vmatpush1.bf16.msra.mxu0 0
    %3615 = vmatprep.subr.bf16.mxu0 0
    %3616 = vmatpush1.bf16.msra.mxu0 0
    %3617 = vmatprep.subr.bf16.mxu0 0
    %3618 = vmatpush1.bf16.msra.mxu0 0
    %3619 = vmatprep.subr.bf16.mxu0 0
    %3620 = vmatpush1.bf16.msra.mxu0 0
    %3621 = vmatprep.subr.bf16.mxu0 0
    %3622 = vmatpush1.bf16.msra.mxu0 0
    %3623 = vmatprep.subr.bf16.mxu0 0
    %3624 = vmatpush1.bf16.msra.mxu0 0
    %3625 = vmatprep.subr.bf16.mxu0 0
    %3626 = vmatpush1.bf16.msra.mxu0 0
    %3627 = vmatprep.subr.bf16.mxu0 0
    %3628 = vmatpush1.bf16.msra.mxu0 0
    %3629 = vmatprep.subr.bf16.mxu0 0
    %3630 = vmatpush1.bf16.msra.mxu0 0
    %3631 = vmatprep.subr.bf16.mxu0 0
    %3632 = vmatpush1.bf16.msra.mxu0 0
    %3633 = vmatprep.subr.bf16.mxu0 0
    %3634 = vmatpush1.bf16.msra.mxu0 0
    %3635 = vmatprep.subr.bf16.mxu0 0
    %3636 = vmatpush1.bf16.msra.mxu0 0
    %3637 = vmatprep.subr.bf16.mxu0 0
    %3638 = vmatpush1.bf16.msra.mxu0 0
    %3639 = vmatprep.subr.bf16.mxu0 0
    %3640 = vmatpush1.bf16.msra.mxu0 0
    %3641 = vmatprep.mubr.bf16.mxu0 0
    %3642 = vmatmul.mubr.bf16.gmra.mrb[0].mxu0 %v3604
    %v3643 = vpop.f32.mrb[0].mxu0
    %v3644 = vadd.f32 0.0, %v3643
    %v3645 = vpop.f32.mrb[0].mxu0
    %v3646 = vpop.f32.mrb[0].mxu0
    %v3647 = vpop.f32.mrb[0].mxu0
    %3648 = vdwg.mxu0
    %v3650 = vsel %vm390, %v3602, 0
    %v3653 = vsel %vm418, %v3482, 0
    %3655 = vmatprep.subr.bf16.mxu0 0
    %3656 = vmatpush1.bf16.msra.mxu0 %v3653
    %3657 = vmatprep.subr.bf16.mxu0 0
    %3658 = vmatpush1.bf16.msra.mxu0 0
    %3659 = vmatprep.subr.bf16.mxu0 0
    %3660 = vmatpush1.bf16.msra.mxu0 0
    %3661 = vmatprep.subr.bf16.mxu0 0
    %3662 = vmatpush1.bf16.msra.mxu0 0
    %3663 = vmatprep.subr.bf16.mxu0 0
    %3664 = vmatpush1.bf16.msra.mxu0 0
    %3665 = vmatprep.subr.bf16.mxu0 0
    %3666 = vmatpush1.bf16.msra.mxu0 0
    %3667 = vmatprep.subr.bf16.mxu0 0
    %3668 = vmatpush1.bf16.msra.mxu0 0
    %3669 = vmatprep.subr.bf16.mxu0 0
    %3670 = vmatpush1.bf16.msra.mxu0 0
    %3671 = vmatprep.subr.bf16.mxu0 0
    %3672 = vmatpush1.bf16.msra.mxu0 0
    %3673 = vmatprep.subr.bf16.mxu0 0
    %3674 = vmatpush1.bf16.msra.mxu0 0
    %3675 = vmatprep.subr.bf16.mxu0 0
    %3676 = vmatpush1.bf16.msra.mxu0 0
    %3677 = vmatprep.subr.bf16.mxu0 0
    %3678 = vmatpush1.bf16.msra.mxu0 0
    %3679 = vmatprep.subr.bf16.mxu0 0
    %3680 = vmatpush1.bf16.msra.mxu0 0
    %3681 = vmatprep.subr.bf16.mxu0 0
    %3682 = vmatpush1.bf16.msra.mxu0 0
    %3683 = vmatprep.subr.bf16.mxu0 0
    %3684 = vmatpush1.bf16.msra.mxu0 0
    %3685 = vmatprep.subr.bf16.mxu0 0
    %3686 = vmatpush1.bf16.msra.mxu0 0
    %3687 = vmatprep.mubr.bf16.mxu0 0
    %3688 = vmatmul.mubr.bf16.gmra.mrb[0].mxu0 %v3650
    %v3689 = vpop.f32.mrb[0].mxu0
    %v3690 = vadd.f32 0.0, %v3689
    %v3691 = vpop.f32.mrb[0].mxu0
    %v3692 = vpop.f32.mrb[0].mxu0
    %v3693 = vpop.f32.mrb[0].mxu0
    %3694 = vdwg.mxu0
    %v3695 = vpack.c.bf16 %v3690, %v3644
    %s3696 = scalar_lea.vmem [#allocation8], 112
    %v3697 = vld [vmem:[%s3696] sm:$0xf]
    %v3698 = vld [vmem:[%s3696 + $0x4] sm:$0xf]
    %v3699 = vld [vmem:[%s3696 + $0x8] sm:$0xf]
    %v3700 = vld [vmem:[%s3696 + $0xc] sm:$0xf]
    %v3705 = vunpack.c.l.b16 %v3697
    %v3706 = vunpack.c.l.b16 %v3698
    %v3707 = vunpack.c.l.b16 %v3699
    %v3708 = vunpack.c.l.b16 %v3700
    %v3709 = vpack.c.b16 %v3706, %v3705
    %v3710 = vpack.c.b16 %v3708, %v3707
    %v3714 = vsel %vm129, %v3695, 0
    %3716 = vmatprep.subr.bf16.mxu0 0
    %3717 = vmatpush1.bf16.msra.mxu0 %v3709
    %3718 = vmatprep.subr.bf16.mxu0 0
    %3719 = vmatpush1.bf16.msra.mxu0 %v3710
    %3720 = vmatprep.subr.bf16.mxu0 0
    %3721 = vmatpush1.bf16.msra.mxu0 0
    %3722 = vmatprep.subr.bf16.mxu0 0
    %3723 = vmatpush1.bf16.msra.mxu0 0
    %3724 = vmatprep.subr.bf16.mxu0 0
    %3725 = vmatpush1.bf16.msra.mxu0 0
    %3726 = vmatprep.subr.bf16.mxu0 0
    %3727 = vmatpush1.bf16.msra.mxu0 0
    %3728 = vmatprep.subr.bf16.mxu0 0
    %3729 = vmatpush1.bf16.msra.mxu0 0
    %3730 = vmatprep.subr.bf16.mxu0 0
    %3731 = vmatpush1.bf16.msra.mxu0 0
    %3732 = vmatprep.subr.bf16.mxu0 0
    %3733 = vmatpush1.bf16.msra.mxu0 0
    %3734 = vmatprep.subr.bf16.mxu0 0
    %3735 = vmatpush1.bf16.msra.mxu0 0
    %3736 = vmatprep.subr.bf16.mxu0 0
    %3737 = vmatpush1.bf16.msra.mxu0 0
    %3738 = vmatprep.subr.bf16.mxu0 0
    %3739 = vmatpush1.bf16.msra.mxu0 0
    %3740 = vmatprep.subr.bf16.mxu0 0
    %3741 = vmatpush1.bf16.msra.mxu0 0
    %3742 = vmatprep.subr.bf16.mxu0 0
    %3743 = vmatpush1.bf16.msra.mxu0 0
    %3744 = vmatprep.subr.bf16.mxu0 0
    %3745 = vmatpush1.bf16.msra.mxu0 0
    %3746 = vmatprep.subr.bf16.mxu0 0
    %3747 = vmatpush1.bf16.msra.mxu0 0
    %3748 = vmatprep.mubr.bf16.mxu0 0
    %3749 = vmatmul.mubr.bf16.gmra.mrb[0].mxu0 %v3714
    %v3750 = vpop.f32.mrb[0].mxu0
    %v3751 = vadd.f32 0.0, %v3750
    %v3752 = vpop.f32.mrb[0].mxu0
    %v3753 = vpop.f32.mrb[0].mxu0
    %v3754 = vadd.f32 0.0, %v3753
    %v3755 = vpop.f32.mrb[0].mxu0
    %3756 = vdwg.mxu0
    %v3757 = vadd.f32 %v3301, %v3751
    %v3758 = vadd.f32 %v3302, %v3754
    %v3759 = vld [vmem:[%s5] sm:$0x1]
    %v3761 = vlaneseq
    %v3762 = vshrl.u32 %v3761, 7
    %v3763 = vsub.s32 0, %v3762
    %v3764 = vrot.slane %v3759, %v3763
    %v3766 = vadd.f32 %v3757, %v3764
    %v3767 = vadd.f32 %v3758, %v3764
    %v3768 = vadd.f32 %v3766, %v104
    %v3769 = vadd.f32 %v3767, %v105
    %v3770 = vld [vmem:[%s6] sm:$0x1]
    %v3771 = vld [vmem:[%s7] sm:$0x1]
    %v3772 = vsel %vm129, %v3768, 0.0
    %3773 = vadd.xlane.f32.xlu0 %v3772
    %v3774 = vpop.xlane.xlu0 %3773
    %v3775 = vsel %vm129, %v3769, 0.0
    %3776 = vadd.xlane.f32.xlu0 %v3775
    %v3777 = vpop.xlane.xlu0 %3776
    %v3778 = vrcp.pop 32.0
    %v3779 = vmul.f32 %v3774, %v3778
    %v3780 = vmul.f32 %v3777, %v3778
    %v3781 = vsub.f32 %v3768, %v3779
    %v3782 = vsub.f32 %v3769, %v3780
    %v3783 = vmul.f32 %v3781, %v3781
    %v3784 = vmul.f32 %v3782, %v3782
    %v3785 = vsel %vm129, %v3783, 0.0
    %3786 = vadd.xlane.f32.xlu0 %v3785
    %v3787 = vpop.xlane.xlu0 %3786
    %v3788 = vsel %vm129, %v3784, 0.0
    %3789 = vadd.xlane.f32.xlu0 %v3788
    %v3790 = vpop.xlane.xlu0 %3789
    %v3791 = vmul.f32 %v3787, %v3778
    %v3792 = vmul.f32 %v3790, %v3778
    %v3793 = vadd.f32 %v3791, 1e-05
    %v3794 = vadd.f32 %v3792, 1e-05
    %v3795 = vrsqrt.pop %v3793
    %v3796 = vrsqrt.pop %v3794
    %v3797 = vmul.f32 %v3781, %v3795
    %v3798 = vmul.f32 %v3782, %v3796
    %v3800 = vlaneseq
    %v3801 = vshrl.u32 %v3800, 7
    %v3802 = vsub.s32 0, %v3801
    %v3803 = vrot.slane %v3770, %v3802
    %v3805 = vmul.f32 %v3797, %v3803
    %v3806 = vmul.f32 %v3798, %v3803
    %v3808 = vlaneseq
    %v3809 = vshrl.u32 %v3808, 7
    %v3810 = vsub.s32 0, %v3809
    %v3811 = vrot.slane %v3771, %v3810
    %v3813 = vadd.f32 %v3805, %v3811
    %v3814 = vadd.f32 %v3806, %v3811
    %v3815 = vpack.c.bf16 %v3814, %v3813
    %v3816 = vld [vmem:[%s8] sm:$0xf]
    %v3817 = vld [vmem:[%s8 + $0x4] sm:$0xf]
    %v3818 = vld [vmem:[%s8 + $0x8] sm:$0xf]
    %v3819 = vld [vmem:[%s8 + $0xc] sm:$0xf]
    %v3820 = vld [vmem:[%s9] sm:$0x1]
    %v3822 = vlaneseq
    %v3823 = vshrl.u32 %v3822, 7
    %v3824 = vsub.s32 0, %v3823
    %v3825 = vrot.slane %v3820, %v3824
    %v3831 = vunpack.c.l.b16 %v3816
    %v3832 = vunpack.c.l.b16 %v3817
    %v3833 = vunpack.c.l.b16 %v3818
    %v3834 = vunpack.c.l.b16 %v3819
    %v3835 = vpack.c.b16 %v3832, %v3831
    %v3836 = vpack.c.b16 %v3834, %v3833
    %v3840 = vsel %vm129, %v3815, 0
    %3842 = vmatprep.subr.bf16.mxu0 0
    %3843 = vmatpush1.bf16.msra.mxu0 %v3835
    %3844 = vmatprep.subr.bf16.mxu0 0
    %3845 = vmatpush1.bf16.msra.mxu0 %v3836
    %3846 = vmatprep.subr.bf16.mxu0 0
    %3847 = vmatpush1.bf16.msra.mxu0 0
    %3848 = vmatprep.subr.bf16.mxu0 0
    %3849 = vmatpush1.bf16.msra.mxu0 0
    %3850 = vmatprep.subr.bf16.mxu0 0
    %3851 = vmatpush1.bf16.msra.mxu0 0
    %3852 = vmatprep.subr.bf16.mxu0 0
    %3853 = vmatpush1.bf16.msra.mxu0 0
    %3854 = vmatprep.subr.bf16.mxu0 0
    %3855 = vmatpush1.bf16.msra.mxu0 0
    %3856 = vmatprep.subr.bf16.mxu0 0
    %3857 = vmatpush1.bf16.msra.mxu0 0
    %3858 = vmatprep.subr.bf16.mxu0 0
    %3859 = vmatpush1.bf16.msra.mxu0 0
    %3860 = vmatprep.subr.bf16.mxu0 0
    %3861 = vmatpush1.bf16.msra.mxu0 0
    %3862 = vmatprep.subr.bf16.mxu0 0
    %3863 = vmatpush1.bf16.msra.mxu0 0
    %3864 = vmatprep.subr.bf16.mxu0 0
    %3865 = vmatpush1.bf16.msra.mxu0 0
    %3866 = vmatprep.subr.bf16.mxu0 0
    %3867 = vmatpush1.bf16.msra.mxu0 0
    %3868 = vmatprep.subr.bf16.mxu0 0
    %3869 = vmatpush1.bf16.msra.mxu0 0
    %3870 = vmatprep.subr.bf16.mxu0 0
    %3871 = vmatpush1.bf16.msra.mxu0 0
    %3872 = vmatprep.subr.bf16.mxu0 0
    %3873 = vmatpush1.bf16.msra.mxu0 0
    %3874 = vmatprep.mubr.bf16.mxu0 0
    %3875 = vmatmul.mubr.bf16.gmra.mrb[0].mxu0 %v3840
    %v3876 = vpop.f32.mrb[0].mxu0
    %v3877 = vadd.f32 %v3825, %v3876
    %v3878 = vpop.f32.mrb[0].mxu0
    %v3879 = vpop.f32.mrb[0].mxu0
    %v3880 = vadd.f32 %v3825, %v3879
    %v3881 = vpop.f32.mrb[0].mxu0
    %3882 = vdwg.mxu0
    %v3883 = vmax.f32 %v3877, 0.0
    %v3884 = vmax.f32 %v3880, 0.0
    %v3885 = vpack.c.bf16 %v3884, %v3883
    %v3886 = vld [vmem:[%s10] sm:$0xf]
    %v3887 = vld [vmem:[%s10 + $0x4] sm:$0xf]
    %v3888 = vld [vmem:[%s10 + $0x8] sm:$0xf]
    %v3889 = vld [vmem:[%s10 + $0xc] sm:$0xf]
    %v3890 = vld [vmem:[%s10 + $0x10] sm:$0xf]
    %v3891 = vld [vmem:[%s10 + $0x14] sm:$0xf]
    %v3892 = vld [vmem:[%s10 + $0x18] sm:$0xf]
    %v3893 = vld [vmem:[%s10 + $0x1c] sm:$0xf]
    %v3894 = vld [vmem:[%s10 + $0x20] sm:$0xf]
    %v3895 = vld [vmem:[%s10 + $0x24] sm:$0xf]
    %v3896 = vld [vmem:[%s10 + $0x28] sm:$0xf]
    %v3897 = vld [vmem:[%s10 + $0x2c] sm:$0xf]
    %v3898 = vld [vmem:[%s10 + $0x30] sm:$0xf]
    %v3899 = vld [vmem:[%s10 + $0x34] sm:$0xf]
    %v3900 = vld [vmem:[%s10 + $0x38] sm:$0xf]
    %v3901 = vld [vmem:[%s10 + $0x3c] sm:$0xf]
    %v3902 = vld [vmem:[%s11] sm:$0x1]
    %v3904 = vlaneseq
    %v3905 = vshrl.u32 %v3904, 7
    %v3906 = vsub.s32 0, %v3905
    %v3907 = vrot.slane %v3902, %v3906
    %v3925 = vunpack.c.l.b16 %v3886
    %v3926 = vunpack.c.l.b16 %v3887
    %v3927 = vunpack.c.l.b16 %v3888
    %v3928 = vunpack.c.l.b16 %v3889
    %v3929 = vunpack.c.l.b16 %v3890
    %v3930 = vunpack.c.l.b16 %v3891
    %v3931 = vunpack.c.l.b16 %v3892
    %v3932 = vunpack.c.l.b16 %v3893
    %v3933 = vunpack.c.l.b16 %v3894
    %v3934 = vunpack.c.l.b16 %v3895
    %v3935 = vunpack.c.l.b16 %v3896
    %v3936 = vunpack.c.l.b16 %v3897
    %v3937 = vunpack.c.l.b16 %v3898
    %v3938 = vunpack.c.l.b16 %v3899
    %v3939 = vunpack.c.l.b16 %v3900
    %v3940 = vunpack.c.l.b16 %v3901
    %v3941 = vpack.c.b16 %v3926, %v3925
    %v3942 = vpack.c.b16 %v3928, %v3927
    %v3943 = vpack.c.b16 %v3930, %v3929
    %v3944 = vpack.c.b16 %v3932, %v3931
    %v3945 = vpack.c.b16 %v3934, %v3933
    %v3946 = vpack.c.b16 %v3936, %v3935
    %v3947 = vpack.c.b16 %v3938, %v3937
    %v3948 = vpack.c.b16 %v3940, %v3939
    %3957 = vmatprep.subr.bf16.mxu0 0
    %3958 = vmatpush1.bf16.msra.mxu0 %v3941
    %3959 = vmatprep.subr.bf16.mxu0 0
    %3960 = vmatpush1.bf16.msra.mxu0 %v3942
    %3961 = vmatprep.subr.bf16.mxu0 0
    %3962 = vmatpush1.bf16.msra.mxu0 %v3943
    %3963 = vmatprep.subr.bf16.mxu0 0
    %3964 = vmatpush1.bf16.msra.mxu0 %v3944
    %3965 = vmatprep.subr.bf16.mxu0 0
    %3966 = vmatpush1.bf16.msra.mxu0 %v3945
    %3967 = vmatprep.subr.bf16.mxu0 0
    %3968 = vmatpush1.bf16.msra.mxu0 %v3946
    %3969 = vmatprep.subr.bf16.mxu0 0
    %3970 = vmatpush1.bf16.msra.mxu0 %v3947
    %3971 = vmatprep.subr.bf16.mxu0 0
    %3972 = vmatpush1.bf16.msra.mxu0 %v3948
    %3973 = vmatprep.subr.bf16.mxu0 0
    %3974 = vmatpush1.bf16.msra.mxu0 0
    %3975 = vmatprep.subr.bf16.mxu0 0
    %3976 = vmatpush1.bf16.msra.mxu0 0
    %3977 = vmatprep.subr.bf16.mxu0 0
    %3978 = vmatpush1.bf16.msra.mxu0 0
    %3979 = vmatprep.subr.bf16.mxu0 0
    %3980 = vmatpush1.bf16.msra.mxu0 0
    %3981 = vmatprep.subr.bf16.mxu0 0
    %3982 = vmatpush1.bf16.msra.mxu0 0
    %3983 = vmatprep.subr.bf16.mxu0 0
    %3984 = vmatpush1.bf16.msra.mxu0 0
    %3985 = vmatprep.subr.bf16.mxu0 0
    %3986 = vmatpush1.bf16.msra.mxu0 0
    %3987 = vmatprep.subr.bf16.mxu0 0
    %3988 = vmatpush1.bf16.msra.mxu0 0
    %3989 = vmatprep.mubr.bf16.mxu0 0
    %3990 = vmatmul.mubr.bf16.gmra.mrb[0].mxu0 %v3885
    %v3991 = vpop.f32.mrb[0].mxu0
    %v3992 = vadd.f32 %v3907, %v3991
    %v3993 = vpop.f32.mrb[0].mxu0
    %v3994 = vpop.f32.mrb[0].mxu0
    %v3995 = vadd.f32 %v3907, %v3994
    %v3996 = vpop.f32.mrb[0].mxu0
    %3997 = vdwg.mxu0
    %v3998 = vadd.f32 %v3992, %v3813
    %v3999 = vadd.f32 %v3995, %v3814
    %v4000 = vld [vmem:[%s12] sm:$0x1]
    %v4001 = vld [vmem:[%s13] sm:$0x1]
    %v4002 = vsel %vm129, %v3998, 0.0
    %4003 = vadd.xlane.f32.xlu0 %v4002
    %v4004 = vpop.xlane.xlu0 %4003
    %v4005 = vsel %vm129, %v3999, 0.0
    %4006 = vadd.xlane.f32.xlu0 %v4005
    %v4007 = vpop.xlane.xlu0 %4006
    %v4008 = vmul.f32 %v4004, %v3778
    %v4009 = vmul.f32 %v4007, %v3778
    %v4010 = vsub.f32 %v3998, %v4008
    %v4011 = vsub.f32 %v3999, %v4009
    %v4012 = vmul.f32 %v4010, %v4010
    %v4013 = vmul.f32 %v4011, %v4011
    %v4014 = vsel %vm129, %v4012, 0.0
    %4015 = vadd.xlane.f32.xlu0 %v4014
    %v4016 = vpop.xlane.xlu0 %4015
    %v4017 = vsel %vm129, %v4013, 0.0
    %4018 = vadd.xlane.f32.xlu0 %v4017
    %v4019 = vpop.xlane.xlu0 %4018
    %v4020 = vmul.f32 %v4016, %v3778
    %v4021 = vmul.f32 %v4019, %v3778
    %v4022 = vadd.f32 %v4020, 1e-05
    %v4023 = vadd.f32 %v4021, 1e-05
    %v4024 = vrsqrt.pop %v4022
    %v4025 = vrsqrt.pop %v4023
    %v4026 = vmul.f32 %v4010, %v4024
    %v4027 = vmul.f32 %v4011, %v4025
    %v4029 = vlaneseq
    %v4030 = vshrl.u32 %v4029, 7
    %v4031 = vsub.s32 0, %v4030
    %v4032 = vrot.slane %v4000, %v4031
    %v4034 = vmul.f32 %v4026, %v4032
    %v4035 = vmul.f32 %v4027, %v4032
    %v4037 = vlaneseq
    %v4038 = vshrl.u32 %v4037, 7
    %v4039 = vsub.s32 0, %v4038
    %v4040 = vrot.slane %v4001, %v4039
    %v4042 = vadd.f32 %v4034, %v4040
    %v4043 = vadd.f32 %v4035, %v4040
    %4044 = vst.msk [vmem:[#allocation10] sm:$0xff] %vm129, %v4042
    %4045 = vst.msk [vmem:[#allocation10 + $0x8] sm:$0xff] %vm129, %v4043
    // Predicated region
    $region74: #{tpu_custom_call.1} parent=1 // pred_check
      _
    $region75: #{tpu_custom_call.1} parent=1 // pred_check_branch
      %4047 = sbr.rel (0) target = $region77
    $region76: #{tpu_custom_call.1} parent=1 // pred_region
      %s4049 = ssub.s32 256, 256
      %4050 = vsyncadd [#allocation4], %s4049
      %s4051 = sshll.u32 [#allocation10], 4
      %s4052 = int_to_ptr.vmem [resolvable:$true] %s4051
      %4057 = dma.vmem_to_hbm [thread:$0]  %s4052, 256, %s14, [#allocation4], 128, 128, 8
    $region77: #{tpu_custom_call.1} parent=1 // pred_fallthru
      _
    // Predicated region
    $region78: #{tpu_custom_call.1} parent=1 // pred_check
      _
    $region79: #{tpu_custom_call.1} parent=1 // pred_check_branch
      %4059 = sbr.rel (0) target = $region81
    $region80: #{tpu_custom_call.1} parent=1 // pred_region
      %4060 = dma.done [#allocation4], 256
    $region81: #{tpu_custom_call.1} parent=1 // pred_fallthru
      _
    %4061 = vsyncpa [#allocation3], 1
    %4062 = vsyncpa [#allocation6], 1
    %4063 = vsyncpa [#allocation9], 1
    %4064 = vsyncpa [#allocation4], 1

</llo_original>
